<compile_context>
chip_gen: v6e
topology: v6e:2x2x1
jax: 0.10.0
libtpu: 0.0.40
codegen_flags: <defaults>
</compile_context>

<pallas_src>
import functools

import jax
import jax.numpy as jnp
from jax.experimental import pallas as pl
from jax.experimental.pallas import tpu as pltpu

EPS = 1e-5
HI = jax.lax.Precision.HIGHEST


# ----------------------------------------------------------------------------
# In-kernel building block: Conv1d('same') + folded BN-bias + optional ReLU
# ----------------------------------------------------------------------------
def _conv_bias_act(x_bf3, w_ref, b_ref, *, act):
    """x_bf3: (TB, L, Cin) bf16 value; w_ref: (K*Cin, Cout) bf16 (BN scale pre-folded);
    b_ref: (1, Cout) f32.  Returns (TB*L, Cout) f32.

    'same' padding is applied per batch element in bf16 inside VMEM; the conv is a single
    im2col matmul on the MXU with f32 accumulation.
    """
    TB, L, cin = x_bf3.shape
    kcin, cout = w_ref.shape
    K = kcin // cin
    pad = K // 2
    if pad:
        z = jnp.zeros((TB, pad, cin), jnp.bfloat16)
        xp = jnp.concatenate([z, x_bf3, z], axis=1)          # (TB, L+2*pad, Cin) bf16
        taps = [xp[:, k:k + L, :] for k in range(K)]         # static K -> unrolled slices
        lhs = jnp.concatenate(taps, axis=2).reshape(TB * L, kcin)
    else:                                                    # 1x1 shortcut conv
        lhs = x_bf3.reshape(TB * L, cin)
    acc = jnp.dot(lhs, w_ref[...], preferred_element_type=jnp.float32)
    y = acc + b_ref[...]
    return jnp.maximum(y, 0.0) if act else y


# ----------------------------------------------------------------------------
# Fused whole-body kernel: 3 ResBlocks + GAP, one batch tile per grid step
# ----------------------------------------------------------------------------
def _resnet_body_kernel(x_ref, *refs, TB, L, sc_is_conv):
    o_ref = refs[-1]
    it = iter(refs[:-1])

    def convblock(x_bf3, act):
        w, b = next(it), next(it)
        return _conv_bias_act(x_bf3, w, b, act=act)          # f32 (TB*L, Cout)

    x_f32 = x_ref[...].astype(jnp.float32)                   # (TB, L, cin)
    x_bf = x_f32.astype(jnp.bfloat16)                        # one cast per conv input

    for blk in range(3):
        y = convblock(x_bf, True)
        y = convblock(y.astype(jnp.bfloat16).reshape(TB, L, -1), True)
        y = convblock(y.astype(jnp.bfloat16).reshape(TB, L, -1), False)
        if sc_is_conv[blk]:                                  # ConvBlock(ni, nf, 1) shortcut
            sc = convblock(x_bf, False)
        else:                                                # BN1d shortcut (folded affine)
            s, b = next(it), next(it)
            sc = x_f32.reshape(TB * L, x_f32.shape[-1]) * s[...] + b[...]
        x_f32 = jnp.maximum(y + sc, 0.0).reshape(TB, L, -1)  # residual add + ReLU in f32
        x_bf = x_f32.astype(jnp.bfloat16)

    # AdaptiveAvgPool1d(1) + Squeeze(-1): mean over length
    o_ref[0] = jnp.mean(x_f32, axis=1).astype(o_ref.dtype)


# ----------------------------------------------------------------------------
# Wrapper
# ----------------------------------------------------------------------------
def _flatten_params(params):
    """Flatten params into (args, specs) in kernel-argument order.

    Conv weights are stored as (K*Cin, Cout) bf16 with the BN scale folded in (in f32
    before the cast); biases stay f32.
    """
    args, specs = [], []

    def add(a):
        nd = a.ndim
        args.append(a)
        specs.append(pl.BlockSpec(a.shape, lambda n, nd=nd: (0,) * nd))

    def add_cb(cb):
        w = cb['w']                                          # (K, Cin, Cout) f32
        K, cin, cout = w.shape
        w_folded = (w * cb['scale'][None, None, :]).reshape(K * cin, cout)
        add(w_folded.astype(jnp.bfloat16))
        add(cb['bias'].reshape(1, cout).astype(jnp.float32))

    for name in ('rb1', 'rb2', 'rb3'):
        p = params[name]
        add_cb(p['cb1'])
        add_cb(p['cb2'])
        add_cb(p['cb3'])
        if 'sc_conv' in p:
            add_cb(p['sc_conv'])
        else:
            c = p['sc_bn']['scale'].shape[0]
            add(p['sc_bn']['scale'].reshape(1, c).astype(jnp.float32))
            add(p['sc_bn']['bias'].reshape(1, c).astype(jnp.float32))
    return args, specs


def _tpu_budgets():
    """(vmem_limit_bytes, target_rows) sized per TPU generation (v7x has 64 MiB VMEM)."""
    vmem = 128 * 1024 * 1024
    try:
        info = pltpu.get_tpu_info()
        for name in ("vmem_capacity_bytes", "vmem_size_bytes", "vmem_bytes"):
            v = getattr(info, name, None)
            if v:
                vmem = int(v)
                break
    except Exception:
        pass
    if vmem <= 64 * 1024 * 1024:                             # v7x-class: 64 MiB per TC
        limit, rows = 48 * 1024 * 1024, 4096
    else:                                                    # v5e / v6e: 128 MiB
        limit, rows = 96 * 1024 * 1024, 8192
    limit = min(limit, max(vmem - 8 * 1024 * 1024, 16 * 1024 * 1024))
    return limit, rows


def resnet_body_forward(x_ncl, params):
    N, c_in, L = x_ncl.shape
    x = jnp.transpose(x_ncl, (0, 2, 1)).astype(jnp.float32)  # NCL -> NLC

    vmem_limit, target_rows = _tpu_budgets()

    # Batch tile: aim for ~target_rows MXU rows per grid step, full length resident.
    TB = max(1, min(N, target_rows // max(L, 1)))
    # Keep >= 2 grid steps when N >= 2 so the "parallel" axis can split across 2 TCs (v7x).
    if N >= 2:
        TB = min(TB, -(-N // 2))
    ngrid = -(-N // TB)
    n_pad = ngrid * TB
    if n_pad != N:
        x = jnp.pad(x, ((0, n_pad - N), (0, 0), (0, 0)))

    wargs, wspecs = _flatten_params(params)
    sc_is_conv = tuple('sc_conv' in params[k] for k in ('rb1', 'rb2', 'rb3'))
    cout = params['rb3']['cb3']['w'].shape[2]

    kernel = functools.partial(_resnet_body_kernel, TB=TB, L=L, sc_is_conv=sc_is_conv)
    out = pl.pallas_call(
        kernel,
        out_shape=jax.ShapeDtypeStruct((ngrid, TB, cout), jnp.float32),
        grid=(ngrid,),
        in_specs=[pl.BlockSpec((TB, L, c_in), lambda n: (n, 0, 0))] + wspecs,
        out_specs=pl.BlockSpec((1, TB, cout), lambda n: (n, 0, 0)),
        compiler_params=pltpu.CompilerParams(
            dimension_semantics=("parallel",),
            vmem_limit_bytes=vmem_limit),
    )(x, *wargs)
    return out.reshape(n_pad, cout)[:N]


@jax.jit
def resnet_body_fwd(x_ncl, params):
    return resnet_body_forward(x_ncl, params)


# ----------------------------------------------------------------------------
# Parameter construction (deterministic, synthetic)
# ----------------------------------------------------------------------------
def _fold_bn(key, cout):
    k1, k2, k3, k4 = jax.random.split(key, 4)
    gamma = 1.0 + 0.1 * jax.random.normal(k1, (cout,), jnp.float32)
    beta = 0.1 * jax.random.normal(k2, (cout,), jnp.float32)
    mean = 0.1 * jax.random.normal(k3, (cout,), jnp.float32)
    var = jnp.abs(jax.random.normal(k4, (cout,), jnp.float32)) + 0.5
    scale = gamma / jnp.sqrt(var + EPS)
    bias = beta - mean * scale
    return scale, bias


def init_convblock(key, cin, cout, ks):
    kw, kb = jax.random.split(key)
    # weight stored as (K, Cin, Cout); PyTorch (Cout, Cin, K) is just a transpose.
    w = jax.random.normal(kw, (ks, cin, cout), jnp.float32) / jnp.sqrt(float(cin * ks))
    scale, bias = _fold_bn(kb, cout)
    return dict(w=w, scale=scale, bias=bias)


def init_resblock(key, ni, nf, kss=(7, 5, 3)):
    k1, k2, k3, k4 = jax.random.split(key, 4)
    p = dict(cb1=init_convblock(k1, ni, nf, kss[0]),
             cb2=init_convblock(k2, nf, nf, kss[1]),
             cb3=init_convblock(k3, nf, nf, kss[2]))
    if ni == nf:
        s, b = _fold_bn(k4, ni)
        p['sc_bn'] = dict(scale=s, bias=b)
    else:
        p['sc_conv'] = init_convblock(k4, ni, nf, 1)
    return p


def init_resnet_body(key, c_in, nf=64):
    k1, k2, k3 = jax.random.split(key, 3)
    return dict(rb1=init_resblock(k1, c_in, nf),
                rb2=init_resblock(k2, nf, nf * 2),
                rb3=init_resblock(k3, nf * 2, nf * 2))


# ----------------------------------------------------------------------------
# Pure-JAX references (NCL, lax.conv) for correctness checking
# ----------------------------------------------------------------------------
def _ref_conv_bn(x_ncl, w_kio, scale, bias, act, bf16):
    K = w_kio.shape[0]
    pad = K // 2
    w_oik = jnp.transpose(w_kio, (2, 1, 0))                  # (Cout, Cin, K)
    if bf16:                                                 # mirror kernel numerics:
        w_oik = (w_oik * scale[:, None, None]).astype(jnp.bfloat16)  # scale folded pre-cast
        xin = x_ncl.astype(jnp.bfloat16)
        y = jax.lax.conv_general_dilated(
            xin, w_oik, (1,), [(pad, pad)],
            dimension_numbers=('NCH', 'OIH', 'NCH'),
            preferred_element_type=jnp.float32, precision=HI)
        y = y + bias[None, :, None]
    else:
        y = jax.lax.conv_general_dilated(
            x_ncl, w_oik, (1,), [(pad, pad)],
            dimension_numbers=('NCH', 'OIH', 'NCH'),
            preferred_element_type=jnp.float32, precision=HI)
        y = y * scale[None, :, None] + bias[None, :, None]
    return jnp.maximum(y, 0.0) if act else y


def _ref_resblock(x, p, bf16):
    res = x
    y = _ref_conv_bn(x, p['cb1']['w'], p['cb1']['scale'], p['cb1']['bias'], True, bf16)
    y = _ref_conv_bn(y, p['cb2']['w'], p['cb2']['scale'], p['cb2']['bias'], True, bf16)
    y = _ref_conv_bn(y, p['cb3']['w'], p['cb3']['scale'], p['cb3']['bias'], False, bf16)
    if 'sc_conv' in p:
        s = _ref_conv_bn(res, p['sc_conv']['w'], p['sc_conv']['scale'],
                         p['sc_conv']['bias'], False, bf16)
    else:
        s = res * p['sc_bn']['scale'][None, :, None] + p['sc_bn']['bias'][None, :, None]
    return jnp.maximum(y + s, 0.0)


def _ref_body(x_ncl, params, bf16):
    x = _ref_resblock(x_ncl, params['rb1'], bf16)
    x = _ref_resblock(x, params['rb2'], bf16)
    x = _ref_resblock(x, params['rb3'], bf16)
    return jnp.mean(x, axis=-1)                              # AdaptiveAvgPool1d(1) + Squeeze


# ----------------------------------------------------------------------------
if __name__ == "__main__":
    N, C_IN, L = 2, 4, 16                                    # (batch, c_in, length)
    key = jax.random.PRNGKey(0)
    kx, kp = jax.random.split(key)
    x = jax.random.normal(kx, (N, C_IN, L), jnp.float32)     # PyTorch NCL input
    params = init_resnet_body(kp, C_IN)

    out = jax.block_until_ready(resnet_body_fwd(x, params))
    assert out.shape == (N, 128), out.shape

    ref_match = _ref_body(x, params, bf16=True)              # numerics-matched reference
    ref_exact = _ref_body(x, params, bf16=False)             # exact f32 reference
    assert jnp.allclose(out, ref_match, rtol=1e-2, atol=1e-2), (
        float(jnp.max(jnp.abs(out - ref_match))))
    assert jnp.allclose(out, ref_exact, rtol=1e-1, atol=1e-1), (
        float(jnp.max(jnp.abs(out - ref_exact))))

    print("KERNEL_OK")
</pallas_src>

<mosaic_0001>
module attributes {stable_mosaic.version = 11 : i64} {
  func.func @_resnet_body_kernel(%arg0: i32, %arg1: memref<1x16x4xf32, #tpu.memory_space<vmem>>, %arg2: memref<28x64xbf16, #tpu.memory_space<vmem>>, %arg3: memref<1x64xf32, #tpu.memory_space<vmem>>, %arg4: memref<320x64xbf16, #tpu.memory_space<vmem>>, %arg5: memref<1x64xf32, #tpu.memory_space<vmem>>, %arg6: memref<192x64xbf16, #tpu.memory_space<vmem>>, %arg7: memref<1x64xf32, #tpu.memory_space<vmem>>, %arg8: memref<4x64xbf16, #tpu.memory_space<vmem>>, %arg9: memref<1x64xf32, #tpu.memory_space<vmem>>, %arg10: memref<448x128xbf16, #tpu.memory_space<vmem>>, %arg11: memref<1x128xf32, #tpu.memory_space<vmem>>, %arg12: memref<640x128xbf16, #tpu.memory_space<vmem>>, %arg13: memref<1x128xf32, #tpu.memory_space<vmem>>, %arg14: memref<384x128xbf16, #tpu.memory_space<vmem>>, %arg15: memref<1x128xf32, #tpu.memory_space<vmem>>, %arg16: memref<64x128xbf16, #tpu.memory_space<vmem>>, %arg17: memref<1x128xf32, #tpu.memory_space<vmem>>, %arg18: memref<896x128xbf16, #tpu.memory_space<vmem>>, %arg19: memref<1x128xf32, #tpu.memory_space<vmem>>, %arg20: memref<640x128xbf16, #tpu.memory_space<vmem>>, %arg21: memref<1x128xf32, #tpu.memory_space<vmem>>, %arg22: memref<384x128xbf16, #tpu.memory_space<vmem>>, %arg23: memref<1x128xf32, #tpu.memory_space<vmem>>, %arg24: memref<1x128xf32, #tpu.memory_space<vmem>>, %arg25: memref<1x128xf32, #tpu.memory_space<vmem>>, %arg26: memref<1x1x128xf32, #tpu.memory_space<vmem>>) attributes {dimension_semantics = [#tpu.dimension_semantics<parallel>], iteration_bounds = array<i64: 2>, scalar_prefetch = 0 : i64, scratch_operands = 0 : i64, tpu.core_type = #tpu.core_type<tc>, window_params = [{transform_indices = @transform_0, window_bounds = array<i64: 1, 16, 4>}, {pipeline_mode = #tpu.pipeline_mode<synchronous>, transform_indices = @transform_1, window_bounds = array<i64: 28, 64>}, {pipeline_mode = #tpu.pipeline_mode<synchronous>, transform_indices = @transform_2, window_bounds = array<i64: 1, 64>}, {pipeline_mode = #tpu.pipeline_mode<synchronous>, transform_indices = @transform_3, window_bounds = array<i64: 320, 64>}, {pipeline_mode = #tpu.pipeline_mode<synchronous>, transform_indices = @transform_4, window_bounds = array<i64: 1, 64>}, {pipeline_mode = #tpu.pipeline_mode<synchronous>, transform_indices = @transform_5, window_bounds = array<i64: 192, 64>}, {pipeline_mode = #tpu.pipeline_mode<synchronous>, transform_indices = @transform_6, window_bounds = array<i64: 1, 64>}, {pipeline_mode = #tpu.pipeline_mode<synchronous>, transform_indices = @transform_7, window_bounds = array<i64: 4, 64>}, {pipeline_mode = #tpu.pipeline_mode<synchronous>, transform_indices = @transform_8, window_bounds = array<i64: 1, 64>}, {pipeline_mode = #tpu.pipeline_mode<synchronous>, transform_indices = @transform_9, window_bounds = array<i64: 448, 128>}, {pipeline_mode = #tpu.pipeline_mode<synchronous>, transform_indices = @transform_10, window_bounds = array<i64: 1, 128>}, {pipeline_mode = #tpu.pipeline_mode<synchronous>, transform_indices = @transform_11, window_bounds = array<i64: 640, 128>}, {pipeline_mode = #tpu.pipeline_mode<synchronous>, transform_indices = @transform_12, window_bounds = array<i64: 1, 128>}, {pipeline_mode = #tpu.pipeline_mode<synchronous>, transform_indices = @transform_13, window_bounds = array<i64: 384, 128>}, {pipeline_mode = #tpu.pipeline_mode<synchronous>, transform_indices = @transform_14, window_bounds = array<i64: 1, 128>}, {pipeline_mode = #tpu.pipeline_mode<synchronous>, transform_indices = @transform_15, window_bounds = array<i64: 64, 128>}, {pipeline_mode = #tpu.pipeline_mode<synchronous>, transform_indices = @transform_16, window_bounds = array<i64: 1, 128>}, {pipeline_mode = #tpu.pipeline_mode<synchronous>, transform_indices = @transform_17, window_bounds = array<i64: 896, 128>}, {pipeline_mode = #tpu.pipeline_mode<synchronous>, transform_indices = @transform_18, window_bounds = array<i64: 1, 128>}, {pipeline_mode = #tpu.pipeline_mode<synchronous>, transform_indices = @transform_19, window_bounds = array<i64: 640, 128>}, {pipeline_mode = #tpu.pipeline_mode<synchronous>, transform_indices = @transform_20, window_bounds = array<i64: 1, 128>}, {pipeline_mode = #tpu.pipeline_mode<synchronous>, transform_indices = @transform_21, window_bounds = array<i64: 384, 128>}, {pipeline_mode = #tpu.pipeline_mode<synchronous>, transform_indices = @transform_22, window_bounds = array<i64: 1, 128>}, {pipeline_mode = #tpu.pipeline_mode<synchronous>, transform_indices = @transform_23, window_bounds = array<i64: 1, 128>}, {pipeline_mode = #tpu.pipeline_mode<synchronous>, transform_indices = @transform_24, window_bounds = array<i64: 1, 128>}, {transform_indices = @transform_25, window_bounds = array<i64: 1, 1, 128>}]} {
    %c0 = arith.constant 0 : index
    %c0_0 = arith.constant 0 : index
    %c0_1 = arith.constant 0 : index
    %0 = vector.load %arg1[%c0, %c0_0, %c0_1] : memref<1x16x4xf32, #tpu.memory_space<vmem>>, vector<1x16x4xf32>
    %1 = arith.truncf %0 : vector<1x16x4xf32> to vector<1x16x4xbf16>
    %cst = arith.constant 0.000000e+00 : bf16
    %2 = vector.broadcast %cst : bf16 to vector<1x3x4xbf16>
    %3 = tpu.concatenate %2, %1, %2 in 1 : vector<1x3x4xbf16>, vector<1x16x4xbf16>, vector<1x3x4xbf16> -> vector<1x22x4xbf16>
    %4 = vector.extract_strided_slice %3 {offsets = [0, 0, 0], sizes = [1, 16, 4], strides = [1, 1, 1]} : vector<1x22x4xbf16> to vector<1x16x4xbf16>
    %5 = vector.extract_strided_slice %3 {offsets = [0, 1, 0], sizes = [1, 16, 4], strides = [1, 1, 1]} : vector<1x22x4xbf16> to vector<1x16x4xbf16>
    %6 = vector.extract_strided_slice %3 {offsets = [0, 2, 0], sizes = [1, 16, 4], strides = [1, 1, 1]} : vector<1x22x4xbf16> to vector<1x16x4xbf16>
    %7 = vector.extract_strided_slice %3 {offsets = [0, 3, 0], sizes = [1, 16, 4], strides = [1, 1, 1]} : vector<1x22x4xbf16> to vector<1x16x4xbf16>
    %8 = vector.extract_strided_slice %3 {offsets = [0, 4, 0], sizes = [1, 16, 4], strides = [1, 1, 1]} : vector<1x22x4xbf16> to vector<1x16x4xbf16>
    %9 = vector.extract_strided_slice %3 {offsets = [0, 5, 0], sizes = [1, 16, 4], strides = [1, 1, 1]} : vector<1x22x4xbf16> to vector<1x16x4xbf16>
    %10 = vector.extract_strided_slice %3 {offsets = [0, 6, 0], sizes = [1, 16, 4], strides = [1, 1, 1]} : vector<1x22x4xbf16> to vector<1x16x4xbf16>
    %11 = tpu.concatenate %4, %5, %6, %7, %8, %9, %10 in 2 : vector<1x16x4xbf16>, vector<1x16x4xbf16>, vector<1x16x4xbf16>, vector<1x16x4xbf16>, vector<1x16x4xbf16>, vector<1x16x4xbf16>, vector<1x16x4xbf16> -> vector<1x16x28xbf16>
    %12 = vector.shape_cast %11 : vector<1x16x28xbf16> to vector<16x28xbf16>
    %c0_2 = arith.constant 0 : index
    %c0_3 = arith.constant 0 : index
    %13 = vector.load %arg2[%c0_2, %c0_3] : memref<28x64xbf16, #tpu.memory_space<vmem>>, vector<28x64xbf16>
    %cst_4 = arith.constant dense<0.000000e+00> : vector<16x64xf32>
    %14 = tpu.matmul %12, %13, %cst_4 {dimension_numbers = #tpu.dot_dimension_numbers<[1], [0], [0], [1], [0, 0, 1, 1], [], []>} : vector<16x28xbf16>, vector<28x64xbf16>, vector<16x64xf32> -> vector<16x64xf32>
    %c0_5 = arith.constant 0 : index
    %c0_6 = arith.constant 0 : index
    %15 = vector.load %arg3[%c0_5, %c0_6] : memref<1x64xf32, #tpu.memory_space<vmem>>, vector<1x64xf32>
    %16 = vector.broadcast %15 : vector<1x64xf32> to vector<16x64xf32>
    %17 = arith.addf %14, %16 : vector<16x64xf32>
    %cst_7 = arith.constant 0.000000e+00 : f32
    %18 = vector.broadcast %cst_7 : f32 to vector<16x64xf32>
    %19 = arith.maximumf %17, %18 : vector<16x64xf32>
    %20 = arith.truncf %19 : vector<16x64xf32> to vector<16x64xbf16>
    %21 = vector.shape_cast %20 : vector<16x64xbf16> to vector<1x16x64xbf16>
    %cst_8 = arith.constant 0.000000e+00 : bf16
    %22 = vector.broadcast %cst_8 : bf16 to vector<1x2x64xbf16>
    %23 = tpu.concatenate %22, %21, %22 in 1 : vector<1x2x64xbf16>, vector<1x16x64xbf16>, vector<1x2x64xbf16> -> vector<1x20x64xbf16>
    %24 = vector.extract_strided_slice %23 {offsets = [0, 0, 0], sizes = [1, 16, 64], strides = [1, 1, 1]} : vector<1x20x64xbf16> to vector<1x16x64xbf16>
    %25 = vector.extract_strided_slice %23 {offsets = [0, 1, 0], sizes = [1, 16, 64], strides = [1, 1, 1]} : vector<1x20x64xbf16> to vector<1x16x64xbf16>
    %26 = vector.extract_strided_slice %23 {offsets = [0, 2, 0], sizes = [1, 16, 64], strides = [1, 1, 1]} : vector<1x20x64xbf16> to vector<1x16x64xbf16>
    %27 = vector.extract_strided_slice %23 {offsets = [0, 3, 0], sizes = [1, 16, 64], strides = [1, 1, 1]} : vector<1x20x64xbf16> to vector<1x16x64xbf16>
    %28 = vector.extract_strided_slice %23 {offsets = [0, 4, 0], sizes = [1, 16, 64], strides = [1, 1, 1]} : vector<1x20x64xbf16> to vector<1x16x64xbf16>
    %29 = tpu.concatenate %24, %25, %26, %27, %28 in 2 : vector<1x16x64xbf16>, vector<1x16x64xbf16>, vector<1x16x64xbf16>, vector<1x16x64xbf16>, vector<1x16x64xbf16> -> vector<1x16x320xbf16>
    %30 = vector.shape_cast %29 : vector<1x16x320xbf16> to vector<16x320xbf16>
    %c0_9 = arith.constant 0 : index
    %c0_10 = arith.constant 0 : index
    %31 = vector.load %arg4[%c0_9, %c0_10] : memref<320x64xbf16, #tpu.memory_space<vmem>>, vector<320x64xbf16>
    %cst_11 = arith.constant dense<0.000000e+00> : vector<16x64xf32>
    %32 = tpu.matmul %30, %31, %cst_11 {dimension_numbers = #tpu.dot_dimension_numbers<[1], [0], [0], [1], [0, 0, 1, 1], [], []>} : vector<16x320xbf16>, vector<320x64xbf16>, vector<16x64xf32> -> vector<16x64xf32>
    %c0_12 = arith.constant 0 : index
    %c0_13 = arith.constant 0 : index
    %33 = vector.load %arg5[%c0_12, %c0_13] : memref<1x64xf32, #tpu.memory_space<vmem>>, vector<1x64xf32>
    %34 = vector.broadcast %33 : vector<1x64xf32> to vector<16x64xf32>
    %35 = arith.addf %32, %34 : vector<16x64xf32>
    %cst_14 = arith.constant 0.000000e+00 : f32
    %36 = vector.broadcast %cst_14 : f32 to vector<16x64xf32>
    %37 = arith.maximumf %35, %36 : vector<16x64xf32>
    %38 = arith.truncf %37 : vector<16x64xf32> to vector<16x64xbf16>
    %39 = vector.shape_cast %38 : vector<16x64xbf16> to vector<1x16x64xbf16>
    %cst_15 = arith.constant 0.000000e+00 : bf16
    %40 = vector.broadcast %cst_15 : bf16 to vector<1x1x64xbf16>
    %41 = tpu.concatenate %40, %39, %40 in 1 : vector<1x1x64xbf16>, vector<1x16x64xbf16>, vector<1x1x64xbf16> -> vector<1x18x64xbf16>
    %42 = vector.extract_strided_slice %41 {offsets = [0, 0, 0], sizes = [1, 16, 64], strides = [1, 1, 1]} : vector<1x18x64xbf16> to vector<1x16x64xbf16>
    %43 = vector.extract_strided_slice %41 {offsets = [0, 1, 0], sizes = [1, 16, 64], strides = [1, 1, 1]} : vector<1x18x64xbf16> to vector<1x16x64xbf16>
    %44 = vector.extract_strided_slice %41 {offsets = [0, 2, 0], sizes = [1, 16, 64], strides = [1, 1, 1]} : vector<1x18x64xbf16> to vector<1x16x64xbf16>
    %45 = tpu.concatenate %42, %43, %44 in 2 : vector<1x16x64xbf16>, vector<1x16x64xbf16>, vector<1x16x64xbf16> -> vector<1x16x192xbf16>
    %46 = vector.shape_cast %45 : vector<1x16x192xbf16> to vector<16x192xbf16>
    %c0_16 = arith.constant 0 : index
    %c0_17 = arith.constant 0 : index
    %47 = vector.load %arg6[%c0_16, %c0_17] : memref<192x64xbf16, #tpu.memory_space<vmem>>, vector<192x64xbf16>
    %cst_18 = arith.constant dense<0.000000e+00> : vector<16x64xf32>
    %48 = tpu.matmul %46, %47, %cst_18 {dimension_numbers = #tpu.dot_dimension_numbers<[1], [0], [0], [1], [0, 0, 1, 1], [], []>} : vector<16x192xbf16>, vector<192x64xbf16>, vector<16x64xf32> -> vector<16x64xf32>
    %c0_19 = arith.constant 0 : index
    %c0_20 = arith.constant 0 : index
    %49 = vector.load %arg7[%c0_19, %c0_20] : memref<1x64xf32, #tpu.memory_space<vmem>>, vector<1x64xf32>
    %50 = vector.broadcast %49 : vector<1x64xf32> to vector<16x64xf32>
    %51 = arith.addf %48, %50 : vector<16x64xf32>
    %52 = vector.shape_cast %1 : vector<1x16x4xbf16> to vector<16x4xbf16>
    %c0_21 = arith.constant 0 : index
    %c0_22 = arith.constant 0 : index
    %53 = vector.load %arg8[%c0_21, %c0_22] : memref<4x64xbf16, #tpu.memory_space<vmem>>, vector<4x64xbf16>
    %cst_23 = arith.constant dense<0.000000e+00> : vector<16x64xf32>
    %54 = tpu.matmul %52, %53, %cst_23 {dimension_numbers = #tpu.dot_dimension_numbers<[1], [0], [0], [1], [0, 0, 1, 1], [], []>} : vector<16x4xbf16>, vector<4x64xbf16>, vector<16x64xf32> -> vector<16x64xf32>
    %c0_24 = arith.constant 0 : index
    %c0_25 = arith.constant 0 : index
    %55 = vector.load %arg9[%c0_24, %c0_25] : memref<1x64xf32, #tpu.memory_space<vmem>>, vector<1x64xf32>
    %56 = vector.broadcast %55 : vector<1x64xf32> to vector<16x64xf32>
    %57 = arith.addf %54, %56 : vector<16x64xf32>
    %58 = arith.addf %51, %57 : vector<16x64xf32>
    %cst_26 = arith.constant 0.000000e+00 : f32
    %59 = vector.broadcast %cst_26 : f32 to vector<16x64xf32>
    %60 = arith.maximumf %58, %59 : vector<16x64xf32>
    %61 = vector.shape_cast %60 : vector<16x64xf32> to vector<1x16x64xf32>
    %62 = arith.truncf %61 : vector<1x16x64xf32> to vector<1x16x64xbf16>
    %cst_27 = arith.constant 0.000000e+00 : bf16
    %63 = vector.broadcast %cst_27 : bf16 to vector<1x3x64xbf16>
    %64 = tpu.concatenate %63, %62, %63 in 1 : vector<1x3x64xbf16>, vector<1x16x64xbf16>, vector<1x3x64xbf16> -> vector<1x22x64xbf16>
    %65 = vector.extract_strided_slice %64 {offsets = [0, 0, 0], sizes = [1, 16, 64], strides = [1, 1, 1]} : vector<1x22x64xbf16> to vector<1x16x64xbf16>
    %66 = vector.extract_strided_slice %64 {offsets = [0, 1, 0], sizes = [1, 16, 64], strides = [1, 1, 1]} : vector<1x22x64xbf16> to vector<1x16x64xbf16>
    %67 = vector.extract_strided_slice %64 {offsets = [0, 2, 0], sizes = [1, 16, 64], strides = [1, 1, 1]} : vector<1x22x64xbf16> to vector<1x16x64xbf16>
    %68 = vector.extract_strided_slice %64 {offsets = [0, 3, 0], sizes = [1, 16, 64], strides = [1, 1, 1]} : vector<1x22x64xbf16> to vector<1x16x64xbf16>
    %69 = vector.extract_strided_slice %64 {offsets = [0, 4, 0], sizes = [1, 16, 64], strides = [1, 1, 1]} : vector<1x22x64xbf16> to vector<1x16x64xbf16>
    %70 = vector.extract_strided_slice %64 {offsets = [0, 5, 0], sizes = [1, 16, 64], strides = [1, 1, 1]} : vector<1x22x64xbf16> to vector<1x16x64xbf16>
    %71 = vector.extract_strided_slice %64 {offsets = [0, 6, 0], sizes = [1, 16, 64], strides = [1, 1, 1]} : vector<1x22x64xbf16> to vector<1x16x64xbf16>
    %72 = tpu.concatenate %65, %66, %67, %68, %69, %70, %71 in 2 : vector<1x16x64xbf16>, vector<1x16x64xbf16>, vector<1x16x64xbf16>, vector<1x16x64xbf16>, vector<1x16x64xbf16>, vector<1x16x64xbf16>, vector<1x16x64xbf16> -> vector<1x16x448xbf16>
    %73 = vector.shape_cast %72 : vector<1x16x448xbf16> to vector<16x448xbf16>
    %c0_28 = arith.constant 0 : index
    %c0_29 = arith.constant 0 : index
    %74 = vector.load %arg10[%c0_28, %c0_29] : memref<448x128xbf16, #tpu.memory_space<vmem>>, vector<448x128xbf16>
    %cst_30 = arith.constant dense<0.000000e+00> : vector<16x128xf32>
    %75 = tpu.matmul %73, %74, %cst_30 {dimension_numbers = #tpu.dot_dimension_numbers<[1], [0], [0], [1], [0, 0, 1, 1], [], []>} : vector<16x448xbf16>, vector<448x128xbf16>, vector<16x128xf32> -> vector<16x128xf32>
    %c0_31 = arith.constant 0 : index
    %c0_32 = arith.constant 0 : index
    %76 = vector.load %arg11[%c0_31, %c0_32] : memref<1x128xf32, #tpu.memory_space<vmem>>, vector<1x128xf32>
    %77 = vector.broadcast %76 : vector<1x128xf32> to vector<16x128xf32>
    %78 = arith.addf %75, %77 : vector<16x128xf32>
    %cst_33 = arith.constant 0.000000e+00 : f32
    %79 = vector.broadcast %cst_33 : f32 to vector<16x128xf32>
    %80 = arith.maximumf %78, %79 : vector<16x128xf32>
    %81 = arith.truncf %80 : vector<16x128xf32> to vector<16x128xbf16>
    %82 = vector.shape_cast %81 : vector<16x128xbf16> to vector<1x16x128xbf16>
    %cst_34 = arith.constant 0.000000e+00 : bf16
    %83 = vector.broadcast %cst_34 : bf16 to vector<1x2x128xbf16>
    %84 = tpu.concatenate %83, %82, %83 in 1 : vector<1x2x128xbf16>, vector<1x16x128xbf16>, vector<1x2x128xbf16> -> vector<1x20x128xbf16>
    %85 = vector.extract_strided_slice %84 {offsets = [0, 0, 0], sizes = [1, 16, 128], strides = [1, 1, 1]} : vector<1x20x128xbf16> to vector<1x16x128xbf16>
    %86 = vector.extract_strided_slice %84 {offsets = [0, 1, 0], sizes = [1, 16, 128], strides = [1, 1, 1]} : vector<1x20x128xbf16> to vector<1x16x128xbf16>
    %87 = vector.extract_strided_slice %84 {offsets = [0, 2, 0], sizes = [1, 16, 128], strides = [1, 1, 1]} : vector<1x20x128xbf16> to vector<1x16x128xbf16>
    %88 = vector.extract_strided_slice %84 {offsets = [0, 3, 0], sizes = [1, 16, 128], strides = [1, 1, 1]} : vector<1x20x128xbf16> to vector<1x16x128xbf16>
    %89 = vector.extract_strided_slice %84 {offsets = [0, 4, 0], sizes = [1, 16, 128], strides = [1, 1, 1]} : vector<1x20x128xbf16> to vector<1x16x128xbf16>
    %90 = tpu.concatenate %85, %86, %87, %88, %89 in 2 : vector<1x16x128xbf16>, vector<1x16x128xbf16>, vector<1x16x128xbf16>, vector<1x16x128xbf16>, vector<1x16x128xbf16> -> vector<1x16x640xbf16>
    %91 = vector.shape_cast %90 : vector<1x16x640xbf16> to vector<16x640xbf16>
    %c0_35 = arith.constant 0 : index
    %c0_36 = arith.constant 0 : index
    %92 = vector.load %arg12[%c0_35, %c0_36] : memref<640x128xbf16, #tpu.memory_space<vmem>>, vector<640x128xbf16>
    %cst_37 = arith.constant dense<0.000000e+00> : vector<16x128xf32>
    %93 = tpu.matmul %91, %92, %cst_37 {dimension_numbers = #tpu.dot_dimension_numbers<[1], [0], [0], [1], [0, 0, 1, 1], [], []>} : vector<16x640xbf16>, vector<640x128xbf16>, vector<16x128xf32> -> vector<16x128xf32>
    %c0_38 = arith.constant 0 : index
    %c0_39 = arith.constant 0 : index
    %94 = vector.load %arg13[%c0_38, %c0_39] : memref<1x128xf32, #tpu.memory_space<vmem>>, vector<1x128xf32>
    %95 = vector.broadcast %94 : vector<1x128xf32> to vector<16x128xf32>
    %96 = arith.addf %93, %95 : vector<16x128xf32>
    %cst_40 = arith.constant 0.000000e+00 : f32
    %97 = vector.broadcast %cst_40 : f32 to vector<16x128xf32>
    %98 = arith.maximumf %96, %97 : vector<16x128xf32>
    %99 = arith.truncf %98 : vector<16x128xf32> to vector<16x128xbf16>
    %100 = vector.shape_cast %99 : vector<16x128xbf16> to vector<1x16x128xbf16>
    %cst_41 = arith.constant 0.000000e+00 : bf16
    %101 = vector.broadcast %cst_41 : bf16 to vector<1x1x128xbf16>
    %102 = tpu.concatenate %101, %100, %101 in 1 : vector<1x1x128xbf16>, vector<1x16x128xbf16>, vector<1x1x128xbf16> -> vector<1x18x128xbf16>
    %103 = vector.extract_strided_slice %102 {offsets = [0, 0, 0], sizes = [1, 16, 128], strides = [1, 1, 1]} : vector<1x18x128xbf16> to vector<1x16x128xbf16>
    %104 = vector.extract_strided_slice %102 {offsets = [0, 1, 0], sizes = [1, 16, 128], strides = [1, 1, 1]} : vector<1x18x128xbf16> to vector<1x16x128xbf16>
    %105 = vector.extract_strided_slice %102 {offsets = [0, 2, 0], sizes = [1, 16, 128], strides = [1, 1, 1]} : vector<1x18x128xbf16> to vector<1x16x128xbf16>
    %106 = tpu.concatenate %103, %104, %105 in 2 : vector<1x16x128xbf16>, vector<1x16x128xbf16>, vector<1x16x128xbf16> -> vector<1x16x384xbf16>
    %107 = vector.shape_cast %106 : vector<1x16x384xbf16> to vector<16x384xbf16>
    %c0_42 = arith.constant 0 : index
    %c0_43 = arith.constant 0 : index
    %108 = vector.load %arg14[%c0_42, %c0_43] : memref<384x128xbf16, #tpu.memory_space<vmem>>, vector<384x128xbf16>
    %cst_44 = arith.constant dense<0.000000e+00> : vector<16x128xf32>
    %109 = tpu.matmul %107, %108, %cst_44 {dimension_numbers = #tpu.dot_dimension_numbers<[1], [0], [0], [1], [0, 0, 1, 1], [], []>} : vector<16x384xbf16>, vector<384x128xbf16>, vector<16x128xf32> -> vector<16x128xf32>
    %c0_45 = arith.constant 0 : index
    %c0_46 = arith.constant 0 : index
    %110 = vector.load %arg15[%c0_45, %c0_46] : memref<1x128xf32, #tpu.memory_space<vmem>>, vector<1x128xf32>
    %111 = vector.broadcast %110 : vector<1x128xf32> to vector<16x128xf32>
    %112 = arith.addf %109, %111 : vector<16x128xf32>
    %113 = vector.shape_cast %62 : vector<1x16x64xbf16> to vector<16x64xbf16>
    %c0_47 = arith.constant 0 : index
    %c0_48 = arith.constant 0 : index
    %114 = vector.load %arg16[%c0_47, %c0_48] : memref<64x128xbf16, #tpu.memory_space<vmem>>, vector<64x128xbf16>
    %cst_49 = arith.constant dense<0.000000e+00> : vector<16x128xf32>
    %115 = tpu.matmul %113, %114, %cst_49 {dimension_numbers = #tpu.dot_dimension_numbers<[1], [0], [0], [1], [0, 0, 1, 1], [], []>} : vector<16x64xbf16>, vector<64x128xbf16>, vector<16x128xf32> -> vector<16x128xf32>
    %c0_50 = arith.constant 0 : index
    %c0_51 = arith.constant 0 : index
    %116 = vector.load %arg17[%c0_50, %c0_51] : memref<1x128xf32, #tpu.memory_space<vmem>>, vector<1x128xf32>
    %117 = vector.broadcast %116 : vector<1x128xf32> to vector<16x128xf32>
    %118 = arith.addf %115, %117 : vector<16x128xf32>
    %119 = arith.addf %112, %118 : vector<16x128xf32>
    %cst_52 = arith.constant 0.000000e+00 : f32
    %120 = vector.broadcast %cst_52 : f32 to vector<16x128xf32>
    %121 = arith.maximumf %119, %120 : vector<16x128xf32>
    %122 = vector.shape_cast %121 : vector<16x128xf32> to vector<1x16x128xf32>
    %123 = arith.truncf %122 : vector<1x16x128xf32> to vector<1x16x128xbf16>
    %cst_53 = arith.constant 0.000000e+00 : bf16
    %124 = vector.broadcast %cst_53 : bf16 to vector<1x3x128xbf16>
    %125 = tpu.concatenate %124, %123, %124 in 1 : vector<1x3x128xbf16>, vector<1x16x128xbf16>, vector<1x3x128xbf16> -> vector<1x22x128xbf16>
    %126 = vector.extract_strided_slice %125 {offsets = [0, 0, 0], sizes = [1, 16, 128], strides = [1, 1, 1]} : vector<1x22x128xbf16> to vector<1x16x128xbf16>
    %127 = vector.extract_strided_slice %125 {offsets = [0, 1, 0], sizes = [1, 16, 128], strides = [1, 1, 1]} : vector<1x22x128xbf16> to vector<1x16x128xbf16>
    %128 = vector.extract_strided_slice %125 {offsets = [0, 2, 0], sizes = [1, 16, 128], strides = [1, 1, 1]} : vector<1x22x128xbf16> to vector<1x16x128xbf16>
    %129 = vector.extract_strided_slice %125 {offsets = [0, 3, 0], sizes = [1, 16, 128], strides = [1, 1, 1]} : vector<1x22x128xbf16> to vector<1x16x128xbf16>
    %130 = vector.extract_strided_slice %125 {offsets = [0, 4, 0], sizes = [1, 16, 128], strides = [1, 1, 1]} : vector<1x22x128xbf16> to vector<1x16x128xbf16>
    %131 = vector.extract_strided_slice %125 {offsets = [0, 5, 0], sizes = [1, 16, 128], strides = [1, 1, 1]} : vector<1x22x128xbf16> to vector<1x16x128xbf16>
    %132 = vector.extract_strided_slice %125 {offsets = [0, 6, 0], sizes = [1, 16, 128], strides = [1, 1, 1]} : vector<1x22x128xbf16> to vector<1x16x128xbf16>
    %133 = tpu.concatenate %126, %127, %128, %129, %130, %131, %132 in 2 : vector<1x16x128xbf16>, vector<1x16x128xbf16>, vector<1x16x128xbf16>, vector<1x16x128xbf16>, vector<1x16x128xbf16>, vector<1x16x128xbf16>, vector<1x16x128xbf16> -> vector<1x16x896xbf16>
    %134 = vector.shape_cast %133 : vector<1x16x896xbf16> to vector<16x896xbf16>
    %c0_54 = arith.constant 0 : index
    %c0_55 = arith.constant 0 : index
    %135 = vector.load %arg18[%c0_54, %c0_55] : memref<896x128xbf16, #tpu.memory_space<vmem>>, vector<896x128xbf16>
    %cst_56 = arith.constant dense<0.000000e+00> : vector<16x128xf32>
    %136 = tpu.matmul %134, %135, %cst_56 {dimension_numbers = #tpu.dot_dimension_numbers<[1], [0], [0], [1], [0, 0, 1, 1], [], []>} : vector<16x896xbf16>, vector<896x128xbf16>, vector<16x128xf32> -> vector<16x128xf32>
    %c0_57 = arith.constant 0 : index
    %c0_58 = arith.constant 0 : index
    %137 = vector.load %arg19[%c0_57, %c0_58] : memref<1x128xf32, #tpu.memory_space<vmem>>, vector<1x128xf32>
    %138 = vector.broadcast %137 : vector<1x128xf32> to vector<16x128xf32>
    %139 = arith.addf %136, %138 : vector<16x128xf32>
    %cst_59 = arith.constant 0.000000e+00 : f32
    %140 = vector.broadcast %cst_59 : f32 to vector<16x128xf32>
    %141 = arith.maximumf %139, %140 : vector<16x128xf32>
    %142 = arith.truncf %141 : vector<16x128xf32> to vector<16x128xbf16>
    %143 = vector.shape_cast %142 : vector<16x128xbf16> to vector<1x16x128xbf16>
    %cst_60 = arith.constant 0.000000e+00 : bf16
    %144 = vector.broadcast %cst_60 : bf16 to vector<1x2x128xbf16>
    %145 = tpu.concatenate %144, %143, %144 in 1 : vector<1x2x128xbf16>, vector<1x16x128xbf16>, vector<1x2x128xbf16> -> vector<1x20x128xbf16>
    %146 = vector.extract_strided_slice %145 {offsets = [0, 0, 0], sizes = [1, 16, 128], strides = [1, 1, 1]} : vector<1x20x128xbf16> to vector<1x16x128xbf16>
    %147 = vector.extract_strided_slice %145 {offsets = [0, 1, 0], sizes = [1, 16, 128], strides = [1, 1, 1]} : vector<1x20x128xbf16> to vector<1x16x128xbf16>
    %148 = vector.extract_strided_slice %145 {offsets = [0, 2, 0], sizes = [1, 16, 128], strides = [1, 1, 1]} : vector<1x20x128xbf16> to vector<1x16x128xbf16>
    %149 = vector.extract_strided_slice %145 {offsets = [0, 3, 0], sizes = [1, 16, 128], strides = [1, 1, 1]} : vector<1x20x128xbf16> to vector<1x16x128xbf16>
    %150 = vector.extract_strided_slice %145 {offsets = [0, 4, 0], sizes = [1, 16, 128], strides = [1, 1, 1]} : vector<1x20x128xbf16> to vector<1x16x128xbf16>
    %151 = tpu.concatenate %146, %147, %148, %149, %150 in 2 : vector<1x16x128xbf16>, vector<1x16x128xbf16>, vector<1x16x128xbf16>, vector<1x16x128xbf16>, vector<1x16x128xbf16> -> vector<1x16x640xbf16>
    %152 = vector.shape_cast %151 : vector<1x16x640xbf16> to vector<16x640xbf16>
    %c0_61 = arith.constant 0 : index
    %c0_62 = arith.constant 0 : index
    %153 = vector.load %arg20[%c0_61, %c0_62] : memref<640x128xbf16, #tpu.memory_space<vmem>>, vector<640x128xbf16>
    %cst_63 = arith.constant dense<0.000000e+00> : vector<16x128xf32>
    %154 = tpu.matmul %152, %153, %cst_63 {dimension_numbers = #tpu.dot_dimension_numbers<[1], [0], [0], [1], [0, 0, 1, 1], [], []>} : vector<16x640xbf16>, vector<640x128xbf16>, vector<16x128xf32> -> vector<16x128xf32>
    %c0_64 = arith.constant 0 : index
    %c0_65 = arith.constant 0 : index
    %155 = vector.load %arg21[%c0_64, %c0_65] : memref<1x128xf32, #tpu.memory_space<vmem>>, vector<1x128xf32>
    %156 = vector.broadcast %155 : vector<1x128xf32> to vector<16x128xf32>
    %157 = arith.addf %154, %156 : vector<16x128xf32>
    %cst_66 = arith.constant 0.000000e+00 : f32
    %158 = vector.broadcast %cst_66 : f32 to vector<16x128xf32>
    %159 = arith.maximumf %157, %158 : vector<16x128xf32>
    %160 = arith.truncf %159 : vector<16x128xf32> to vector<16x128xbf16>
    %161 = vector.shape_cast %160 : vector<16x128xbf16> to vector<1x16x128xbf16>
    %cst_67 = arith.constant 0.000000e+00 : bf16
    %162 = vector.broadcast %cst_67 : bf16 to vector<1x1x128xbf16>
    %163 = tpu.concatenate %162, %161, %162 in 1 : vector<1x1x128xbf16>, vector<1x16x128xbf16>, vector<1x1x128xbf16> -> vector<1x18x128xbf16>
    %164 = vector.extract_strided_slice %163 {offsets = [0, 0, 0], sizes = [1, 16, 128], strides = [1, 1, 1]} : vector<1x18x128xbf16> to vector<1x16x128xbf16>
    %165 = vector.extract_strided_slice %163 {offsets = [0, 1, 0], sizes = [1, 16, 128], strides = [1, 1, 1]} : vector<1x18x128xbf16> to vector<1x16x128xbf16>
    %166 = vector.extract_strided_slice %163 {offsets = [0, 2, 0], sizes = [1, 16, 128], strides = [1, 1, 1]} : vector<1x18x128xbf16> to vector<1x16x128xbf16>
    %167 = tpu.concatenate %164, %165, %166 in 2 : vector<1x16x128xbf16>, vector<1x16x128xbf16>, vector<1x16x128xbf16> -> vector<1x16x384xbf16>
    %168 = vector.shape_cast %167 : vector<1x16x384xbf16> to vector<16x384xbf16>
    %c0_68 = arith.constant 0 : index
    %c0_69 = arith.constant 0 : index
    %169 = vector.load %arg22[%c0_68, %c0_69] : memref<384x128xbf16, #tpu.memory_space<vmem>>, vector<384x128xbf16>
    %cst_70 = arith.constant dense<0.000000e+00> : vector<16x128xf32>
    %170 = tpu.matmul %168, %169, %cst_70 {dimension_numbers = #tpu.dot_dimension_numbers<[1], [0], [0], [1], [0, 0, 1, 1], [], []>} : vector<16x384xbf16>, vector<384x128xbf16>, vector<16x128xf32> -> vector<16x128xf32>
    %c0_71 = arith.constant 0 : index
    %c0_72 = arith.constant 0 : index
    %171 = vector.load %arg23[%c0_71, %c0_72] : memref<1x128xf32, #tpu.memory_space<vmem>>, vector<1x128xf32>
    %172 = vector.broadcast %171 : vector<1x128xf32> to vector<16x128xf32>
    %173 = arith.addf %170, %172 : vector<16x128xf32>
    %174 = vector.shape_cast %122 : vector<1x16x128xf32> to vector<16x128xf32>
    %c0_73 = arith.constant 0 : index
    %c0_74 = arith.constant 0 : index
    %175 = vector.load %arg24[%c0_73, %c0_74] : memref<1x128xf32, #tpu.memory_space<vmem>>, vector<1x128xf32>
    %176 = vector.broadcast %175 : vector<1x128xf32> to vector<16x128xf32>
    %177 = arith.mulf %174, %176 : vector<16x128xf32>
    %c0_75 = arith.constant 0 : index
    %c0_76 = arith.constant 0 : index
    %178 = vector.load %arg25[%c0_75, %c0_76] : memref<1x128xf32, #tpu.memory_space<vmem>>, vector<1x128xf32>
    %179 = vector.broadcast %178 : vector<1x128xf32> to vector<16x128xf32>
    %180 = arith.addf %177, %179 : vector<16x128xf32>
    %181 = arith.addf %173, %180 : vector<16x128xf32>
    %cst_77 = arith.constant 0.000000e+00 : f32
    %182 = vector.broadcast %cst_77 : f32 to vector<16x128xf32>
    %183 = arith.maximumf %181, %182 : vector<16x128xf32>
    %184 = vector.shape_cast %183 : vector<16x128xf32> to vector<1x16x128xf32>
    %cst_78 = arith.constant dense<0.000000e+00> : vector<1x128xf32>
    %185 = vector.multi_reduction <add>, %184, %cst_78 [1] : vector<1x16x128xf32> to vector<1x128xf32>
    %cst_79 = arith.constant 1.600000e+01 : f32
    %186 = vector.broadcast %cst_79 : f32 to vector<1x128xf32>
    %187 = arith.divf %185, %186 : vector<1x128xf32>
    %c0_80 = arith.constant 0 : index
    %c0_81 = arith.constant 0 : index
    %c0_82 = arith.constant 0 : index
    %188 = vector.load %arg26[%c0_80, %c0_81, %c0_82] : memref<1x1x128xf32, #tpu.memory_space<vmem>>, vector<1x1x128xf32>
    %189 = vector.shape_cast %188 : vector<1x1x128xf32> to vector<1x128xf32>
    %190 = vector.shape_cast %187 : vector<1x128xf32> to vector<1x1x128xf32>
    tpu.vector_store %arg26[%c0_80, %c0_81, %c0_82], %190 {strides = array<i32>} : memref<1x1x128xf32, #tpu.memory_space<vmem>>, vector<1x1x128xf32>,
    return
  }
  func.func @transform_0(%arg0: i32) -> (i32, i32, i32) {
    %c0_i32 = arith.constant 0 : i32
    %c0_i32_0 = arith.constant 0 : i32
    %c0_i32_1 = arith.constant 0 : i32
    return %arg0, %c0_i32, %c0_i32_0 : i32, i32, i32
  }
  func.func @transform_1(%arg0: i32) -> (i32, i32) {
    %c0_i32 = arith.constant 0 : i32
    %c0_i32_0 = arith.constant 0 : i32
    %c0_i32_1 = arith.constant 0 : i32
    return %c0_i32, %c0_i32_0 : i32, i32
  }
  func.func @transform_2(%arg0: i32) -> (i32, i32) {
    %c0_i32 = arith.constant 0 : i32
    %c0_i32_0 = arith.constant 0 : i32
    %c0_i32_1 = arith.constant 0 : i32
    return %c0_i32, %c0_i32_0 : i32, i32
  }
  func.func @transform_3(%arg0: i32) -> (i32, i32) {
    %c0_i32 = arith.constant 0 : i32
    %c0_i32_0 = arith.constant 0 : i32
    %c0_i32_1 = arith.constant 0 : i32
    return %c0_i32, %c0_i32_0 : i32, i32
  }
  func.func @transform_4(%arg0: i32) -> (i32, i32) {
    %c0_i32 = arith.constant 0 : i32
    %c0_i32_0 = arith.constant 0 : i32
    %c0_i32_1 = arith.constant 0 : i32
    return %c0_i32, %c0_i32_0 : i32, i32
  }
  func.func @transform_5(%arg0: i32) -> (i32, i32) {
    %c0_i32 = arith.constant 0 : i32
    %c0_i32_0 = arith.constant 0 : i32
    %c0_i32_1 = arith.constant 0 : i32
    return %c0_i32, %c0_i32_0 : i32, i32
  }
  func.func @transform_6(%arg0: i32) -> (i32, i32) {
    %c0_i32 = arith.constant 0 : i32
    %c0_i32_0 = arith.constant 0 : i32
    %c0_i32_1 = arith.constant 0 : i32
    return %c0_i32, %c0_i32_0 : i32, i32
  }
  func.func @transform_7(%arg0: i32) -> (i32, i32) {
    %c0_i32 = arith.constant 0 : i32
    %c0_i32_0 = arith.constant 0 : i32
    %c0_i32_1 = arith.constant 0 : i32
    return %c0_i32, %c0_i32_0 : i32, i32
  }
  func.func @transform_8(%arg0: i32) -> (i32, i32) {
    %c0_i32 = arith.constant 0 : i32
    %c0_i32_0 = arith.constant 0 : i32
    %c0_i32_1 = arith.constant 0 : i32
    return %c0_i32, %c0_i32_0 : i32, i32
  }
  func.func @transform_9(%arg0: i32) -> (i32, i32) {
    %c0_i32 = arith.constant 0 : i32
    %c0_i32_0 = arith.constant 0 : i32
    %c0_i32_1 = arith.constant 0 : i32
    return %c0_i32, %c0_i32_0 : i32, i32
  }
  func.func @transform_10(%arg0: i32) -> (i32, i32) {
    %c0_i32 = arith.constant 0 : i32
    %c0_i32_0 = arith.constant 0 : i32
    %c0_i32_1 = arith.constant 0 : i32
    return %c0_i32, %c0_i32_0 : i32, i32
  }
  func.func @transform_11(%arg0: i32) -> (i32, i32) {
    %c0_i32 = arith.constant 0 : i32
    %c0_i32_0 = arith.constant 0 : i32
    %c0_i32_1 = arith.constant 0 : i32
    return %c0_i32, %c0_i32_0 : i32, i32
  }
  func.func @transform_12(%arg0: i32) -> (i32, i32) {
    %c0_i32 = arith.constant 0 : i32
    %c0_i32_0 = arith.constant 0 : i32
    %c0_i32_1 = arith.constant 0 : i32
    return %c0_i32, %c0_i32_0 : i32, i32
  }
  func.func @transform_13(%arg0: i32) -> (i32, i32) {
    %c0_i32 = arith.constant 0 : i32
    %c0_i32_0 = arith.constant 0 : i32
    %c0_i32_1 = arith.constant 0 : i32
    return %c0_i32, %c0_i32_0 : i32, i32
  }
  func.func @transform_14(%arg0: i32) -> (i32, i32) {
    %c0_i32 = arith.constant 0 : i32
    %c0_i32_0 = arith.constant 0 : i32
    %c0_i32_1 = arith.constant 0 : i32
    return %c0_i32, %c0_i32_0 : i32, i32
  }
  func.func @transform_15(%arg0: i32) -> (i32, i32) {
    %c0_i32 = arith.constant 0 : i32
    %c0_i32_0 = arith.constant 0 : i32
    %c0_i32_1 = arith.constant 0 : i32
    return %c0_i32, %c0_i32_0 : i32, i32
  }
  func.func @transform_16(%arg0: i32) -> (i32, i32) {
    %c0_i32 = arith.constant 0 : i32
    %c0_i32_0 = arith.constant 0 : i32
    %c0_i32_1 = arith.constant 0 : i32
    return %c0_i32, %c0_i32_0 : i32, i32
  }
  func.func @transform_17(%arg0: i32) -> (i32, i32) {
    %c0_i32 = arith.constant 0 : i32
    %c0_i32_0 = arith.constant 0 : i32
    %c0_i32_1 = arith.constant 0 : i32
    return %c0_i32, %c0_i32_0 : i32, i32
  }
  func.func @transform_18(%arg0: i32) -> (i32, i32) {
    %c0_i32 = arith.constant 0 : i32
    %c0_i32_0 = arith.constant 0 : i32
    %c0_i32_1 = arith.constant 0 : i32
    return %c0_i32, %c0_i32_0 : i32, i32
  }
  func.func @transform_19(%arg0: i32) -> (i32, i32) {
    %c0_i32 = arith.constant 0 : i32
    %c0_i32_0 = arith.constant 0 : i32
    %c0_i32_1 = arith.constant 0 : i32
    return %c0_i32, %c0_i32_0 : i32, i32
  }
  func.func @transform_20(%arg0: i32) -> (i32, i32) {
    %c0_i32 = arith.constant 0 : i32
    %c0_i32_0 = arith.constant 0 : i32
    %c0_i32_1 = arith.constant 0 : i32
    return %c0_i32, %c0_i32_0 : i32, i32
  }
  func.func @transform_21(%arg0: i32) -> (i32, i32) {
    %c0_i32 = arith.constant 0 : i32
    %c0_i32_0 = arith.constant 0 : i32
    %c0_i32_1 = arith.constant 0 : i32
    return %c0_i32, %c0_i32_0 : i32, i32
  }
  func.func @transform_22(%arg0: i32) -> (i32, i32) {
    %c0_i32 = arith.constant 0 : i32
    %c0_i32_0 = arith.constant 0 : i32
    %c0_i32_1 = arith.constant 0 : i32
    return %c0_i32, %c0_i32_0 : i32, i32
  }
  func.func @transform_23(%arg0: i32) -> (i32, i32) {
    %c0_i32 = arith.constant 0 : i32
    %c0_i32_0 = arith.constant 0 : i32
    %c0_i32_1 = arith.constant 0 : i32
    return %c0_i32, %c0_i32_0 : i32, i32
  }
  func.func @transform_24(%arg0: i32) -> (i32, i32) {
    %c0_i32 = arith.constant 0 : i32
    %c0_i32_0 = arith.constant 0 : i32
    %c0_i32_1 = arith.constant 0 : i32
    return %c0_i32, %c0_i32_0 : i32, i32
  }
  func.func @transform_25(%arg0: i32) -> (i32, i32, i32) {
    %c0_i32 = arith.constant 0 : i32
    %c0_i32_0 = arith.constant 0 : i32
    %c0_i32_1 = arith.constant 0 : i32
    return %arg0, %c0_i32, %c0_i32_0 : i32, i32, i32
  }
}

</mosaic_0001>

<llo_original>
// kernel: resnet_body_fwd.1
$region0: #{resnet_body_fwd.1}
  #allocation0 [shape = 'u32[]', space=smem, size = 0x4, offset = 0x4, fixed_abs, tag = 'smem constant byte address 0x4 - core index']
  #allocation1 [shape = 'u32[144,128]{1,0:T(1,128)}', space=vmem, size = 0x12000, scoped, tag = 'internal scratch']
  %s0 = inlined_call_operand.vmem [shape: f32[2,16,4], index: 0, kind: input, shape index: {}]
  %s1 = inlined_call_operand.vmem [shape: bf16[28,64], index: 1, kind: input, shape index: {}]
  %s2 = inlined_call_operand.vmem [shape: f32[1,64], index: 2, kind: input, shape index: {}]
  %s3 = inlined_call_operand.vmem [shape: bf16[320,64], index: 3, kind: input, shape index: {}]
  %s4 = inlined_call_operand.vmem [shape: f32[1,64], index: 4, kind: input, shape index: {}]
  %s5 = inlined_call_operand.vmem [shape: bf16[192,64], index: 5, kind: input, shape index: {}]
  %s6 = inlined_call_operand.vmem [shape: f32[1,64], index: 6, kind: input, shape index: {}]
  %s7 = inlined_call_operand.vmem [shape: bf16[4,64], index: 7, kind: input, shape index: {}]
  %s8 = inlined_call_operand.vmem [shape: f32[1,64], index: 8, kind: input, shape index: {}]
  %s9 = inlined_call_operand.vmem [shape: bf16[448,128], index: 9, kind: input, shape index: {}]
  %s10 = inlined_call_operand.vmem [shape: f32[1,128], index: 10, kind: input, shape index: {}]
  %s11 = inlined_call_operand.vmem [shape: bf16[640,128], index: 11, kind: input, shape index: {}]
  %s12 = inlined_call_operand.vmem [shape: f32[1,128], index: 12, kind: input, shape index: {}]
  %s13 = inlined_call_operand.vmem [shape: bf16[384,128], index: 13, kind: input, shape index: {}]
  %s14 = inlined_call_operand.vmem [shape: f32[1,128], index: 14, kind: input, shape index: {}]
  %s15 = inlined_call_operand.vmem [shape: bf16[64,128], index: 15, kind: input, shape index: {}]
  %s16 = inlined_call_operand.vmem [shape: f32[1,128], index: 16, kind: input, shape index: {}]
  %s17 = inlined_call_operand.vmem [shape: bf16[896,128], index: 17, kind: input, shape index: {}]
  %s18 = inlined_call_operand.vmem [shape: f32[1,128], index: 18, kind: input, shape index: {}]
  %s19 = inlined_call_operand.vmem [shape: bf16[640,128], index: 19, kind: input, shape index: {}]
  %s20 = inlined_call_operand.vmem [shape: f32[1,128], index: 20, kind: input, shape index: {}]
  %s21 = inlined_call_operand.vmem [shape: bf16[384,128], index: 21, kind: input, shape index: {}]
  %s22 = inlined_call_operand.vmem [shape: f32[1,128], index: 22, kind: input, shape index: {}]
  %s23 = inlined_call_operand.vmem [shape: f32[1,128], index: 23, kind: input, shape index: {}]
  %s24 = inlined_call_operand.vmem [shape: f32[1,128], index: 24, kind: input, shape index: {}]
  %s25 = inlined_call_operand.hbm [shape: f32[2,1,128], index: 25, kind: output, shape index: {}]
  %s26 = sld [smem:[#allocation0]]
  $region133: #{resnet_body_fwd.1} parent=0
    _
  %s28 = ssub.s32 1, %s26
  %s29 = scalar_select 0, %s28, %s26
  $region1: #{resnet_body_fwd.1} parent=0
    #allocation2 [shape = 'u8[1024]{0}', space=vmem, size = 0x400, scoped, tag = 'output window, operand 0']
    #allocation3 [shape = 's32[2]{0}', space=sflag, size = 0x8, scoped, tag = 'scoped memory for resnet_body_fwd.1']
    %30 = vsyncpa [#allocation3], 0
    %s31 = scalar_lea.sflag [#allocation3], 1
    %32 = vsyncpa %s31, 0
    loop: start=0, step=1, limit=4
    $region2: #{resnet_body_fwd.1} parent=1 // loop_pre_header
      _
    $region3: #{resnet_body_fwd.1} parent=1 // loop_header
      %s34 = sphi 0, %s38
      %p35 = scmp.ge.s32.totalorder %s34, 4
      %s44 = sphi 0, %s46
      %s47 = sphi 0, %s44
      %s48 = sphi 0, %s47
      %s64 = sphi 0, %s48
      %s68 = sphi 0, %s68
      %s70 = sphi 0, %s68
      %s71 = sphi 0, %s70
      %s85 = sphi 0, %s71
      %s89 = sphi 0, %s89
      %s91 = sphi 0, %s89
      %s92 = sphi 0, %s91
      %s106 = sphi 0, %s92
      %s110 = sphi 0, %s110
      %s112 = sphi 0, %s110
      %s113 = sphi 0, %s112
      %s127 = sphi 0, %s113
      %s131 = sphi 0, %s131
      %s133 = sphi 0, %s131
      %s134 = sphi 0, %s133
      %s148 = sphi 0, %s134
      %s152 = sphi 0, %s152
      %s154 = sphi 0, %s152
      %s155 = sphi 0, %s154
      %s169 = sphi 0, %s155
      %s173 = sphi 0, %s173
      %s175 = sphi 0, %s173
      %s176 = sphi 0, %s175
      %s190 = sphi 0, %s176
      %s194 = sphi 0, %s194
      %s196 = sphi 0, %s194
      %s197 = sphi 0, %s196
      %s211 = sphi 0, %s197
      %s215 = sphi 0, %s215
      %s217 = sphi 0, %s215
      %s218 = sphi 0, %s217
      %s232 = sphi 0, %s218
      %s236 = sphi 0, %s236
      %s238 = sphi 0, %s236
      %s239 = sphi 0, %s238
      %s253 = sphi 0, %s239
      %s257 = sphi 0, %s257
      %s259 = sphi 0, %s257
      %s260 = sphi 0, %s259
      %s274 = sphi 0, %s260
      %s278 = sphi 0, %s278
      %s280 = sphi 0, %s278
      %s281 = sphi 0, %s280
      %s295 = sphi 0, %s281
      %s299 = sphi 0, %s299
      %s301 = sphi 0, %s299
      %s302 = sphi 0, %s301
      %s316 = sphi 0, %s302
      %s320 = sphi 0, %s320
      %s322 = sphi 0, %s320
      %s323 = sphi 0, %s322
      %s337 = sphi 0, %s323
      %s341 = sphi 0, %s341
      %s343 = sphi 0, %s341
      %s344 = sphi 0, %s343
      %s358 = sphi 0, %s344
      %s362 = sphi 0, %s362
      %s364 = sphi 0, %s362
      %s365 = sphi 0, %s364
      %s379 = sphi 0, %s365
      %s383 = sphi 0, %s383
      %s385 = sphi 0, %s383
      %s386 = sphi 0, %s385
      %s400 = sphi 0, %s386
      %s404 = sphi 0, %s404
      %s406 = sphi 0, %s404
      %s407 = sphi 0, %s406
      %s421 = sphi 0, %s407
      %s425 = sphi 0, %s425
      %s427 = sphi 0, %s425
      %s428 = sphi 0, %s427
      %s442 = sphi 0, %s428
      %s446 = sphi 0, %s446
      %s448 = sphi 0, %s446
      %s449 = sphi 0, %s448
      %s463 = sphi 0, %s449
      %s467 = sphi 0, %s467
      %s469 = sphi 0, %s467
      %s470 = sphi 0, %s469
      %s484 = sphi 0, %s470
      %s488 = sphi 0, %s488
      %s490 = sphi 0, %s488
      %s491 = sphi 0, %s490
      %s505 = sphi 0, %s491
      %s509 = sphi 0, %s509
      %s511 = sphi 0, %s509
      %s512 = sphi 0, %s511
      %s526 = sphi 0, %s512
      %s530 = sphi 0, %s530
      %s532 = sphi 0, %s530
      %s533 = sphi 0, %s532
      %s547 = sphi 0, %s533
      %s551 = sphi 0, %s551
      %s553 = sphi 0, %s551
      %s554 = sphi 0, %s553
      %s568 = sphi 0, %s554
      %s574 = sphi 0, %s576
      %s577 = sphi 0, %s574
      %s578 = sphi 0, %s577
      %s594 = sphi 0, %s578
    $region4: #{resnet_body_fwd.1} parent=1 // loop_header_branch
      %37 = sbr.rel (%p35) target = $region8
    $region5: #{resnet_body_fwd.1} parent=1 // loop_body
      %s39 = ssub.s32 %s34, 1
      %s40 = ssub.s32 %s34, 2
      %s41 = sadd.s32 %s34, 1
      %s42 = ssub.s32 %s34, %s41
      %p43 = scmp.eq.s32.totalorder %s42, 0
      %s45 = sadd.s32 %s44, 1
      %s46 = scalar_select %p43, %s44, %s45
      %p49 = pneg %p43
      %p50 = scmp.eq.s32.totalorder %s34, 1
      %p51 = por %p49, %p50
      %p52 = scmp.ne.s32.totalorder %s44, %s47
      %p53 = scmp.eq.s32.totalorder %s34, 0
      %p54 = por %p52, %p53
      %p55 = scmp.ne.s32.totalorder %s44, %s47
      %p56 = scmp.eq.s32.totalorder %s39, 1
      %p57 = por %p55, %p56
      %p58 = scmp.ne.s32.totalorder %s47, %s48
      %p59 = scmp.eq.s32.totalorder %s39, 0
      %p60 = por %p58, %p59
      %p61 = scmp.ne.s32.totalorder %s47, %s48
      %p62 = scmp.eq.s32.totalorder %s40, 1
      %p63 = por %p61, %p62
      %p65 = scmp.ne.s32.totalorder %s48, %s64
      %p66 = scmp.eq.s32.totalorder %s40, 0
      %p67 = por %p65, %p66
      %s69 = sadd.s32 %s68, 1
      %p72 = scmp.eq.s32.totalorder %s34, 1
      %p73 = scmp.ne.s32.totalorder %s68, %s70
      %p74 = scmp.eq.s32.totalorder %s34, 0
      %p75 = por %p73, %p74
      %p76 = scmp.ne.s32.totalorder %s68, %s70
      %p77 = scmp.eq.s32.totalorder %s39, 1
      %p78 = por %p76, %p77
      %p79 = scmp.ne.s32.totalorder %s70, %s71
      %p80 = scmp.eq.s32.totalorder %s39, 0
      %p81 = por %p79, %p80
      %p82 = scmp.ne.s32.totalorder %s70, %s71
      %p83 = scmp.eq.s32.totalorder %s40, 1
      %p84 = por %p82, %p83
      %p86 = scmp.ne.s32.totalorder %s71, %s85
      %p87 = scmp.eq.s32.totalorder %s40, 0
      %p88 = por %p86, %p87
      %s90 = sadd.s32 %s89, 1
      %p93 = scmp.eq.s32.totalorder %s34, 1
      %p94 = scmp.ne.s32.totalorder %s89, %s91
      %p95 = scmp.eq.s32.totalorder %s34, 0
      %p96 = por %p94, %p95
      %p97 = scmp.ne.s32.totalorder %s89, %s91
      %p98 = scmp.eq.s32.totalorder %s39, 1
      %p99 = por %p97, %p98
      %p100 = scmp.ne.s32.totalorder %s91, %s92
      %p101 = scmp.eq.s32.totalorder %s39, 0
      %p102 = por %p100, %p101
      %p103 = scmp.ne.s32.totalorder %s91, %s92
      %p104 = scmp.eq.s32.totalorder %s40, 1
      %p105 = por %p103, %p104
      %p107 = scmp.ne.s32.totalorder %s92, %s106
      %p108 = scmp.eq.s32.totalorder %s40, 0
      %p109 = por %p107, %p108
      %s111 = sadd.s32 %s110, 1
      %p114 = scmp.eq.s32.totalorder %s34, 1
      %p115 = scmp.ne.s32.totalorder %s110, %s112
      %p116 = scmp.eq.s32.totalorder %s34, 0
      %p117 = por %p115, %p116
      %p118 = scmp.ne.s32.totalorder %s110, %s112
      %p119 = scmp.eq.s32.totalorder %s39, 1
      %p120 = por %p118, %p119
      %p121 = scmp.ne.s32.totalorder %s112, %s113
      %p122 = scmp.eq.s32.totalorder %s39, 0
      %p123 = por %p121, %p122
      %p124 = scmp.ne.s32.totalorder %s112, %s113
      %p125 = scmp.eq.s32.totalorder %s40, 1
      %p126 = por %p124, %p125
      %p128 = scmp.ne.s32.totalorder %s113, %s127
      %p129 = scmp.eq.s32.totalorder %s40, 0
      %p130 = por %p128, %p129
      %s132 = sadd.s32 %s131, 1
      %p135 = scmp.eq.s32.totalorder %s34, 1
      %p136 = scmp.ne.s32.totalorder %s131, %s133
      %p137 = scmp.eq.s32.totalorder %s34, 0
      %p138 = por %p136, %p137
      %p139 = scmp.ne.s32.totalorder %s131, %s133
      %p140 = scmp.eq.s32.totalorder %s39, 1
      %p141 = por %p139, %p140
      %p142 = scmp.ne.s32.totalorder %s133, %s134
      %p143 = scmp.eq.s32.totalorder %s39, 0
      %p144 = por %p142, %p143
      %p145 = scmp.ne.s32.totalorder %s133, %s134
      %p146 = scmp.eq.s32.totalorder %s40, 1
      %p147 = por %p145, %p146
      %p149 = scmp.ne.s32.totalorder %s134, %s148
      %p150 = scmp.eq.s32.totalorder %s40, 0
      %p151 = por %p149, %p150
      %s153 = sadd.s32 %s152, 1
      %p156 = scmp.eq.s32.totalorder %s34, 1
      %p157 = scmp.ne.s32.totalorder %s152, %s154
      %p158 = scmp.eq.s32.totalorder %s34, 0
      %p159 = por %p157, %p158
      %p160 = scmp.ne.s32.totalorder %s152, %s154
      %p161 = scmp.eq.s32.totalorder %s39, 1
      %p162 = por %p160, %p161
      %p163 = scmp.ne.s32.totalorder %s154, %s155
      %p164 = scmp.eq.s32.totalorder %s39, 0
      %p165 = por %p163, %p164
      %p166 = scmp.ne.s32.totalorder %s154, %s155
      %p167 = scmp.eq.s32.totalorder %s40, 1
      %p168 = por %p166, %p167
      %p170 = scmp.ne.s32.totalorder %s155, %s169
      %p171 = scmp.eq.s32.totalorder %s40, 0
      %p172 = por %p170, %p171
      %s174 = sadd.s32 %s173, 1
      %p177 = scmp.eq.s32.totalorder %s34, 1
      %p178 = scmp.ne.s32.totalorder %s173, %s175
      %p179 = scmp.eq.s32.totalorder %s34, 0
      %p180 = por %p178, %p179
      %p181 = scmp.ne.s32.totalorder %s173, %s175
      %p182 = scmp.eq.s32.totalorder %s39, 1
      %p183 = por %p181, %p182
      %p184 = scmp.ne.s32.totalorder %s175, %s176
      %p185 = scmp.eq.s32.totalorder %s39, 0
      %p186 = por %p184, %p185
      %p187 = scmp.ne.s32.totalorder %s175, %s176
      %p188 = scmp.eq.s32.totalorder %s40, 1
      %p189 = por %p187, %p188
      %p191 = scmp.ne.s32.totalorder %s176, %s190
      %p192 = scmp.eq.s32.totalorder %s40, 0
      %p193 = por %p191, %p192
      %s195 = sadd.s32 %s194, 1
      %p198 = scmp.eq.s32.totalorder %s34, 1
      %p199 = scmp.ne.s32.totalorder %s194, %s196
      %p200 = scmp.eq.s32.totalorder %s34, 0
      %p201 = por %p199, %p200
      %p202 = scmp.ne.s32.totalorder %s194, %s196
      %p203 = scmp.eq.s32.totalorder %s39, 1
      %p204 = por %p202, %p203
      %p205 = scmp.ne.s32.totalorder %s196, %s197
      %p206 = scmp.eq.s32.totalorder %s39, 0
      %p207 = por %p205, %p206
      %p208 = scmp.ne.s32.totalorder %s196, %s197
      %p209 = scmp.eq.s32.totalorder %s40, 1
      %p210 = por %p208, %p209
      %p212 = scmp.ne.s32.totalorder %s197, %s211
      %p213 = scmp.eq.s32.totalorder %s40, 0
      %p214 = por %p212, %p213
      %s216 = sadd.s32 %s215, 1
      %p219 = scmp.eq.s32.totalorder %s34, 1
      %p220 = scmp.ne.s32.totalorder %s215, %s217
      %p221 = scmp.eq.s32.totalorder %s34, 0
      %p222 = por %p220, %p221
      %p223 = scmp.ne.s32.totalorder %s215, %s217
      %p224 = scmp.eq.s32.totalorder %s39, 1
      %p225 = por %p223, %p224
      %p226 = scmp.ne.s32.totalorder %s217, %s218
      %p227 = scmp.eq.s32.totalorder %s39, 0
      %p228 = por %p226, %p227
      %p229 = scmp.ne.s32.totalorder %s217, %s218
      %p230 = scmp.eq.s32.totalorder %s40, 1
      %p231 = por %p229, %p230
      %p233 = scmp.ne.s32.totalorder %s218, %s232
      %p234 = scmp.eq.s32.totalorder %s40, 0
      %p235 = por %p233, %p234
      %s237 = sadd.s32 %s236, 1
      %p240 = scmp.eq.s32.totalorder %s34, 1
      %p241 = scmp.ne.s32.totalorder %s236, %s238
      %p242 = scmp.eq.s32.totalorder %s34, 0
      %p243 = por %p241, %p242
      %p244 = scmp.ne.s32.totalorder %s236, %s238
      %p245 = scmp.eq.s32.totalorder %s39, 1
      %p246 = por %p244, %p245
      %p247 = scmp.ne.s32.totalorder %s238, %s239
      %p248 = scmp.eq.s32.totalorder %s39, 0
      %p249 = por %p247, %p248
      %p250 = scmp.ne.s32.totalorder %s238, %s239
      %p251 = scmp.eq.s32.totalorder %s40, 1
      %p252 = por %p250, %p251
      %p254 = scmp.ne.s32.totalorder %s239, %s253
      %p255 = scmp.eq.s32.totalorder %s40, 0
      %p256 = por %p254, %p255
      %s258 = sadd.s32 %s257, 1
      %p261 = scmp.eq.s32.totalorder %s34, 1
      %p262 = scmp.ne.s32.totalorder %s257, %s259
      %p263 = scmp.eq.s32.totalorder %s34, 0
      %p264 = por %p262, %p263
      %p265 = scmp.ne.s32.totalorder %s257, %s259
      %p266 = scmp.eq.s32.totalorder %s39, 1
      %p267 = por %p265, %p266
      %p268 = scmp.ne.s32.totalorder %s259, %s260
      %p269 = scmp.eq.s32.totalorder %s39, 0
      %p270 = por %p268, %p269
      %p271 = scmp.ne.s32.totalorder %s259, %s260
      %p272 = scmp.eq.s32.totalorder %s40, 1
      %p273 = por %p271, %p272
      %p275 = scmp.ne.s32.totalorder %s260, %s274
      %p276 = scmp.eq.s32.totalorder %s40, 0
      %p277 = por %p275, %p276
      %s279 = sadd.s32 %s278, 1
      %p282 = scmp.eq.s32.totalorder %s34, 1
      %p283 = scmp.ne.s32.totalorder %s278, %s280
      %p284 = scmp.eq.s32.totalorder %s34, 0
      %p285 = por %p283, %p284
      %p286 = scmp.ne.s32.totalorder %s278, %s280
      %p287 = scmp.eq.s32.totalorder %s39, 1
      %p288 = por %p286, %p287
      %p289 = scmp.ne.s32.totalorder %s280, %s281
      %p290 = scmp.eq.s32.totalorder %s39, 0
      %p291 = por %p289, %p290
      %p292 = scmp.ne.s32.totalorder %s280, %s281
      %p293 = scmp.eq.s32.totalorder %s40, 1
      %p294 = por %p292, %p293
      %p296 = scmp.ne.s32.totalorder %s281, %s295
      %p297 = scmp.eq.s32.totalorder %s40, 0
      %p298 = por %p296, %p297
      %s300 = sadd.s32 %s299, 1
      %p303 = scmp.eq.s32.totalorder %s34, 1
      %p304 = scmp.ne.s32.totalorder %s299, %s301
      %p305 = scmp.eq.s32.totalorder %s34, 0
      %p306 = por %p304, %p305
      %p307 = scmp.ne.s32.totalorder %s299, %s301
      %p308 = scmp.eq.s32.totalorder %s39, 1
      %p309 = por %p307, %p308
      %p310 = scmp.ne.s32.totalorder %s301, %s302
      %p311 = scmp.eq.s32.totalorder %s39, 0
      %p312 = por %p310, %p311
      %p313 = scmp.ne.s32.totalorder %s301, %s302
      %p314 = scmp.eq.s32.totalorder %s40, 1
      %p315 = por %p313, %p314
      %p317 = scmp.ne.s32.totalorder %s302, %s316
      %p318 = scmp.eq.s32.totalorder %s40, 0
      %p319 = por %p317, %p318
      %s321 = sadd.s32 %s320, 1
      %p324 = scmp.eq.s32.totalorder %s34, 1
      %p325 = scmp.ne.s32.totalorder %s320, %s322
      %p326 = scmp.eq.s32.totalorder %s34, 0
      %p327 = por %p325, %p326
      %p328 = scmp.ne.s32.totalorder %s320, %s322
      %p329 = scmp.eq.s32.totalorder %s39, 1
      %p330 = por %p328, %p329
      %p331 = scmp.ne.s32.totalorder %s322, %s323
      %p332 = scmp.eq.s32.totalorder %s39, 0
      %p333 = por %p331, %p332
      %p334 = scmp.ne.s32.totalorder %s322, %s323
      %p335 = scmp.eq.s32.totalorder %s40, 1
      %p336 = por %p334, %p335
      %p338 = scmp.ne.s32.totalorder %s323, %s337
      %p339 = scmp.eq.s32.totalorder %s40, 0
      %p340 = por %p338, %p339
      %s342 = sadd.s32 %s341, 1
      %p345 = scmp.eq.s32.totalorder %s34, 1
      %p346 = scmp.ne.s32.totalorder %s341, %s343
      %p347 = scmp.eq.s32.totalorder %s34, 0
      %p348 = por %p346, %p347
      %p349 = scmp.ne.s32.totalorder %s341, %s343
      %p350 = scmp.eq.s32.totalorder %s39, 1
      %p351 = por %p349, %p350
      %p352 = scmp.ne.s32.totalorder %s343, %s344
      %p353 = scmp.eq.s32.totalorder %s39, 0
      %p354 = por %p352, %p353
      %p355 = scmp.ne.s32.totalorder %s343, %s344
      %p356 = scmp.eq.s32.totalorder %s40, 1
      %p357 = por %p355, %p356
      %p359 = scmp.ne.s32.totalorder %s344, %s358
      %p360 = scmp.eq.s32.totalorder %s40, 0
      %p361 = por %p359, %p360
      %s363 = sadd.s32 %s362, 1
      %p366 = scmp.eq.s32.totalorder %s34, 1
      %p367 = scmp.ne.s32.totalorder %s362, %s364
      %p368 = scmp.eq.s32.totalorder %s34, 0
      %p369 = por %p367, %p368
      %p370 = scmp.ne.s32.totalorder %s362, %s364
      %p371 = scmp.eq.s32.totalorder %s39, 1
      %p372 = por %p370, %p371
      %p373 = scmp.ne.s32.totalorder %s364, %s365
      %p374 = scmp.eq.s32.totalorder %s39, 0
      %p375 = por %p373, %p374
      %p376 = scmp.ne.s32.totalorder %s364, %s365
      %p377 = scmp.eq.s32.totalorder %s40, 1
      %p378 = por %p376, %p377
      %p380 = scmp.ne.s32.totalorder %s365, %s379
      %p381 = scmp.eq.s32.totalorder %s40, 0
      %p382 = por %p380, %p381
      %s384 = sadd.s32 %s383, 1
      %p387 = scmp.eq.s32.totalorder %s34, 1
      %p388 = scmp.ne.s32.totalorder %s383, %s385
      %p389 = scmp.eq.s32.totalorder %s34, 0
      %p390 = por %p388, %p389
      %p391 = scmp.ne.s32.totalorder %s383, %s385
      %p392 = scmp.eq.s32.totalorder %s39, 1
      %p393 = por %p391, %p392
      %p394 = scmp.ne.s32.totalorder %s385, %s386
      %p395 = scmp.eq.s32.totalorder %s39, 0
      %p396 = por %p394, %p395
      %p397 = scmp.ne.s32.totalorder %s385, %s386
      %p398 = scmp.eq.s32.totalorder %s40, 1
      %p399 = por %p397, %p398
      %p401 = scmp.ne.s32.totalorder %s386, %s400
      %p402 = scmp.eq.s32.totalorder %s40, 0
      %p403 = por %p401, %p402
      %s405 = sadd.s32 %s404, 1
      %p408 = scmp.eq.s32.totalorder %s34, 1
      %p409 = scmp.ne.s32.totalorder %s404, %s406
      %p410 = scmp.eq.s32.totalorder %s34, 0
      %p411 = por %p409, %p410
      %p412 = scmp.ne.s32.totalorder %s404, %s406
      %p413 = scmp.eq.s32.totalorder %s39, 1
      %p414 = por %p412, %p413
      %p415 = scmp.ne.s32.totalorder %s406, %s407
      %p416 = scmp.eq.s32.totalorder %s39, 0
      %p417 = por %p415, %p416
      %p418 = scmp.ne.s32.totalorder %s406, %s407
      %p419 = scmp.eq.s32.totalorder %s40, 1
      %p420 = por %p418, %p419
      %p422 = scmp.ne.s32.totalorder %s407, %s421
      %p423 = scmp.eq.s32.totalorder %s40, 0
      %p424 = por %p422, %p423
      %s426 = sadd.s32 %s425, 1
      %p429 = scmp.eq.s32.totalorder %s34, 1
      %p430 = scmp.ne.s32.totalorder %s425, %s427
      %p431 = scmp.eq.s32.totalorder %s34, 0
      %p432 = por %p430, %p431
      %p433 = scmp.ne.s32.totalorder %s425, %s427
      %p434 = scmp.eq.s32.totalorder %s39, 1
      %p435 = por %p433, %p434
      %p436 = scmp.ne.s32.totalorder %s427, %s428
      %p437 = scmp.eq.s32.totalorder %s39, 0
      %p438 = por %p436, %p437
      %p439 = scmp.ne.s32.totalorder %s427, %s428
      %p440 = scmp.eq.s32.totalorder %s40, 1
      %p441 = por %p439, %p440
      %p443 = scmp.ne.s32.totalorder %s428, %s442
      %p444 = scmp.eq.s32.totalorder %s40, 0
      %p445 = por %p443, %p444
      %s447 = sadd.s32 %s446, 1
      %p450 = scmp.eq.s32.totalorder %s34, 1
      %p451 = scmp.ne.s32.totalorder %s446, %s448
      %p452 = scmp.eq.s32.totalorder %s34, 0
      %p453 = por %p451, %p452
      %p454 = scmp.ne.s32.totalorder %s446, %s448
      %p455 = scmp.eq.s32.totalorder %s39, 1
      %p456 = por %p454, %p455
      %p457 = scmp.ne.s32.totalorder %s448, %s449
      %p458 = scmp.eq.s32.totalorder %s39, 0
      %p459 = por %p457, %p458
      %p460 = scmp.ne.s32.totalorder %s448, %s449
      %p461 = scmp.eq.s32.totalorder %s40, 1
      %p462 = por %p460, %p461
      %p464 = scmp.ne.s32.totalorder %s449, %s463
      %p465 = scmp.eq.s32.totalorder %s40, 0
      %p466 = por %p464, %p465
      %s468 = sadd.s32 %s467, 1
      %p471 = scmp.eq.s32.totalorder %s34, 1
      %p472 = scmp.ne.s32.totalorder %s467, %s469
      %p473 = scmp.eq.s32.totalorder %s34, 0
      %p474 = por %p472, %p473
      %p475 = scmp.ne.s32.totalorder %s467, %s469
      %p476 = scmp.eq.s32.totalorder %s39, 1
      %p477 = por %p475, %p476
      %p478 = scmp.ne.s32.totalorder %s469, %s470
      %p479 = scmp.eq.s32.totalorder %s39, 0
      %p480 = por %p478, %p479
      %p481 = scmp.ne.s32.totalorder %s469, %s470
      %p482 = scmp.eq.s32.totalorder %s40, 1
      %p483 = por %p481, %p482
      %p485 = scmp.ne.s32.totalorder %s470, %s484
      %p486 = scmp.eq.s32.totalorder %s40, 0
      %p487 = por %p485, %p486
      %s489 = sadd.s32 %s488, 1
      %p492 = scmp.eq.s32.totalorder %s34, 1
      %p493 = scmp.ne.s32.totalorder %s488, %s490
      %p494 = scmp.eq.s32.totalorder %s34, 0
      %p495 = por %p493, %p494
      %p496 = scmp.ne.s32.totalorder %s488, %s490
      %p497 = scmp.eq.s32.totalorder %s39, 1
      %p498 = por %p496, %p497
      %p499 = scmp.ne.s32.totalorder %s490, %s491
      %p500 = scmp.eq.s32.totalorder %s39, 0
      %p501 = por %p499, %p500
      %p502 = scmp.ne.s32.totalorder %s490, %s491
      %p503 = scmp.eq.s32.totalorder %s40, 1
      %p504 = por %p502, %p503
      %p506 = scmp.ne.s32.totalorder %s491, %s505
      %p507 = scmp.eq.s32.totalorder %s40, 0
      %p508 = por %p506, %p507
      %s510 = sadd.s32 %s509, 1
      %p513 = scmp.eq.s32.totalorder %s34, 1
      %p514 = scmp.ne.s32.totalorder %s509, %s511
      %p515 = scmp.eq.s32.totalorder %s34, 0
      %p516 = por %p514, %p515
      %p517 = scmp.ne.s32.totalorder %s509, %s511
      %p518 = scmp.eq.s32.totalorder %s39, 1
      %p519 = por %p517, %p518
      %p520 = scmp.ne.s32.totalorder %s511, %s512
      %p521 = scmp.eq.s32.totalorder %s39, 0
      %p522 = por %p520, %p521
      %p523 = scmp.ne.s32.totalorder %s511, %s512
      %p524 = scmp.eq.s32.totalorder %s40, 1
      %p525 = por %p523, %p524
      %p527 = scmp.ne.s32.totalorder %s512, %s526
      %p528 = scmp.eq.s32.totalorder %s40, 0
      %p529 = por %p527, %p528
      %s531 = sadd.s32 %s530, 1
      %p534 = scmp.eq.s32.totalorder %s34, 1
      %p535 = scmp.ne.s32.totalorder %s530, %s532
      %p536 = scmp.eq.s32.totalorder %s34, 0
      %p537 = por %p535, %p536
      %p538 = scmp.ne.s32.totalorder %s530, %s532
      %p539 = scmp.eq.s32.totalorder %s39, 1
      %p540 = por %p538, %p539
      %p541 = scmp.ne.s32.totalorder %s532, %s533
      %p542 = scmp.eq.s32.totalorder %s39, 0
      %p543 = por %p541, %p542
      %p544 = scmp.ne.s32.totalorder %s532, %s533
      %p545 = scmp.eq.s32.totalorder %s40, 1
      %p546 = por %p544, %p545
      %p548 = scmp.ne.s32.totalorder %s533, %s547
      %p549 = scmp.eq.s32.totalorder %s40, 0
      %p550 = por %p548, %p549
      %s552 = sadd.s32 %s551, 1
      %p555 = scmp.eq.s32.totalorder %s34, 1
      %p556 = scmp.ne.s32.totalorder %s551, %s553
      %p557 = scmp.eq.s32.totalorder %s34, 0
      %p558 = por %p556, %p557
      %p559 = scmp.ne.s32.totalorder %s551, %s553
      %p560 = scmp.eq.s32.totalorder %s39, 1
      %p561 = por %p559, %p560
      %p562 = scmp.ne.s32.totalorder %s553, %s554
      %p563 = scmp.eq.s32.totalorder %s39, 0
      %p564 = por %p562, %p563
      %p565 = scmp.ne.s32.totalorder %s553, %s554
      %p566 = scmp.eq.s32.totalorder %s40, 1
      %p567 = por %p565, %p566
      %p569 = scmp.ne.s32.totalorder %s554, %s568
      %p570 = scmp.eq.s32.totalorder %s40, 0
      %p571 = por %p569, %p570
      %s572 = ssub.s32 %s34, %s41
      %p573 = scmp.eq.s32.totalorder %s572, 0
      %s575 = sadd.s32 %s574, 1
      %s576 = scalar_select %p573, %s574, %s575
      %p579 = pneg %p573
      %p580 = scmp.eq.s32.totalorder %s34, 1
      %p581 = por %p579, %p580
      %p582 = scmp.ne.s32.totalorder %s574, %s577
      %p583 = scmp.eq.s32.totalorder %s34, 0
      %p584 = por %p582, %p583
      %p585 = scmp.ne.s32.totalorder %s574, %s577
      %p586 = scmp.eq.s32.totalorder %s39, 1
      %p587 = por %p585, %p586
      %p588 = scmp.ne.s32.totalorder %s577, %s578
      %p589 = scmp.eq.s32.totalorder %s39, 0
      %p590 = por %p588, %p589
      %p591 = scmp.ne.s32.totalorder %s577, %s578
      %p592 = scmp.eq.s32.totalorder %s40, 1
      %p593 = por %p591, %p592
      %p595 = scmp.ne.s32.totalorder %s578, %s594
      %p596 = scmp.eq.s32.totalorder %s40, 0
      %p597 = por %p595, %p596
      %p598 = scmp.le.s32.totalorder 1, %s34
      %p599 = scmp.lt.s32.totalorder %s34, 3
      %p600 = pnand %p598, %p599
      %p601 = pneg %p600
      // Predicated region
      $region9: #{resnet_body_fwd.1} parent=5 // pred_check
        _
      $region10: #{resnet_body_fwd.1} parent=5 // pred_check_branch
        %603 = sbr.rel (%p600) target = $region12
      $region11: #{resnet_body_fwd.1} parent=5 // pred_region
        %s604 = ssub.s32 %s34, 1
        // Predicated region
        $region13: #{resnet_body_fwd.1} parent=11 // pred_check
          %p605 = pneg %p81
        $region14: #{resnet_body_fwd.1} parent=11 // pred_check_branch
          %607 = sbr.rel (%p605) target = $region16
        $region15: #{resnet_body_fwd.1} parent=11 // pred_region
          _
        $region16: #{resnet_body_fwd.1} parent=11 // pred_fallthru
          _
        // Predicated region
        $region17: #{resnet_body_fwd.1} parent=11 // pred_check
          %p608 = pneg %p102
        $region18: #{resnet_body_fwd.1} parent=11 // pred_check_branch
          %610 = sbr.rel (%p608) target = $region20
        $region19: #{resnet_body_fwd.1} parent=11 // pred_region
          _
        $region20: #{resnet_body_fwd.1} parent=11 // pred_fallthru
          _
        // Predicated region
        $region21: #{resnet_body_fwd.1} parent=11 // pred_check
          %p611 = pneg %p123
        $region22: #{resnet_body_fwd.1} parent=11 // pred_check_branch
          %613 = sbr.rel (%p611) target = $region24
        $region23: #{resnet_body_fwd.1} parent=11 // pred_region
          _
        $region24: #{resnet_body_fwd.1} parent=11 // pred_fallthru
          _
        // Predicated region
        $region25: #{resnet_body_fwd.1} parent=11 // pred_check
          %p614 = pneg %p144
        $region26: #{resnet_body_fwd.1} parent=11 // pred_check_branch
          %616 = sbr.rel (%p614) target = $region28
        $region27: #{resnet_body_fwd.1} parent=11 // pred_region
          _
        $region28: #{resnet_body_fwd.1} parent=11 // pred_fallthru
          _
        // Predicated region
        $region29: #{resnet_body_fwd.1} parent=11 // pred_check
          %p617 = pneg %p165
        $region30: #{resnet_body_fwd.1} parent=11 // pred_check_branch
          %619 = sbr.rel (%p617) target = $region32
        $region31: #{resnet_body_fwd.1} parent=11 // pred_region
          _
        $region32: #{resnet_body_fwd.1} parent=11 // pred_fallthru
          _
        // Predicated region
        $region33: #{resnet_body_fwd.1} parent=11 // pred_check
          %p620 = pneg %p186
        $region34: #{resnet_body_fwd.1} parent=11 // pred_check_branch
          %622 = sbr.rel (%p620) target = $region36
        $region35: #{resnet_body_fwd.1} parent=11 // pred_region
          _
        $region36: #{resnet_body_fwd.1} parent=11 // pred_fallthru
          _
        // Predicated region
        $region37: #{resnet_body_fwd.1} parent=11 // pred_check
          %p623 = pneg %p207
        $region38: #{resnet_body_fwd.1} parent=11 // pred_check_branch
          %625 = sbr.rel (%p623) target = $region40
        $region39: #{resnet_body_fwd.1} parent=11 // pred_region
          _
        $region40: #{resnet_body_fwd.1} parent=11 // pred_fallthru
          _
        // Predicated region
        $region41: #{resnet_body_fwd.1} parent=11 // pred_check
          %p626 = pneg %p228
        $region42: #{resnet_body_fwd.1} parent=11 // pred_check_branch
          %628 = sbr.rel (%p626) target = $region44
        $region43: #{resnet_body_fwd.1} parent=11 // pred_region
          _
        $region44: #{resnet_body_fwd.1} parent=11 // pred_fallthru
          _
        // Predicated region
        $region45: #{resnet_body_fwd.1} parent=11 // pred_check
          %p629 = pneg %p249
        $region46: #{resnet_body_fwd.1} parent=11 // pred_check_branch
          %631 = sbr.rel (%p629) target = $region48
        $region47: #{resnet_body_fwd.1} parent=11 // pred_region
          _
        $region48: #{resnet_body_fwd.1} parent=11 // pred_fallthru
          _
        // Predicated region
        $region49: #{resnet_body_fwd.1} parent=11 // pred_check
          %p632 = pneg %p270
        $region50: #{resnet_body_fwd.1} parent=11 // pred_check_branch
          %634 = sbr.rel (%p632) target = $region52
        $region51: #{resnet_body_fwd.1} parent=11 // pred_region
          _
        $region52: #{resnet_body_fwd.1} parent=11 // pred_fallthru
          _
        // Predicated region
        $region53: #{resnet_body_fwd.1} parent=11 // pred_check
          %p635 = pneg %p291
        $region54: #{resnet_body_fwd.1} parent=11 // pred_check_branch
          %637 = sbr.rel (%p635) target = $region56
        $region55: #{resnet_body_fwd.1} parent=11 // pred_region
          _
        $region56: #{resnet_body_fwd.1} parent=11 // pred_fallthru
          _
        // Predicated region
        $region57: #{resnet_body_fwd.1} parent=11 // pred_check
          %p638 = pneg %p312
        $region58: #{resnet_body_fwd.1} parent=11 // pred_check_branch
          %640 = sbr.rel (%p638) target = $region60
        $region59: #{resnet_body_fwd.1} parent=11 // pred_region
          _
        $region60: #{resnet_body_fwd.1} parent=11 // pred_fallthru
          _
        // Predicated region
        $region61: #{resnet_body_fwd.1} parent=11 // pred_check
          %p641 = pneg %p333
        $region62: #{resnet_body_fwd.1} parent=11 // pred_check_branch
          %643 = sbr.rel (%p641) target = $region64
        $region63: #{resnet_body_fwd.1} parent=11 // pred_region
          _
        $region64: #{resnet_body_fwd.1} parent=11 // pred_fallthru
          _
        // Predicated region
        $region65: #{resnet_body_fwd.1} parent=11 // pred_check
          %p644 = pneg %p354
        $region66: #{resnet_body_fwd.1} parent=11 // pred_check_branch
          %646 = sbr.rel (%p644) target = $region68
        $region67: #{resnet_body_fwd.1} parent=11 // pred_region
          _
        $region68: #{resnet_body_fwd.1} parent=11 // pred_fallthru
          _
        // Predicated region
        $region69: #{resnet_body_fwd.1} parent=11 // pred_check
          %p647 = pneg %p375
        $region70: #{resnet_body_fwd.1} parent=11 // pred_check_branch
          %649 = sbr.rel (%p647) target = $region72
        $region71: #{resnet_body_fwd.1} parent=11 // pred_region
          _
        $region72: #{resnet_body_fwd.1} parent=11 // pred_fallthru
          _
        // Predicated region
        $region73: #{resnet_body_fwd.1} parent=11 // pred_check
          %p650 = pneg %p396
        $region74: #{resnet_body_fwd.1} parent=11 // pred_check_branch
          %652 = sbr.rel (%p650) target = $region76
        $region75: #{resnet_body_fwd.1} parent=11 // pred_region
          _
        $region76: #{resnet_body_fwd.1} parent=11 // pred_fallthru
          _
        // Predicated region
        $region77: #{resnet_body_fwd.1} parent=11 // pred_check
          %p653 = pneg %p417
        $region78: #{resnet_body_fwd.1} parent=11 // pred_check_branch
          %655 = sbr.rel (%p653) target = $region80
        $region79: #{resnet_body_fwd.1} parent=11 // pred_region
          _
        $region80: #{resnet_body_fwd.1} parent=11 // pred_fallthru
          _
        // Predicated region
        $region81: #{resnet_body_fwd.1} parent=11 // pred_check
          %p656 = pneg %p438
        $region82: #{resnet_body_fwd.1} parent=11 // pred_check_branch
          %658 = sbr.rel (%p656) target = $region84
        $region83: #{resnet_body_fwd.1} parent=11 // pred_region
          _
        $region84: #{resnet_body_fwd.1} parent=11 // pred_fallthru
          _
        // Predicated region
        $region85: #{resnet_body_fwd.1} parent=11 // pred_check
          %p659 = pneg %p459
        $region86: #{resnet_body_fwd.1} parent=11 // pred_check_branch
          %661 = sbr.rel (%p659) target = $region88
        $region87: #{resnet_body_fwd.1} parent=11 // pred_region
          _
        $region88: #{resnet_body_fwd.1} parent=11 // pred_fallthru
          _
        // Predicated region
        $region89: #{resnet_body_fwd.1} parent=11 // pred_check
          %p662 = pneg %p480
        $region90: #{resnet_body_fwd.1} parent=11 // pred_check_branch
          %664 = sbr.rel (%p662) target = $region92
        $region91: #{resnet_body_fwd.1} parent=11 // pred_region
          _
        $region92: #{resnet_body_fwd.1} parent=11 // pred_fallthru
          _
        // Predicated region
        $region93: #{resnet_body_fwd.1} parent=11 // pred_check
          %p665 = pneg %p501
        $region94: #{resnet_body_fwd.1} parent=11 // pred_check_branch
          %667 = sbr.rel (%p665) target = $region96
        $region95: #{resnet_body_fwd.1} parent=11 // pred_region
          _
        $region96: #{resnet_body_fwd.1} parent=11 // pred_fallthru
          _
        // Predicated region
        $region97: #{resnet_body_fwd.1} parent=11 // pred_check
          %p668 = pneg %p522
        $region98: #{resnet_body_fwd.1} parent=11 // pred_check_branch
          %670 = sbr.rel (%p668) target = $region100
        $region99: #{resnet_body_fwd.1} parent=11 // pred_region
          _
        $region100: #{resnet_body_fwd.1} parent=11 // pred_fallthru
          _
        // Predicated region
        $region101: #{resnet_body_fwd.1} parent=11 // pred_check
          %p671 = pneg %p543
        $region102: #{resnet_body_fwd.1} parent=11 // pred_check_branch
          %673 = sbr.rel (%p671) target = $region104
        $region103: #{resnet_body_fwd.1} parent=11 // pred_region
          _
        $region104: #{resnet_body_fwd.1} parent=11 // pred_fallthru
          _
        // Predicated region
        $region105: #{resnet_body_fwd.1} parent=11 // pred_check
          %p674 = pneg %p564
        $region106: #{resnet_body_fwd.1} parent=11 // pred_check_branch
          %676 = sbr.rel (%p674) target = $region108
        $region107: #{resnet_body_fwd.1} parent=11 // pred_region
          _
        $region108: #{resnet_body_fwd.1} parent=11 // pred_fallthru
          _
      $region12: #{resnet_body_fwd.1} parent=5 // pred_fallthru
        _
      %p677 = scmp.lt.s32.totalorder %s34, 2
      // Predicated region
      $region109: #{resnet_body_fwd.1} parent=5 // pred_check
        %p678 = pneg %p677
      $region110: #{resnet_body_fwd.1} parent=5 // pred_check_branch
        %680 = sbr.rel (%p678) target = $region112
      $region111: #{resnet_body_fwd.1} parent=5 // pred_region
        // Predicated region
        $region113: #{resnet_body_fwd.1} parent=111 // pred_check
          %p681 = pneg %p54
        $region114: #{resnet_body_fwd.1} parent=111 // pred_check_branch
          %683 = sbr.rel (%p681) target = $region116
        $region115: #{resnet_body_fwd.1} parent=111 // pred_region
          %p684 = scmp.lt.s32.totalorder %s34, 1
          %s685 = scalar_select %p684, %s34, 1
          %s686 = smul.addr %s685, 2
          %s687 = smul.addr %s686, 8
          %s688 = scalar_lea.vmem %s0, %s687
        $region116: #{resnet_body_fwd.1} parent=111 // pred_fallthru
          _
      $region112: #{resnet_body_fwd.1} parent=5 // pred_fallthru
        _
      %p689 = scmp.le.s32.totalorder 1, %s34
      %p690 = scmp.lt.s32.totalorder %s34, 3
      %p691 = pnand %p689, %p690
      %p692 = pneg %p691
      // Predicated region
      $region117: #{resnet_body_fwd.1} parent=5 // pred_check
        _
      $region118: #{resnet_body_fwd.1} parent=5 // pred_check_branch
        %694 = sbr.rel (%p691) target = $region120
      $region119: #{resnet_body_fwd.1} parent=5 // pred_region
        %s695 = ssub.s32 %s34, 1
        %p696 = scmp.lt.s32.totalorder %s39, 1
        %s697 = scalar_select %p696, %s39, 1
        %s698 = smul.addr %s697, 2
        %s699 = smul.addr %s698, 8
        %s700 = scalar_lea.vmem %s0, %s699
        %p701 = pneg %p60
        %p702 = pneg %p57
        %p703 = pneg %p81
        %p704 = pneg %p78
        %p705 = pneg %p102
        %p706 = pneg %p99
        %p707 = pneg %p123
        %p708 = pneg %p120
        %p709 = pneg %p144
        %p710 = pneg %p141
        %p711 = pneg %p165
        %p712 = pneg %p162
        %p713 = pneg %p186
        %p714 = pneg %p183
        %p715 = pneg %p207
        %p716 = pneg %p204
        %p717 = pneg %p228
        %p718 = pneg %p225
        %p719 = pneg %p249
        %p720 = pneg %p246
        %p721 = pneg %p270
        %p722 = pneg %p267
        %p723 = pneg %p291
        %p724 = pneg %p288
        %p725 = pneg %p312
        %p726 = pneg %p309
        %p727 = pneg %p333
        %p728 = pneg %p330
        %p729 = pneg %p354
        %p730 = pneg %p351
        %p731 = pneg %p375
        %p732 = pneg %p372
        %p733 = pneg %p396
        %p734 = pneg %p393
        %p735 = pneg %p417
        %p736 = pneg %p414
        %p737 = pneg %p438
        %p738 = pneg %p435
        %p739 = pneg %p459
        %p740 = pneg %p456
        %p741 = pneg %p480
        %p742 = pneg %p477
        %p743 = pneg %p501
        %p744 = pneg %p498
        %p745 = pneg %p522
        %p746 = pneg %p519
        %p747 = pneg %p543
        %p748 = pneg %p540
        %p749 = pneg %p564
        %p750 = pneg %p561
        %p751 = pneg %p590
        %p752 = pneg %p587
        %s753 = sand.u32 %s577, 1
        %s754 = scalar_lea.sflag [#allocation3], %s753
        %s755 = sand.u32 %s577, 1
        %s756 = scalar_lea.vmem [#allocation2], %s755
        %p757 = scmp.lt.s32.totalorder %s39, 1
        %s758 = scalar_select %p757, %s39, 1
        %s759 = smul.addr %s758, 2
        %s760 = smul.addr %s759, 8
        %s761 = scalar_lea.vmem %s0, %s760
        %v763 = vld [vmem:[%s761] sm:$0xff]
        %v764 = vld [vmem:[%s761 + $0x8] sm:$0xff]
        %v765 = vpack.c.bf16 %v764, %v763
        %v767 = vshrl.u32 %v765, 16
        %v769 = vrot.slane %v767, 6
        %v770 = vshll.u32 %v765, 16
        %v772 = vrot.slane %v770, 7
        %v773 = vor.u32 %v769, %v772
        %vm775 = vcmask 1041408
        %vm776 = vsmask.f32 1280
        %vm777 = vmand %vm775, %vm776
        %v778 = vsel %vm777, 0, %v773
        %v779 = vsel %vm777, %v773, 0
        %vm780 = vsmask.f32 7424
        %v782 = vshrl.u32 %v778, 16
        %v784 = vshll.u32 %v778, 16
        %v786 = vrot.slane %v784, 1
        %v787 = vor.u32 %v782, %v786
        %v789 = vshll.u32 %v779, 16
        %v791 = vrot.slane %v789, 1
        %v792 = vsel %vm780, %v787, %v791
        %793 = vrot.lane.b32.xlu0 %v792, 4
        %v794 = vpop.permute.xlu0 %793
        %vm797 = vcmask 1046528
        %v798 = vrot.slane %v778, 1
        %v799 = vrot.slane %v779, 1
        %v800 = vsel %vm797, %v798, %v799
        %801 = vrot.lane.b32.xlu0 %v800, 8
        %v802 = vpop.permute.xlu0 %801
        %vm803 = vsmask.f32 6400
        %v804 = vrot.slane %v782, 1
        %v805 = vrot.slane %v784, 2
        %v806 = vor.u32 %v804, %v805
        %v807 = vshrl.u32 %v779, 16
        %v809 = vrot.slane %v807, 1
        %v810 = vrot.slane %v789, 2
        %v811 = vor.u32 %v809, %v810
        %v812 = vsel %vm803, %v806, %v811
        %813 = vrot.lane.b32.xlu0 %v812, 12
        %v814 = vpop.permute.xlu0 %813
        %vm815 = vcmask 1045504
        %v816 = vrot.slane %v778, 2
        %v817 = vrot.slane %v779, 2
        %v818 = vsel %vm815, %v816, %v817
        %819 = vrot.lane.b32.xlu0 %v818, 16
        %v820 = vpop.permute.xlu0 %819
        %vm821 = vsmask.f32 5376
        %v822 = vrot.slane %v782, 2
        %v823 = vrot.slane %v784, 3
        %v824 = vor.u32 %v822, %v823
        %v825 = vrot.slane %v807, 2
        %v826 = vrot.slane %v789, 3
        %v827 = vor.u32 %v825, %v826
        %v828 = vsel %vm821, %v824, %v827
        %829 = vrot.lane.b32.xlu0 %v828, 20
        %v830 = vpop.permute.xlu0 %829
        %vm831 = vcmask 1044480
        %v832 = vrot.slane %v778, 3
        %v833 = vrot.slane %v779, 3
        %v834 = vsel %vm831, %v832, %v833
        %835 = vrot.lane.b32.xlu0 %v834, 24
        %v836 = vpop.permute.xlu0 %835
        %vm837 = vcmask 31744
        %v839 = vsel %vm837, %v778, %v794
        %vm840 = vcmask 64512
        %v842 = vsel %vm840, %v839, %v802
        %vm843 = vcmask 97280
        %v845 = vsel %vm843, %v842, %v814
        %vm846 = vcmask 130048
        %v848 = vsel %vm846, %v845, %v820
        %vm849 = vcmask 162816
        %v851 = vsel %vm849, %v848, %v830
        %vm852 = vcmask 195584
        %v854 = vsel %vm852, %v851, %v836
        %v855 = vld [vmem:[%s1] sm:$0xf]
        %v856 = vld [vmem:[%s1 + $0x4] sm:$0xf]
        %v857 = vld [vmem:[%s1 + $0x8] sm:$0xf]
        %v858 = vld [vmem:[%s1 + $0xc] sm:$0x3]
        %v859 = vld [vmem:[%s2] sm:$0x1]
        %v861 = vlaneseq
        %v862 = vshrl.u32 %v861, 7
        %v863 = vsub.s32 0, %v862
        %v864 = vrot.slane %v859, %v863
        %v870 = vunpack.c.l.b16 %v855
        %v871 = vunpack.c.l.b16 %v856
        %v872 = vunpack.c.l.b16 %v857
        %v873 = vunpack.c.l.b16 %v858
        %v874 = vpack.c.b16 %v871, %v870
        %v875 = vpack.c.b16 %v873, %v872
        %vm877 = vcmask 228352
        %v878 = vsel %vm877, %v854, 0
        %vm880 = vcmask 1045504
        %v882 = vsel %vm880, %v875, 0
        %884 = vmatprep.subr.bf16.mxu0 0
        %885 = vmatpush1.bf16.msra.mxu0 0
        %886 = vmatprep.subr.bf16.mxu0 0
        %887 = vmatpush1.bf16.msra.mxu0 0
        %888 = vmatprep.subr.bf16.mxu0 0
        %889 = vmatpush1.bf16.msra.mxu0 0
        %890 = vmatprep.subr.bf16.mxu0 0
        %891 = vmatpush1.bf16.msra.mxu0 0
        %892 = vmatprep.subr.bf16.mxu0 0
        %893 = vmatpush1.bf16.msra.mxu0 0
        %894 = vmatprep.subr.bf16.mxu0 0
        %895 = vmatpush1.bf16.msra.mxu0 0
        %896 = vmatprep.subr.bf16.mxu0 0
        %897 = vmatpush1.bf16.msra.mxu0 %v882
        %898 = vmatprep.subr.bf16.mxu0 0
        %899 = vmatpush1.bf16.msra.mxu0 %v874
        %900 = vmatprep.subr.bf16.mxu0 0
        %901 = vmatpush2.bf16.msra.mxu0 0
        %902 = vmatprep.subr.bf16.mxu0 0
        %903 = vmatpush2.bf16.msra.mxu0 0
        %904 = vmatprep.subr.bf16.mxu0 0
        %905 = vmatpush2.bf16.msra.mxu0 0
        %906 = vmatprep.subr.bf16.mxu0 0
        %907 = vmatpush2.bf16.msra.mxu0 0
        %908 = vmatprep.subr.bf16.mxu0 0
        %909 = vmatpush2.bf16.msra.mxu0 0
        %910 = vmatprep.subr.bf16.mxu0 0
        %911 = vmatpush2.bf16.msra.mxu0 0
        %912 = vmatprep.subr.bf16.mxu0 0
        %913 = vmatpush2.bf16.msra.mxu0 0
        %914 = vmatprep.subr.bf16.mxu0 0
        %915 = vmatpush2.bf16.msra.mxu0 0
        %916 = vmatprep.mubr.bf16.mxu0 0
        %917 = vmatmul.mubr.bf16.gmra.mxu0 %v878
        %v918 = vpop.f32.mrf.mxu0
        %v919 = vadd.f32 %v864, %v918
        %v920 = vpop.f32.mrf.mxu0
        %v921 = vpop.f32.mrf.mxu0
        %v922 = vadd.f32 %v864, %v921
        %v923 = vpop.f32.mrf.mxu0
        %924 = vdwg.mxu0
        %v925 = vmax.f32 %v919, 0.0
        %v926 = vmax.f32 %v922, 0.0
        %v927 = vpack.c.bf16 %v926, %v925
        %v929 = vrot.slane %v927, 7
        %vm930 = vcmask 1040384
        %v933 = vsel %vm930, 0, %v929
        %v934 = vsel %vm930, %v929, 0
        %v935 = vshrl.u32 %v933, 16
        %v937 = vshll.u32 %v933, 16
        %v939 = vrot.slane %v937, 1
        %v940 = vor.u32 %v935, %v939
        %v941 = vshll.u32 %v934, 16
        %v943 = vrot.slane %v941, 1
        %v944 = vsel %vm780, %v940, %v943
        %945 = vrot.lane.b32.xlu0 %v944, 64
        %v946 = vpop.permute.xlu0 %945
        %v949 = vrot.slane %v933, 1
        %v950 = vrot.slane %v934, 1
        %v951 = vsel %vm797, %v949, %v950
        %v952 = vrot.slane %v935, 1
        %v953 = vrot.slane %v937, 2
        %v954 = vor.u32 %v952, %v953
        %v955 = vshrl.u32 %v934, 16
        %v957 = vrot.slane %v955, 1
        %v958 = vrot.slane %v941, 2
        %v959 = vor.u32 %v957, %v958
        %v960 = vsel %vm803, %v954, %v959
        %961 = vrot.lane.b32.xlu0 %v960, 64
        %v962 = vpop.permute.xlu0 %961
        %v963 = vrot.slane %v933, 2
        %v964 = vrot.slane %v934, 2
        %v965 = vsel %vm815, %v963, %v964
        %vm966 = vcmask 523264
        %v968 = vsel %vm966, %v933, %v946
        %v972 = vsel %vm966, %v951, %v962
        %v974 = vld [vmem:[%s3] sm:$0xf]
        %v975 = vld [vmem:[%s3 + $0x4] sm:$0xf]
        %v976 = vld [vmem:[%s3 + $0x8] sm:$0xf]
        %v977 = vld [vmem:[%s3 + $0xc] sm:$0xf]
        %v978 = vld [vmem:[%s3 + $0x10] sm:$0xf]
        %v979 = vld [vmem:[%s3 + $0x14] sm:$0xf]
        %v980 = vld [vmem:[%s3 + $0x18] sm:$0xf]
        %v981 = vld [vmem:[%s3 + $0x1c] sm:$0xf]
        %v982 = vld [vmem:[%s3 + $0x20] sm:$0xf]
        %v983 = vld [vmem:[%s3 + $0x24] sm:$0xf]
        %v984 = vld [vmem:[%s3 + $0x28] sm:$0xf]
        %v985 = vld [vmem:[%s3 + $0x2c] sm:$0xf]
        %v986 = vld [vmem:[%s3 + $0x30] sm:$0xf]
        %v987 = vld [vmem:[%s3 + $0x34] sm:$0xf]
        %v988 = vld [vmem:[%s3 + $0x38] sm:$0xf]
        %v989 = vld [vmem:[%s3 + $0x3c] sm:$0xf]
        %v990 = vld [vmem:[%s3 + $0x40] sm:$0xf]
        %v991 = vld [vmem:[%s3 + $0x44] sm:$0xf]
        %v992 = vld [vmem:[%s3 + $0x48] sm:$0xf]
        %v993 = vld [vmem:[%s3 + $0x4c] sm:$0xf]
        %v994 = vld [vmem:[%s3 + $0x50] sm:$0xf]
        %v995 = vld [vmem:[%s3 + $0x54] sm:$0xf]
        %v996 = vld [vmem:[%s3 + $0x58] sm:$0xf]
        %v997 = vld [vmem:[%s3 + $0x5c] sm:$0xf]
        %v998 = vld [vmem:[%s3 + $0x60] sm:$0xf]
        %v999 = vld [vmem:[%s3 + $0x64] sm:$0xf]
        %v1000 = vld [vmem:[%s3 + $0x68] sm:$0xf]
        %v1001 = vld [vmem:[%s3 + $0x6c] sm:$0xf]
        %v1002 = vld [vmem:[%s3 + $0x70] sm:$0xf]
        %v1003 = vld [vmem:[%s3 + $0x74] sm:$0xf]
        %v1004 = vld [vmem:[%s3 + $0x78] sm:$0xf]
        %v1005 = vld [vmem:[%s3 + $0x7c] sm:$0xf]
        %v1006 = vld [vmem:[%s3 + $0x80] sm:$0xf]
        %v1007 = vld [vmem:[%s3 + $0x84] sm:$0xf]
        %v1008 = vld [vmem:[%s3 + $0x88] sm:$0xf]
        %v1009 = vld [vmem:[%s3 + $0x8c] sm:$0xf]
        %v1010 = vld [vmem:[%s3 + $0x90] sm:$0xf]
        %v1011 = vld [vmem:[%s3 + $0x94] sm:$0xf]
        %v1012 = vld [vmem:[%s3 + $0x98] sm:$0xf]
        %v1013 = vld [vmem:[%s3 + $0x9c] sm:$0xf]
        %v1014 = vld [vmem:[%s4] sm:$0x1]
        %v1016 = vlaneseq
        %v1017 = vshrl.u32 %v1016, 7
        %v1018 = vsub.s32 0, %v1017
        %v1019 = vrot.slane %v1014, %v1018
        %v1061 = vunpack.c.l.b16 %v974
        %v1062 = vunpack.c.l.b16 %v975
        %v1063 = vunpack.c.l.b16 %v976
        %v1064 = vunpack.c.l.b16 %v977
        %v1065 = vunpack.c.l.b16 %v978
        %v1066 = vunpack.c.l.b16 %v979
        %v1067 = vunpack.c.l.b16 %v980
        %v1068 = vunpack.c.l.b16 %v981
        %v1069 = vunpack.c.l.b16 %v982
        %v1070 = vunpack.c.l.b16 %v983
        %v1071 = vunpack.c.l.b16 %v984
        %v1072 = vunpack.c.l.b16 %v985
        %v1073 = vunpack.c.l.b16 %v986
        %v1074 = vunpack.c.l.b16 %v987
        %v1075 = vunpack.c.l.b16 %v988
        %v1076 = vunpack.c.l.b16 %v989
        %v1077 = vunpack.c.l.b16 %v990
        %v1078 = vunpack.c.l.b16 %v991
        %v1079 = vunpack.c.l.b16 %v992
        %v1080 = vunpack.c.l.b16 %v993
        %v1081 = vunpack.c.l.b16 %v994
        %v1082 = vunpack.c.l.b16 %v995
        %v1083 = vunpack.c.l.b16 %v996
        %v1084 = vunpack.c.l.b16 %v997
        %v1085 = vunpack.c.l.b16 %v998
        %v1086 = vunpack.c.l.b16 %v999
        %v1087 = vunpack.c.l.b16 %v1000
        %v1088 = vunpack.c.l.b16 %v1001
        %v1089 = vunpack.c.l.b16 %v1002
        %v1090 = vunpack.c.l.b16 %v1003
        %v1091 = vunpack.c.l.b16 %v1004
        %v1092 = vunpack.c.l.b16 %v1005
        %v1093 = vunpack.c.l.b16 %v1006
        %v1094 = vunpack.c.l.b16 %v1007
        %v1095 = vunpack.c.l.b16 %v1008
        %v1096 = vunpack.c.l.b16 %v1009
        %v1097 = vunpack.c.l.b16 %v1010
        %v1098 = vunpack.c.l.b16 %v1011
        %v1099 = vunpack.c.l.b16 %v1012
        %v1100 = vunpack.c.l.b16 %v1013
        %v1101 = vpack.c.b16 %v1062, %v1061
        %v1102 = vpack.c.b16 %v1064, %v1063
        %v1103 = vpack.c.b16 %v1066, %v1065
        %v1104 = vpack.c.b16 %v1068, %v1067
        %v1105 = vpack.c.b16 %v1070, %v1069
        %v1106 = vpack.c.b16 %v1072, %v1071
        %v1107 = vpack.c.b16 %v1074, %v1073
        %v1108 = vpack.c.b16 %v1076, %v1075
        %v1109 = vpack.c.b16 %v1078, %v1077
        %v1110 = vpack.c.b16 %v1080, %v1079
        %v1111 = vpack.c.b16 %v1082, %v1081
        %v1112 = vpack.c.b16 %v1084, %v1083
        %v1113 = vpack.c.b16 %v1086, %v1085
        %v1114 = vpack.c.b16 %v1088, %v1087
        %v1115 = vpack.c.b16 %v1090, %v1089
        %v1116 = vpack.c.b16 %v1092, %v1091
        %v1117 = vpack.c.b16 %v1094, %v1093
        %v1118 = vpack.c.b16 %v1096, %v1095
        %v1119 = vpack.c.b16 %v1098, %v1097
        %v1120 = vpack.c.b16 %v1100, %v1099
        %v1142 = vsel %vm966, %v965, 0
        %1144 = vmatprep.subr.bf16.mxu0 0
        %1145 = vmatpush1.bf16.msra.mxu0 %v1108
        %1146 = vmatprep.subr.bf16.mxu0 0
        %1147 = vmatpush1.bf16.msra.mxu0 %v1107
        %1148 = vmatprep.subr.bf16.mxu0 0
        %1149 = vmatpush1.bf16.msra.mxu0 %v1106
        %1150 = vmatprep.subr.bf16.mxu0 0
        %1151 = vmatpush1.bf16.msra.mxu0 %v1105
        %1152 = vmatprep.subr.bf16.mxu0 0
        %1153 = vmatpush1.bf16.msra.mxu0 %v1104
        %1154 = vmatprep.subr.bf16.mxu0 0
        %1155 = vmatpush1.bf16.msra.mxu0 %v1103
        %1156 = vmatprep.subr.bf16.mxu0 0
        %1157 = vmatpush1.bf16.msra.mxu0 %v1102
        %1158 = vmatprep.subr.bf16.mxu0 0
        %1159 = vmatpush1.bf16.msra.mxu0 %v1101
        %1160 = vmatprep.subr.bf16.mxu0 0
        %1161 = vmatpush2.bf16.msra.mxu0 %v1116
        %1162 = vmatprep.subr.bf16.mxu0 0
        %1163 = vmatpush2.bf16.msra.mxu0 %v1115
        %1164 = vmatprep.subr.bf16.mxu0 0
        %1165 = vmatpush2.bf16.msra.mxu0 %v1114
        %1166 = vmatprep.subr.bf16.mxu0 0
        %1167 = vmatpush2.bf16.msra.mxu0 %v1113
        %1168 = vmatprep.subr.bf16.mxu0 0
        %1169 = vmatpush2.bf16.msra.mxu0 %v1112
        %1170 = vmatprep.subr.bf16.mxu0 0
        %1171 = vmatpush2.bf16.msra.mxu0 %v1111
        %1172 = vmatprep.subr.bf16.mxu0 0
        %1173 = vmatpush2.bf16.msra.mxu0 %v1110
        %1174 = vmatprep.subr.bf16.mxu0 0
        %1175 = vmatpush2.bf16.msra.mxu0 %v1109
        %1176 = vmatprep.mubr.bf16.mxu0 %v972
        %1177 = vmatmul.mubr.bf16.gmra.mxu0 %v968
        %v1178 = vpop.f32.mrf.mxu0
        %v1179 = vadd.f32 %v1019, %v1178
        %v1180 = vpop.f32.mrf.mxu0
        %v1181 = vpop.f32.mrf.mxu0
        %v1182 = vadd.f32 %v1019, %v1181
        %v1183 = vpop.f32.mrf.mxu0
        %1184 = vdwg.mxu0
        %1185 = vmatprep.subr.bf16.mxu0 0
        %1186 = vmatpush1.bf16.msra.mxu0 0
        %1187 = vmatprep.subr.bf16.mxu0 0
        %1188 = vmatpush1.bf16.msra.mxu0 0
        %1189 = vmatprep.subr.bf16.mxu0 0
        %1190 = vmatpush1.bf16.msra.mxu0 0
        %1191 = vmatprep.subr.bf16.mxu0 0
        %1192 = vmatpush1.bf16.msra.mxu0 0
        %1193 = vmatprep.subr.bf16.mxu0 0
        %1194 = vmatpush1.bf16.msra.mxu0 %v1120
        %1195 = vmatprep.subr.bf16.mxu0 0
        %1196 = vmatpush1.bf16.msra.mxu0 %v1119
        %1197 = vmatprep.subr.bf16.mxu0 0
        %1198 = vmatpush1.bf16.msra.mxu0 %v1118
        %1199 = vmatprep.subr.bf16.mxu0 0
        %1200 = vmatpush1.bf16.msra.mxu0 %v1117
        %1201 = vmatprep.subr.bf16.mxu0 0
        %1202 = vmatpush2.bf16.msra.mxu0 0
        %1203 = vmatprep.subr.bf16.mxu0 0
        %1204 = vmatpush2.bf16.msra.mxu0 0
        %1205 = vmatprep.subr.bf16.mxu0 0
        %1206 = vmatpush2.bf16.msra.mxu0 0
        %1207 = vmatprep.subr.bf16.mxu0 0
        %1208 = vmatpush2.bf16.msra.mxu0 0
        %1209 = vmatprep.subr.bf16.mxu0 0
        %1210 = vmatpush2.bf16.msra.mxu0 0
        %1211 = vmatprep.subr.bf16.mxu0 0
        %1212 = vmatpush2.bf16.msra.mxu0 0
        %1213 = vmatprep.subr.bf16.mxu0 0
        %1214 = vmatpush2.bf16.msra.mxu0 0
        %1215 = vmatprep.subr.bf16.mxu0 0
        %1216 = vmatpush2.bf16.msra.mxu0 0
        %1217 = vmatprep.mubr.bf16.mxu0 0
        %1218 = vmatmul.mubr.bf16.gmra.mxu0 %v1142
        %v1219 = vpop.f32.mrf.mxu0
        %v1220 = vadd.f32 %v1179, %v1219
        %v1221 = vpop.f32.mrf.mxu0
        %v1222 = vpop.f32.mrf.mxu0
        %v1223 = vadd.f32 %v1182, %v1222
        %v1224 = vpop.f32.mrf.mxu0
        %1225 = vdwg.mxu0
        %v1226 = vmax.f32 %v1220, 0.0
        %v1227 = vmax.f32 %v1223, 0.0
        %v1228 = vpack.c.bf16 %v1227, %v1226
        %v1230 = vshrl.u32 %v1228, 16
        %v1232 = vrot.slane %v1230, 7
        %v1233 = vshll.u32 %v1228, 16
        %v1235 = vor.u32 %v1232, %v1233
        %vm1238 = vcmask 1040384
        %vm1239 = vsmask.f32 256
        %vm1240 = vmand %vm1238, %vm1239
        %v1241 = vsel %vm1240, 0, %v1235
        %v1242 = vsel %vm1240, %v1232, 0
        %v1244 = vshrl.u32 %v1241, 16
        %v1246 = vshll.u32 %v1241, 16
        %v1248 = vrot.slane %v1246, 1
        %v1249 = vor.u32 %v1244, %v1248
        %v1251 = vshll.u32 %v1242, 16
        %v1253 = vrot.slane %v1251, 1
        %v1254 = vsel %vm780, %v1249, %v1253
        %1255 = vrot.lane.b32.xlu0 %v1254, 64
        %v1256 = vpop.permute.xlu0 %1255
        %v1259 = vrot.slane %v1241, 1
        %v1260 = vrot.slane %v1242, 1
        %v1261 = vsel %vm797, %v1259, %v1260
        %v1263 = vsel %vm966, %v1241, %v1256
        %v1265 = vld [vmem:[%s5] sm:$0xf]
        %v1266 = vld [vmem:[%s5 + $0x4] sm:$0xf]
        %v1267 = vld [vmem:[%s5 + $0x8] sm:$0xf]
        %v1268 = vld [vmem:[%s5 + $0xc] sm:$0xf]
        %v1269 = vld [vmem:[%s5 + $0x10] sm:$0xf]
        %v1270 = vld [vmem:[%s5 + $0x14] sm:$0xf]
        %v1271 = vld [vmem:[%s5 + $0x18] sm:$0xf]
        %v1272 = vld [vmem:[%s5 + $0x1c] sm:$0xf]
        %v1273 = vld [vmem:[%s5 + $0x20] sm:$0xf]
        %v1274 = vld [vmem:[%s5 + $0x24] sm:$0xf]
        %v1275 = vld [vmem:[%s5 + $0x28] sm:$0xf]
        %v1276 = vld [vmem:[%s5 + $0x2c] sm:$0xf]
        %v1277 = vld [vmem:[%s5 + $0x30] sm:$0xf]
        %v1278 = vld [vmem:[%s5 + $0x34] sm:$0xf]
        %v1279 = vld [vmem:[%s5 + $0x38] sm:$0xf]
        %v1280 = vld [vmem:[%s5 + $0x3c] sm:$0xf]
        %v1281 = vld [vmem:[%s5 + $0x40] sm:$0xf]
        %v1282 = vld [vmem:[%s5 + $0x44] sm:$0xf]
        %v1283 = vld [vmem:[%s5 + $0x48] sm:$0xf]
        %v1284 = vld [vmem:[%s5 + $0x4c] sm:$0xf]
        %v1285 = vld [vmem:[%s5 + $0x50] sm:$0xf]
        %v1286 = vld [vmem:[%s5 + $0x54] sm:$0xf]
        %v1287 = vld [vmem:[%s5 + $0x58] sm:$0xf]
        %v1288 = vld [vmem:[%s5 + $0x5c] sm:$0xf]
        %v1289 = vld [vmem:[%s6] sm:$0x1]
        %v1291 = vlaneseq
        %v1292 = vshrl.u32 %v1291, 7
        %v1293 = vsub.s32 0, %v1292
        %v1294 = vrot.slane %v1289, %v1293
        %v1320 = vunpack.c.l.b16 %v1265
        %v1321 = vunpack.c.l.b16 %v1266
        %v1322 = vunpack.c.l.b16 %v1267
        %v1323 = vunpack.c.l.b16 %v1268
        %v1324 = vunpack.c.l.b16 %v1269
        %v1325 = vunpack.c.l.b16 %v1270
        %v1326 = vunpack.c.l.b16 %v1271
        %v1327 = vunpack.c.l.b16 %v1272
        %v1328 = vunpack.c.l.b16 %v1273
        %v1329 = vunpack.c.l.b16 %v1274
        %v1330 = vunpack.c.l.b16 %v1275
        %v1331 = vunpack.c.l.b16 %v1276
        %v1332 = vunpack.c.l.b16 %v1277
        %v1333 = vunpack.c.l.b16 %v1278
        %v1334 = vunpack.c.l.b16 %v1279
        %v1335 = vunpack.c.l.b16 %v1280
        %v1336 = vunpack.c.l.b16 %v1281
        %v1337 = vunpack.c.l.b16 %v1282
        %v1338 = vunpack.c.l.b16 %v1283
        %v1339 = vunpack.c.l.b16 %v1284
        %v1340 = vunpack.c.l.b16 %v1285
        %v1341 = vunpack.c.l.b16 %v1286
        %v1342 = vunpack.c.l.b16 %v1287
        %v1343 = vunpack.c.l.b16 %v1288
        %v1344 = vpack.c.b16 %v1321, %v1320
        %v1345 = vpack.c.b16 %v1323, %v1322
        %v1346 = vpack.c.b16 %v1325, %v1324
        %v1347 = vpack.c.b16 %v1327, %v1326
        %v1348 = vpack.c.b16 %v1329, %v1328
        %v1349 = vpack.c.b16 %v1331, %v1330
        %v1350 = vpack.c.b16 %v1333, %v1332
        %v1351 = vpack.c.b16 %v1335, %v1334
        %v1352 = vpack.c.b16 %v1337, %v1336
        %v1353 = vpack.c.b16 %v1339, %v1338
        %v1354 = vpack.c.b16 %v1341, %v1340
        %v1355 = vpack.c.b16 %v1343, %v1342
        %v1369 = vsel %vm966, %v1261, 0
        %1371 = vmatprep.subr.bf16.mxu0 0
        %1372 = vmatpush1.bf16.msra.mxu0 %v1351
        %1373 = vmatprep.subr.bf16.mxu0 0
        %1374 = vmatpush1.bf16.msra.mxu0 %v1350
        %1375 = vmatprep.subr.bf16.mxu0 0
        %1376 = vmatpush1.bf16.msra.mxu0 %v1349
        %1377 = vmatprep.subr.bf16.mxu0 0
        %1378 = vmatpush1.bf16.msra.mxu0 %v1348
        %1379 = vmatprep.subr.bf16.mxu0 0
        %1380 = vmatpush1.bf16.msra.mxu0 %v1347
        %1381 = vmatprep.subr.bf16.mxu0 0
        %1382 = vmatpush1.bf16.msra.mxu0 %v1346
        %1383 = vmatprep.subr.bf16.mxu0 0
        %1384 = vmatpush1.bf16.msra.mxu0 %v1345
        %1385 = vmatprep.subr.bf16.mxu0 0
        %1386 = vmatpush1.bf16.msra.mxu0 %v1344
        %1387 = vmatprep.subr.bf16.mxu0 0
        %1388 = vmatpush2.bf16.msra.mxu0 0
        %1389 = vmatprep.subr.bf16.mxu0 0
        %1390 = vmatpush2.bf16.msra.mxu0 0
        %1391 = vmatprep.subr.bf16.mxu0 0
        %1392 = vmatpush2.bf16.msra.mxu0 0
        %1393 = vmatprep.subr.bf16.mxu0 0
        %1394 = vmatpush2.bf16.msra.mxu0 0
        %1395 = vmatprep.subr.bf16.mxu0 0
        %1396 = vmatpush2.bf16.msra.mxu0 %v1355
        %1397 = vmatprep.subr.bf16.mxu0 0
        %1398 = vmatpush2.bf16.msra.mxu0 %v1354
        %1399 = vmatprep.subr.bf16.mxu0 0
        %1400 = vmatpush2.bf16.msra.mxu0 %v1353
        %1401 = vmatprep.subr.bf16.mxu0 0
        %1402 = vmatpush2.bf16.msra.mxu0 %v1352
        %1403 = vmatprep.mubr.bf16.mxu0 %v1369
        %1404 = vmatmul.mubr.bf16.gmra.mxu0 %v1263
        %v1405 = vpop.f32.mrf.mxu0
        %v1406 = vadd.f32 %v1294, %v1405
        %v1407 = vpop.f32.mrf.mxu0
        %v1408 = vpop.f32.mrf.mxu0
        %v1409 = vadd.f32 %v1294, %v1408
        %v1410 = vpop.f32.mrf.mxu0
        %1411 = vdwg.mxu0
        %v1412 = vld [vmem:[%s7] sm:$0x3]
        %v1413 = vld [vmem:[%s8] sm:$0x1]
        %v1415 = vlaneseq
        %v1416 = vshrl.u32 %v1415, 7
        %v1417 = vsub.s32 0, %v1416
        %v1418 = vrot.slane %v1413, %v1417
        %v1420 = vsel %vm837, %v765, 0
        %vm1422 = vcmask 1041408
        %v1424 = vsel %vm1422, %v1412, 0
        %1426 = vmatprep.subr.bf16.mxu0 0
        %1427 = vmatpush1.bf16.msra.mxu0 0
        %1428 = vmatprep.subr.bf16.mxu0 0
        %1429 = vmatpush1.bf16.msra.mxu0 0
        %1430 = vmatprep.subr.bf16.mxu0 0
        %1431 = vmatpush1.bf16.msra.mxu0 0
        %1432 = vmatprep.subr.bf16.mxu0 0
        %1433 = vmatpush1.bf16.msra.mxu0 0
        %1434 = vmatprep.subr.bf16.mxu0 0
        %1435 = vmatpush1.bf16.msra.mxu0 0
        %1436 = vmatprep.subr.bf16.mxu0 0
        %1437 = vmatpush1.bf16.msra.mxu0 0
        %1438 = vmatprep.subr.bf16.mxu0 0
        %1439 = vmatpush1.bf16.msra.mxu0 0
        %1440 = vmatprep.subr.bf16.mxu0 0
        %1441 = vmatpush1.bf16.msra.mxu0 %v1424
        %1442 = vmatprep.subr.bf16.mxu0 0
        %1443 = vmatpush2.bf16.msra.mxu0 0
        %1444 = vmatprep.subr.bf16.mxu0 0
        %1445 = vmatpush2.bf16.msra.mxu0 0
        %1446 = vmatprep.subr.bf16.mxu0 0
        %1447 = vmatpush2.bf16.msra.mxu0 0
        %1448 = vmatprep.subr.bf16.mxu0 0
        %1449 = vmatpush2.bf16.msra.mxu0 0
        %1450 = vmatprep.subr.bf16.mxu0 0
        %1451 = vmatpush2.bf16.msra.mxu0 0
        %1452 = vmatprep.subr.bf16.mxu0 0
        %1453 = vmatpush2.bf16.msra.mxu0 0
        %1454 = vmatprep.subr.bf16.mxu0 0
        %1455 = vmatpush2.bf16.msra.mxu0 0
        %1456 = vmatprep.subr.bf16.mxu0 0
        %1457 = vmatpush2.bf16.msra.mxu0 0
        %1458 = vmatprep.mubr.bf16.mxu0 0
        %1459 = vmatmul.mubr.bf16.gmra.mxu0 %v1420
        %v1460 = vpop.f32.mrf.mxu0
        %v1461 = vadd.f32 %v1418, %v1460
        %v1462 = vpop.f32.mrf.mxu0
        %v1463 = vpop.f32.mrf.mxu0
        %v1464 = vadd.f32 %v1418, %v1463
        %v1465 = vpop.f32.mrf.mxu0
        %1466 = vdwg.mxu0
        %v1467 = vadd.f32 %v1406, %v1461
        %v1468 = vadd.f32 %v1409, %v1464
        %v1469 = vmax.f32 %v1467, 0.0
        %v1470 = vmax.f32 %v1468, 0.0
        %v1471 = vpack.c.bf16 %v1470, %v1469
        %v1473 = vshrl.u32 %v1471, 16
        %v1475 = vrot.slane %v1473, 6
        %v1476 = vshll.u32 %v1471, 16
        %v1478 = vrot.slane %v1476, 7
        %v1479 = vor.u32 %v1475, %v1478
        %v1481 = vsel %vm777, 0, %v1479
        %v1482 = vsel %vm777, %v1479, 0
        %v1484 = vshrl.u32 %v1481, 16
        %v1486 = vshll.u32 %v1481, 16
        %v1488 = vrot.slane %v1486, 1
        %v1489 = vor.u32 %v1484, %v1488
        %v1491 = vshll.u32 %v1482, 16
        %v1493 = vrot.slane %v1491, 1
        %v1494 = vsel %vm780, %v1489, %v1493
        %1495 = vrot.lane.b32.xlu0 %v1494, 64
        %v1496 = vpop.permute.xlu0 %1495
        %v1499 = vrot.slane %v1481, 1
        %v1500 = vrot.slane %v1482, 1
        %v1501 = vsel %vm797, %v1499, %v1500
        %v1502 = vrot.slane %v1484, 1
        %v1503 = vrot.slane %v1486, 2
        %v1504 = vor.u32 %v1502, %v1503
        %v1505 = vshrl.u32 %v1482, 16
        %v1507 = vrot.slane %v1505, 1
        %v1508 = vrot.slane %v1491, 2
        %v1509 = vor.u32 %v1507, %v1508
        %v1510 = vsel %vm803, %v1504, %v1509
        %1511 = vrot.lane.b32.xlu0 %v1510, 64
        %v1512 = vpop.permute.xlu0 %1511
        %v1513 = vrot.slane %v1481, 2
        %v1514 = vrot.slane %v1482, 2
        %v1515 = vsel %vm815, %v1513, %v1514
        %v1516 = vrot.slane %v1484, 2
        %v1517 = vrot.slane %v1486, 3
        %v1518 = vor.u32 %v1516, %v1517
        %v1519 = vrot.slane %v1505, 2
        %v1520 = vrot.slane %v1491, 3
        %v1521 = vor.u32 %v1519, %v1520
        %v1522 = vsel %vm821, %v1518, %v1521
        %1523 = vrot.lane.b32.xlu0 %v1522, 64
        %v1524 = vpop.permute.xlu0 %1523
        %v1525 = vrot.slane %v1481, 3
        %v1526 = vrot.slane %v1482, 3
        %v1527 = vsel %vm831, %v1525, %v1526
        %v1529 = vsel %vm966, %v1481, %v1496
        %v1533 = vsel %vm966, %v1501, %v1512
        %v1537 = vsel %vm966, %v1515, %v1524
        %v1539 = vld [vmem:[%s9] sm:$0xf]
        %v1540 = vld [vmem:[%s9 + $0x4] sm:$0xf]
        %v1541 = vld [vmem:[%s9 + $0x8] sm:$0xf]
        %v1542 = vld [vmem:[%s9 + $0xc] sm:$0xf]
        %v1543 = vld [vmem:[%s9 + $0x10] sm:$0xf]
        %v1544 = vld [vmem:[%s9 + $0x14] sm:$0xf]
        %v1545 = vld [vmem:[%s9 + $0x18] sm:$0xf]
        %v1546 = vld [vmem:[%s9 + $0x1c] sm:$0xf]
        %v1547 = vld [vmem:[%s9 + $0x20] sm:$0xf]
        %v1548 = vld [vmem:[%s9 + $0x24] sm:$0xf]
        %v1549 = vld [vmem:[%s9 + $0x28] sm:$0xf]
        %v1550 = vld [vmem:[%s9 + $0x2c] sm:$0xf]
        %v1551 = vld [vmem:[%s9 + $0x30] sm:$0xf]
        %v1552 = vld [vmem:[%s9 + $0x34] sm:$0xf]
        %v1553 = vld [vmem:[%s9 + $0x38] sm:$0xf]
        %v1554 = vld [vmem:[%s9 + $0x3c] sm:$0xf]
        %v1555 = vld [vmem:[%s9 + $0x40] sm:$0xf]
        %v1556 = vld [vmem:[%s9 + $0x44] sm:$0xf]
        %v1557 = vld [vmem:[%s9 + $0x48] sm:$0xf]
        %v1558 = vld [vmem:[%s9 + $0x4c] sm:$0xf]
        %v1559 = vld [vmem:[%s9 + $0x50] sm:$0xf]
        %v1560 = vld [vmem:[%s9 + $0x54] sm:$0xf]
        %v1561 = vld [vmem:[%s9 + $0x58] sm:$0xf]
        %v1562 = vld [vmem:[%s9 + $0x5c] sm:$0xf]
        %v1563 = vld [vmem:[%s9 + $0x60] sm:$0xf]
        %v1564 = vld [vmem:[%s9 + $0x64] sm:$0xf]
        %v1565 = vld [vmem:[%s9 + $0x68] sm:$0xf]
        %v1566 = vld [vmem:[%s9 + $0x6c] sm:$0xf]
        %v1567 = vld [vmem:[%s9 + $0x70] sm:$0xf]
        %v1568 = vld [vmem:[%s9 + $0x74] sm:$0xf]
        %v1569 = vld [vmem:[%s9 + $0x78] sm:$0xf]
        %v1570 = vld [vmem:[%s9 + $0x7c] sm:$0xf]
        %v1571 = vld [vmem:[%s9 + $0x80] sm:$0xf]
        %v1572 = vld [vmem:[%s9 + $0x84] sm:$0xf]
        %v1573 = vld [vmem:[%s9 + $0x88] sm:$0xf]
        %v1574 = vld [vmem:[%s9 + $0x8c] sm:$0xf]
        %v1575 = vld [vmem:[%s9 + $0x90] sm:$0xf]
        %v1576 = vld [vmem:[%s9 + $0x94] sm:$0xf]
        %v1577 = vld [vmem:[%s9 + $0x98] sm:$0xf]
        %v1578 = vld [vmem:[%s9 + $0x9c] sm:$0xf]
        %v1579 = vld [vmem:[%s9 + $0xa0] sm:$0xf]
        %v1580 = vld [vmem:[%s9 + $0xa4] sm:$0xf]
        %v1581 = vld [vmem:[%s9 + $0xa8] sm:$0xf]
        %v1582 = vld [vmem:[%s9 + $0xac] sm:$0xf]
        %v1583 = vld [vmem:[%s9 + $0xb0] sm:$0xf]
        %v1584 = vld [vmem:[%s9 + $0xb4] sm:$0xf]
        %v1585 = vld [vmem:[%s9 + $0xb8] sm:$0xf]
        %v1586 = vld [vmem:[%s9 + $0xbc] sm:$0xf]
        %v1587 = vld [vmem:[%s9 + $0xc0] sm:$0xf]
        %v1588 = vld [vmem:[%s9 + $0xc4] sm:$0xf]
        %v1589 = vld [vmem:[%s9 + $0xc8] sm:$0xf]
        %v1590 = vld [vmem:[%s9 + $0xcc] sm:$0xf]
        %v1591 = vld [vmem:[%s9 + $0xd0] sm:$0xf]
        %v1592 = vld [vmem:[%s9 + $0xd4] sm:$0xf]
        %v1593 = vld [vmem:[%s9 + $0xd8] sm:$0xf]
        %v1594 = vld [vmem:[%s9 + $0xdc] sm:$0xf]
        %v1595 = vld [vmem:[%s10] sm:$0x1]
        %v1597 = vlaneseq
        %v1598 = vshrl.u32 %v1597, 7
        %v1599 = vsub.s32 0, %v1598
        %v1600 = vrot.slane %v1595, %v1599
        %v1658 = vunpack.c.l.b16 %v1539
        %v1659 = vunpack.c.l.b16 %v1540
        %v1660 = vunpack.c.l.b16 %v1541
        %v1661 = vunpack.c.l.b16 %v1542
        %v1662 = vunpack.c.l.b16 %v1543
        %v1663 = vunpack.c.l.b16 %v1544
        %v1664 = vunpack.c.l.b16 %v1545
        %v1665 = vunpack.c.l.b16 %v1546
        %v1666 = vunpack.c.l.b16 %v1547
        %v1667 = vunpack.c.l.b16 %v1548
        %v1668 = vunpack.c.l.b16 %v1549
        %v1669 = vunpack.c.l.b16 %v1550
        %v1670 = vunpack.c.l.b16 %v1551
        %v1671 = vunpack.c.l.b16 %v1552
        %v1672 = vunpack.c.l.b16 %v1553
        %v1673 = vunpack.c.l.b16 %v1554
        %v1674 = vunpack.c.l.b16 %v1555
        %v1675 = vunpack.c.l.b16 %v1556
        %v1676 = vunpack.c.l.b16 %v1557
        %v1677 = vunpack.c.l.b16 %v1558
        %v1678 = vunpack.c.l.b16 %v1559
        %v1679 = vunpack.c.l.b16 %v1560
        %v1680 = vunpack.c.l.b16 %v1561
        %v1681 = vunpack.c.l.b16 %v1562
        %v1682 = vunpack.c.l.b16 %v1563
        %v1683 = vunpack.c.l.b16 %v1564
        %v1684 = vunpack.c.l.b16 %v1565
        %v1685 = vunpack.c.l.b16 %v1566
        %v1686 = vunpack.c.l.b16 %v1567
        %v1687 = vunpack.c.l.b16 %v1568
        %v1688 = vunpack.c.l.b16 %v1569
        %v1689 = vunpack.c.l.b16 %v1570
        %v1690 = vunpack.c.l.b16 %v1571
        %v1691 = vunpack.c.l.b16 %v1572
        %v1692 = vunpack.c.l.b16 %v1573
        %v1693 = vunpack.c.l.b16 %v1574
        %v1694 = vunpack.c.l.b16 %v1575
        %v1695 = vunpack.c.l.b16 %v1576
        %v1696 = vunpack.c.l.b16 %v1577
        %v1697 = vunpack.c.l.b16 %v1578
        %v1698 = vunpack.c.l.b16 %v1579
        %v1699 = vunpack.c.l.b16 %v1580
        %v1700 = vunpack.c.l.b16 %v1581
        %v1701 = vunpack.c.l.b16 %v1582
        %v1702 = vunpack.c.l.b16 %v1583
        %v1703 = vunpack.c.l.b16 %v1584
        %v1704 = vunpack.c.l.b16 %v1585
        %v1705 = vunpack.c.l.b16 %v1586
        %v1706 = vunpack.c.l.b16 %v1587
        %v1707 = vunpack.c.l.b16 %v1588
        %v1708 = vunpack.c.l.b16 %v1589
        %v1709 = vunpack.c.l.b16 %v1590
        %v1710 = vunpack.c.l.b16 %v1591
        %v1711 = vunpack.c.l.b16 %v1592
        %v1712 = vunpack.c.l.b16 %v1593
        %v1713 = vunpack.c.l.b16 %v1594
        %v1714 = vpack.c.b16 %v1659, %v1658
        %v1715 = vpack.c.b16 %v1661, %v1660
        %v1716 = vpack.c.b16 %v1663, %v1662
        %v1717 = vpack.c.b16 %v1665, %v1664
        %v1718 = vpack.c.b16 %v1667, %v1666
        %v1719 = vpack.c.b16 %v1669, %v1668
        %v1720 = vpack.c.b16 %v1671, %v1670
        %v1721 = vpack.c.b16 %v1673, %v1672
        %v1722 = vpack.c.b16 %v1675, %v1674
        %v1723 = vpack.c.b16 %v1677, %v1676
        %v1724 = vpack.c.b16 %v1679, %v1678
        %v1725 = vpack.c.b16 %v1681, %v1680
        %v1726 = vpack.c.b16 %v1683, %v1682
        %v1727 = vpack.c.b16 %v1685, %v1684
        %v1728 = vpack.c.b16 %v1687, %v1686
        %v1729 = vpack.c.b16 %v1689, %v1688
        %v1730 = vpack.c.b16 %v1691, %v1690
        %v1731 = vpack.c.b16 %v1693, %v1692
        %v1732 = vpack.c.b16 %v1695, %v1694
        %v1733 = vpack.c.b16 %v1697, %v1696
        %v1734 = vpack.c.b16 %v1699, %v1698
        %v1735 = vpack.c.b16 %v1701, %v1700
        %v1736 = vpack.c.b16 %v1703, %v1702
        %v1737 = vpack.c.b16 %v1705, %v1704
        %v1738 = vpack.c.b16 %v1707, %v1706
        %v1739 = vpack.c.b16 %v1709, %v1708
        %v1740 = vpack.c.b16 %v1711, %v1710
        %v1741 = vpack.c.b16 %v1713, %v1712
        %v1771 = vsel %vm966, %v1527, 0
        %1773 = vmatprep.subr.bf16.mxu0 0
        %1774 = vmatpush1.bf16.msra.mxu0 %v1721
        %1775 = vmatprep.subr.bf16.mxu0 0
        %1776 = vmatpush1.bf16.msra.mxu0 %v1720
        %1777 = vmatprep.subr.bf16.mxu0 0
        %1778 = vmatpush1.bf16.msra.mxu0 %v1719
        %1779 = vmatprep.subr.bf16.mxu0 0
        %1780 = vmatpush1.bf16.msra.mxu0 %v1718
        %1781 = vmatprep.subr.bf16.mxu0 0
        %1782 = vmatpush1.bf16.msra.mxu0 %v1717
        %1783 = vmatprep.subr.bf16.mxu0 0
        %1784 = vmatpush1.bf16.msra.mxu0 %v1716
        %1785 = vmatprep.subr.bf16.mxu0 0
        %1786 = vmatpush1.bf16.msra.mxu0 %v1715
        %1787 = vmatprep.subr.bf16.mxu0 0
        %1788 = vmatpush1.bf16.msra.mxu0 %v1714
        %1789 = vmatprep.subr.bf16.mxu0 0
        %1790 = vmatpush2.bf16.msra.mxu0 %v1729
        %1791 = vmatprep.subr.bf16.mxu0 0
        %1792 = vmatpush2.bf16.msra.mxu0 %v1728
        %1793 = vmatprep.subr.bf16.mxu0 0
        %1794 = vmatpush2.bf16.msra.mxu0 %v1727
        %1795 = vmatprep.subr.bf16.mxu0 0
        %1796 = vmatpush2.bf16.msra.mxu0 %v1726
        %1797 = vmatprep.subr.bf16.mxu0 0
        %1798 = vmatpush2.bf16.msra.mxu0 %v1725
        %1799 = vmatprep.subr.bf16.mxu0 0
        %1800 = vmatpush2.bf16.msra.mxu0 %v1724
        %1801 = vmatprep.subr.bf16.mxu0 0
        %1802 = vmatpush2.bf16.msra.mxu0 %v1723
        %1803 = vmatprep.subr.bf16.mxu0 0
        %1804 = vmatpush2.bf16.msra.mxu0 %v1722
        %1805 = vmatprep.mubr.bf16.mxu0 %v1533
        %1806 = vmatmul.mubr.bf16.gmra.mxu0 %v1529
        %v1807 = vpop.f32.mrf.mxu0
        %v1808 = vadd.f32 %v1600, %v1807
        %v1809 = vpop.f32.mrf.mxu0
        %v1810 = vpop.f32.mrf.mxu0
        %v1811 = vadd.f32 %v1600, %v1810
        %v1812 = vpop.f32.mrf.mxu0
        %1813 = vdwg.mxu0
        %1814 = vmatprep.subr.bf16.mxu0 0
        %1815 = vmatpush1.bf16.msra.mxu0 %v1737
        %1816 = vmatprep.subr.bf16.mxu0 0
        %1817 = vmatpush1.bf16.msra.mxu0 %v1736
        %1818 = vmatprep.subr.bf16.mxu0 0
        %1819 = vmatpush1.bf16.msra.mxu0 %v1735
        %1820 = vmatprep.subr.bf16.mxu0 0
        %1821 = vmatpush1.bf16.msra.mxu0 %v1734
        %1822 = vmatprep.subr.bf16.mxu0 0
        %1823 = vmatpush1.bf16.msra.mxu0 %v1733
        %1824 = vmatprep.subr.bf16.mxu0 0
        %1825 = vmatpush1.bf16.msra.mxu0 %v1732
        %1826 = vmatprep.subr.bf16.mxu0 0
        %1827 = vmatpush1.bf16.msra.mxu0 %v1731
        %1828 = vmatprep.subr.bf16.mxu0 0
        %1829 = vmatpush1.bf16.msra.mxu0 %v1730
        %1830 = vmatprep.subr.bf16.mxu0 0
        %1831 = vmatpush2.bf16.msra.mxu0 0
        %1832 = vmatprep.subr.bf16.mxu0 0
        %1833 = vmatpush2.bf16.msra.mxu0 0
        %1834 = vmatprep.subr.bf16.mxu0 0
        %1835 = vmatpush2.bf16.msra.mxu0 0
        %1836 = vmatprep.subr.bf16.mxu0 0
        %1837 = vmatpush2.bf16.msra.mxu0 0
        %1838 = vmatprep.subr.bf16.mxu0 0
        %1839 = vmatpush2.bf16.msra.mxu0 %v1741
        %1840 = vmatprep.subr.bf16.mxu0 0
        %1841 = vmatpush2.bf16.msra.mxu0 %v1740
        %1842 = vmatprep.subr.bf16.mxu0 0
        %1843 = vmatpush2.bf16.msra.mxu0 %v1739
        %1844 = vmatprep.subr.bf16.mxu0 0
        %1845 = vmatpush2.bf16.msra.mxu0 %v1738
        %1846 = vmatprep.mubr.bf16.mxu0 %v1771
        %1847 = vmatmul.mubr.bf16.gmra.mxu0 %v1537
        %v1848 = vpop.f32.mrf.mxu0
        %v1849 = vadd.f32 %v1808, %v1848
        %v1850 = vpop.f32.mrf.mxu0
        %v1851 = vpop.f32.mrf.mxu0
        %v1852 = vadd.f32 %v1811, %v1851
        %v1853 = vpop.f32.mrf.mxu0
        %1854 = vdwg.mxu0
        %v1855 = vmax.f32 %v1849, 0.0
        %v1856 = vmax.f32 %v1852, 0.0
        %v1857 = vpack.c.bf16 %v1856, %v1855
        %v1859 = vrot.slane %v1857, 7
        %v1861 = vsel %vm930, 0, %v1859
        %v1863 = vsel %vm930, %v1859, 0
        %v1864 = vshrl.u32 %v1861, 16
        %v1866 = vshll.u32 %v1861, 16
        %v1868 = vrot.slane %v1866, 1
        %v1869 = vor.u32 %v1864, %v1868
        %v1870 = vshll.u32 %v1863, 16
        %v1872 = vrot.slane %v1870, 1
        %v1873 = vsel %vm780, %v1869, %v1872
        %v1877 = vrot.slane %v1861, 1
        %v1878 = vrot.slane %v1863, 1
        %v1879 = vsel %vm797, %v1877, %v1878
        %v1881 = vrot.slane %v1864, 1
        %v1882 = vrot.slane %v1866, 2
        %v1883 = vor.u32 %v1881, %v1882
        %v1884 = vshrl.u32 %v1863, 16
        %v1886 = vrot.slane %v1884, 1
        %v1887 = vrot.slane %v1870, 2
        %v1888 = vor.u32 %v1886, %v1887
        %v1889 = vsel %vm803, %v1883, %v1888
        %v1891 = vrot.slane %v1861, 2
        %v1892 = vrot.slane %v1863, 2
        %v1893 = vsel %vm815, %v1891, %v1892
        %v1895 = vld [vmem:[%s11] sm:$0xf]
        %v1896 = vld [vmem:[%s11 + $0x4] sm:$0xf]
        %v1897 = vld [vmem:[%s11 + $0x8] sm:$0xf]
        %v1898 = vld [vmem:[%s11 + $0xc] sm:$0xf]
        %v1899 = vld [vmem:[%s11 + $0x10] sm:$0xf]
        %v1900 = vld [vmem:[%s11 + $0x14] sm:$0xf]
        %v1901 = vld [vmem:[%s11 + $0x18] sm:$0xf]
        %v1902 = vld [vmem:[%s11 + $0x1c] sm:$0xf]
        %v1903 = vld [vmem:[%s11 + $0x20] sm:$0xf]
        %v1904 = vld [vmem:[%s11 + $0x24] sm:$0xf]
        %v1905 = vld [vmem:[%s11 + $0x28] sm:$0xf]
        %v1906 = vld [vmem:[%s11 + $0x2c] sm:$0xf]
        %v1907 = vld [vmem:[%s11 + $0x30] sm:$0xf]
        %v1908 = vld [vmem:[%s11 + $0x34] sm:$0xf]
        %v1909 = vld [vmem:[%s11 + $0x38] sm:$0xf]
        %v1910 = vld [vmem:[%s11 + $0x3c] sm:$0xf]
        %v1911 = vld [vmem:[%s11 + $0x40] sm:$0xf]
        %v1912 = vld [vmem:[%s11 + $0x44] sm:$0xf]
        %v1913 = vld [vmem:[%s11 + $0x48] sm:$0xf]
        %v1914 = vld [vmem:[%s11 + $0x4c] sm:$0xf]
        %v1915 = vld [vmem:[%s11 + $0x50] sm:$0xf]
        %v1916 = vld [vmem:[%s11 + $0x54] sm:$0xf]
        %v1917 = vld [vmem:[%s11 + $0x58] sm:$0xf]
        %v1918 = vld [vmem:[%s11 + $0x5c] sm:$0xf]
        %v1919 = vld [vmem:[%s11 + $0x60] sm:$0xf]
        %v1920 = vld [vmem:[%s11 + $0x64] sm:$0xf]
        %v1921 = vld [vmem:[%s11 + $0x68] sm:$0xf]
        %v1922 = vld [vmem:[%s11 + $0x6c] sm:$0xf]
        %v1923 = vld [vmem:[%s11 + $0x70] sm:$0xf]
        %v1924 = vld [vmem:[%s11 + $0x74] sm:$0xf]
        %v1925 = vld [vmem:[%s11 + $0x78] sm:$0xf]
        %v1926 = vld [vmem:[%s11 + $0x7c] sm:$0xf]
        %v1927 = vld [vmem:[%s11 + $0x80] sm:$0xf]
        %v1928 = vld [vmem:[%s11 + $0x84] sm:$0xf]
        %v1929 = vld [vmem:[%s11 + $0x88] sm:$0xf]
        %v1930 = vld [vmem:[%s11 + $0x8c] sm:$0xf]
        %v1931 = vld [vmem:[%s11 + $0x90] sm:$0xf]
        %v1932 = vld [vmem:[%s11 + $0x94] sm:$0xf]
        %v1933 = vld [vmem:[%s11 + $0x98] sm:$0xf]
        %v1934 = vld [vmem:[%s11 + $0x9c] sm:$0xf]
        %v1935 = vld [vmem:[%s11 + $0xa0] sm:$0xf]
        %v1936 = vld [vmem:[%s11 + $0xa4] sm:$0xf]
        %v1937 = vld [vmem:[%s11 + $0xa8] sm:$0xf]
        %v1938 = vld [vmem:[%s11 + $0xac] sm:$0xf]
        %v1939 = vld [vmem:[%s11 + $0xb0] sm:$0xf]
        %v1940 = vld [vmem:[%s11 + $0xb4] sm:$0xf]
        %v1941 = vld [vmem:[%s11 + $0xb8] sm:$0xf]
        %v1942 = vld [vmem:[%s11 + $0xbc] sm:$0xf]
        %v1943 = vld [vmem:[%s11 + $0xc0] sm:$0xf]
        %v1944 = vld [vmem:[%s11 + $0xc4] sm:$0xf]
        %v1945 = vld [vmem:[%s11 + $0xc8] sm:$0xf]
        %v1946 = vld [vmem:[%s11 + $0xcc] sm:$0xf]
        %v1947 = vld [vmem:[%s11 + $0xd0] sm:$0xf]
        %v1948 = vld [vmem:[%s11 + $0xd4] sm:$0xf]
        %v1949 = vld [vmem:[%s11 + $0xd8] sm:$0xf]
        %v1950 = vld [vmem:[%s11 + $0xdc] sm:$0xf]
        %v1951 = vld [vmem:[%s11 + $0xe0] sm:$0xf]
        %v1952 = vld [vmem:[%s11 + $0xe4] sm:$0xf]
        %v1953 = vld [vmem:[%s11 + $0xe8] sm:$0xf]
        %v1954 = vld [vmem:[%s11 + $0xec] sm:$0xf]
        %v1955 = vld [vmem:[%s11 + $0xf0] sm:$0xf]
        %v1956 = vld [vmem:[%s11 + $0xf4] sm:$0xf]
        %v1957 = vld [vmem:[%s11 + $0xf8] sm:$0xf]
        %v1958 = vld [vmem:[%s11 + $0xfc] sm:$0xf]
        %v1959 = vld [vmem:[%s11 + $0x100] sm:$0xf]
        %v1960 = vld [vmem:[%s11 + $0x104] sm:$0xf]
        %v1961 = vld [vmem:[%s11 + $0x108] sm:$0xf]
        %v1962 = vld [vmem:[%s11 + $0x10c] sm:$0xf]
        %v1963 = vld [vmem:[%s11 + $0x110] sm:$0xf]
        %v1964 = vld [vmem:[%s11 + $0x114] sm:$0xf]
        %v1965 = vld [vmem:[%s11 + $0x118] sm:$0xf]
        %v1966 = vld [vmem:[%s11 + $0x11c] sm:$0xf]
        %v1967 = vld [vmem:[%s11 + $0x120] sm:$0xf]
        %v1968 = vld [vmem:[%s11 + $0x124] sm:$0xf]
        %v1969 = vld [vmem:[%s11 + $0x128] sm:$0xf]
        %v1970 = vld [vmem:[%s11 + $0x12c] sm:$0xf]
        %v1971 = vld [vmem:[%s11 + $0x130] sm:$0xf]
        %v1972 = vld [vmem:[%s11 + $0x134] sm:$0xf]
        %v1973 = vld [vmem:[%s11 + $0x138] sm:$0xf]
        %v1974 = vld [vmem:[%s11 + $0x13c] sm:$0xf]
        %v1975 = vld [vmem:[%s12] sm:$0x1]
        %v1977 = vlaneseq
        %v1978 = vshrl.u32 %v1977, 7
        %v1979 = vsub.s32 0, %v1978
        %v1980 = vrot.slane %v1975, %v1979
        %v2062 = vunpack.c.l.b16 %v1895
        %v2063 = vunpack.c.l.b16 %v1896
        %v2064 = vunpack.c.l.b16 %v1897
        %v2065 = vunpack.c.l.b16 %v1898
        %v2066 = vunpack.c.l.b16 %v1899
        %v2067 = vunpack.c.l.b16 %v1900
        %v2068 = vunpack.c.l.b16 %v1901
        %v2069 = vunpack.c.l.b16 %v1902
        %v2070 = vunpack.c.l.b16 %v1903
        %v2071 = vunpack.c.l.b16 %v1904
        %v2072 = vunpack.c.l.b16 %v1905
        %v2073 = vunpack.c.l.b16 %v1906
        %v2074 = vunpack.c.l.b16 %v1907
        %v2075 = vunpack.c.l.b16 %v1908
        %v2076 = vunpack.c.l.b16 %v1909
        %v2077 = vunpack.c.l.b16 %v1910
        %v2078 = vunpack.c.l.b16 %v1911
        %v2079 = vunpack.c.l.b16 %v1912
        %v2080 = vunpack.c.l.b16 %v1913
        %v2081 = vunpack.c.l.b16 %v1914
        %v2082 = vunpack.c.l.b16 %v1915
        %v2083 = vunpack.c.l.b16 %v1916
        %v2084 = vunpack.c.l.b16 %v1917
        %v2085 = vunpack.c.l.b16 %v1918
        %v2086 = vunpack.c.l.b16 %v1919
        %v2087 = vunpack.c.l.b16 %v1920
        %v2088 = vunpack.c.l.b16 %v1921
        %v2089 = vunpack.c.l.b16 %v1922
        %v2090 = vunpack.c.l.b16 %v1923
        %v2091 = vunpack.c.l.b16 %v1924
        %v2092 = vunpack.c.l.b16 %v1925
        %v2093 = vunpack.c.l.b16 %v1926
        %v2094 = vunpack.c.l.b16 %v1927
        %v2095 = vunpack.c.l.b16 %v1928
        %v2096 = vunpack.c.l.b16 %v1929
        %v2097 = vunpack.c.l.b16 %v1930
        %v2098 = vunpack.c.l.b16 %v1931
        %v2099 = vunpack.c.l.b16 %v1932
        %v2100 = vunpack.c.l.b16 %v1933
        %v2101 = vunpack.c.l.b16 %v1934
        %v2102 = vunpack.c.l.b16 %v1935
        %v2103 = vunpack.c.l.b16 %v1936
        %v2104 = vunpack.c.l.b16 %v1937
        %v2105 = vunpack.c.l.b16 %v1938
        %v2106 = vunpack.c.l.b16 %v1939
        %v2107 = vunpack.c.l.b16 %v1940
        %v2108 = vunpack.c.l.b16 %v1941
        %v2109 = vunpack.c.l.b16 %v1942
        %v2110 = vunpack.c.l.b16 %v1943
        %v2111 = vunpack.c.l.b16 %v1944
        %v2112 = vunpack.c.l.b16 %v1945
        %v2113 = vunpack.c.l.b16 %v1946
        %v2114 = vunpack.c.l.b16 %v1947
        %v2115 = vunpack.c.l.b16 %v1948
        %v2116 = vunpack.c.l.b16 %v1949
        %v2117 = vunpack.c.l.b16 %v1950
        %v2118 = vunpack.c.l.b16 %v1951
        %v2119 = vunpack.c.l.b16 %v1952
        %v2120 = vunpack.c.l.b16 %v1953
        %v2121 = vunpack.c.l.b16 %v1954
        %v2122 = vunpack.c.l.b16 %v1955
        %v2123 = vunpack.c.l.b16 %v1956
        %v2124 = vunpack.c.l.b16 %v1957
        %v2125 = vunpack.c.l.b16 %v1958
        %v2126 = vunpack.c.l.b16 %v1959
        %v2127 = vunpack.c.l.b16 %v1960
        %v2128 = vunpack.c.l.b16 %v1961
        %v2129 = vunpack.c.l.b16 %v1962
        %v2130 = vunpack.c.l.b16 %v1963
        %v2131 = vunpack.c.l.b16 %v1964
        %v2132 = vunpack.c.l.b16 %v1965
        %v2133 = vunpack.c.l.b16 %v1966
        %v2134 = vunpack.c.l.b16 %v1967
        %v2135 = vunpack.c.l.b16 %v1968
        %v2136 = vunpack.c.l.b16 %v1969
        %v2137 = vunpack.c.l.b16 %v1970
        %v2138 = vunpack.c.l.b16 %v1971
        %v2139 = vunpack.c.l.b16 %v1972
        %v2140 = vunpack.c.l.b16 %v1973
        %v2141 = vunpack.c.l.b16 %v1974
        %v2142 = vpack.c.b16 %v2063, %v2062
        %v2143 = vpack.c.b16 %v2065, %v2064
        %v2144 = vpack.c.b16 %v2067, %v2066
        %v2145 = vpack.c.b16 %v2069, %v2068
        %v2146 = vpack.c.b16 %v2071, %v2070
        %v2147 = vpack.c.b16 %v2073, %v2072
        %v2148 = vpack.c.b16 %v2075, %v2074
        %v2149 = vpack.c.b16 %v2077, %v2076
        %v2150 = vpack.c.b16 %v2079, %v2078
        %v2151 = vpack.c.b16 %v2081, %v2080
        %v2152 = vpack.c.b16 %v2083, %v2082
        %v2153 = vpack.c.b16 %v2085, %v2084
        %v2154 = vpack.c.b16 %v2087, %v2086
        %v2155 = vpack.c.b16 %v2089, %v2088
        %v2156 = vpack.c.b16 %v2091, %v2090
        %v2157 = vpack.c.b16 %v2093, %v2092
        %v2158 = vpack.c.b16 %v2095, %v2094
        %v2159 = vpack.c.b16 %v2097, %v2096
        %v2160 = vpack.c.b16 %v2099, %v2098
        %v2161 = vpack.c.b16 %v2101, %v2100
        %v2162 = vpack.c.b16 %v2103, %v2102
        %v2163 = vpack.c.b16 %v2105, %v2104
        %v2164 = vpack.c.b16 %v2107, %v2106
        %v2165 = vpack.c.b16 %v2109, %v2108
        %v2166 = vpack.c.b16 %v2111, %v2110
        %v2167 = vpack.c.b16 %v2113, %v2112
        %v2168 = vpack.c.b16 %v2115, %v2114
        %v2169 = vpack.c.b16 %v2117, %v2116
        %v2170 = vpack.c.b16 %v2119, %v2118
        %v2171 = vpack.c.b16 %v2121, %v2120
        %v2172 = vpack.c.b16 %v2123, %v2122
        %v2173 = vpack.c.b16 %v2125, %v2124
        %v2174 = vpack.c.b16 %v2127, %v2126
        %v2175 = vpack.c.b16 %v2129, %v2128
        %v2176 = vpack.c.b16 %v2131, %v2130
        %v2177 = vpack.c.b16 %v2133, %v2132
        %v2178 = vpack.c.b16 %v2135, %v2134
        %v2179 = vpack.c.b16 %v2137, %v2136
        %v2180 = vpack.c.b16 %v2139, %v2138
        %v2181 = vpack.c.b16 %v2141, %v2140
        %2222 = vmatprep.subr.bf16.mxu0 0
        %2223 = vmatpush1.bf16.msra.mxu0 %v2149
        %2224 = vmatprep.subr.bf16.mxu0 0
        %2225 = vmatpush1.bf16.msra.mxu0 %v2148
        %2226 = vmatprep.subr.bf16.mxu0 0
        %2227 = vmatpush1.bf16.msra.mxu0 %v2147
        %2228 = vmatprep.subr.bf16.mxu0 0
        %2229 = vmatpush1.bf16.msra.mxu0 %v2146
        %2230 = vmatprep.subr.bf16.mxu0 0
        %2231 = vmatpush1.bf16.msra.mxu0 %v2145
        %2232 = vmatprep.subr.bf16.mxu0 0
        %2233 = vmatpush1.bf16.msra.mxu0 %v2144
        %2234 = vmatprep.subr.bf16.mxu0 0
        %2235 = vmatpush1.bf16.msra.mxu0 %v2143
        %2236 = vmatprep.subr.bf16.mxu0 0
        %2237 = vmatpush1.bf16.msra.mxu0 %v2142
        %2238 = vmatprep.subr.bf16.mxu0 0
        %2239 = vmatpush2.bf16.msra.mxu0 %v2157
        %2240 = vmatprep.subr.bf16.mxu0 0
        %2241 = vmatpush2.bf16.msra.mxu0 %v2156
        %2242 = vmatprep.subr.bf16.mxu0 0
        %2243 = vmatpush2.bf16.msra.mxu0 %v2155
        %2244 = vmatprep.subr.bf16.mxu0 0
        %2245 = vmatpush2.bf16.msra.mxu0 %v2154
        %2246 = vmatprep.subr.bf16.mxu0 0
        %2247 = vmatpush2.bf16.msra.mxu0 %v2153
        %2248 = vmatprep.subr.bf16.mxu0 0
        %2249 = vmatpush2.bf16.msra.mxu0 %v2152
        %2250 = vmatprep.subr.bf16.mxu0 0
        %2251 = vmatpush2.bf16.msra.mxu0 %v2151
        %2252 = vmatprep.subr.bf16.mxu0 0
        %2253 = vmatpush2.bf16.msra.mxu0 %v2150
        %2254 = vmatprep.mubr.bf16.mxu0 %v1873
        %2255 = vmatmul.mubr.bf16.gmra.mxu0 %v1861
        %v2256 = vpop.f32.mrf.mxu0
        %v2257 = vadd.f32 %v1980, %v2256
        %v2258 = vpop.f32.mrf.mxu0
        %v2259 = vpop.f32.mrf.mxu0
        %v2260 = vadd.f32 %v1980, %v2259
        %v2261 = vpop.f32.mrf.mxu0
        %2262 = vdwg.mxu0
        %2263 = vmatprep.subr.bf16.mxu0 0
        %2264 = vmatpush1.bf16.msra.mxu0 %v2165
        %2265 = vmatprep.subr.bf16.mxu0 0
        %2266 = vmatpush1.bf16.msra.mxu0 %v2164
        %2267 = vmatprep.subr.bf16.mxu0 0
        %2268 = vmatpush1.bf16.msra.mxu0 %v2163
        %2269 = vmatprep.subr.bf16.mxu0 0
        %2270 = vmatpush1.bf16.msra.mxu0 %v2162
        %2271 = vmatprep.subr.bf16.mxu0 0
        %2272 = vmatpush1.bf16.msra.mxu0 %v2161
        %2273 = vmatprep.subr.bf16.mxu0 0
        %2274 = vmatpush1.bf16.msra.mxu0 %v2160
        %2275 = vmatprep.subr.bf16.mxu0 0
        %2276 = vmatpush1.bf16.msra.mxu0 %v2159
        %2277 = vmatprep.subr.bf16.mxu0 0
        %2278 = vmatpush1.bf16.msra.mxu0 %v2158
        %2279 = vmatprep.subr.bf16.mxu0 0
        %2280 = vmatpush2.bf16.msra.mxu0 %v2173
        %2281 = vmatprep.subr.bf16.mxu0 0
        %2282 = vmatpush2.bf16.msra.mxu0 %v2172
        %2283 = vmatprep.subr.bf16.mxu0 0
        %2284 = vmatpush2.bf16.msra.mxu0 %v2171
        %2285 = vmatprep.subr.bf16.mxu0 0
        %2286 = vmatpush2.bf16.msra.mxu0 %v2170
        %2287 = vmatprep.subr.bf16.mxu0 0
        %2288 = vmatpush2.bf16.msra.mxu0 %v2169
        %2289 = vmatprep.subr.bf16.mxu0 0
        %2290 = vmatpush2.bf16.msra.mxu0 %v2168
        %2291 = vmatprep.subr.bf16.mxu0 0
        %2292 = vmatpush2.bf16.msra.mxu0 %v2167
        %2293 = vmatprep.subr.bf16.mxu0 0
        %2294 = vmatpush2.bf16.msra.mxu0 %v2166
        %2295 = vmatprep.mubr.bf16.mxu0 %v1889
        %2296 = vmatmul.mubr.bf16.gmra.mxu0 %v1879
        %v2297 = vpop.f32.mrf.mxu0
        %v2298 = vadd.f32 %v2257, %v2297
        %v2299 = vpop.f32.mrf.mxu0
        %v2300 = vpop.f32.mrf.mxu0
        %v2301 = vadd.f32 %v2260, %v2300
        %v2302 = vpop.f32.mrf.mxu0
        %2303 = vdwg.mxu0
        %2304 = vmatprep.subr.bf16.mxu0 0
        %2305 = vmatpush1.bf16.msra.mxu0 %v2181
        %2306 = vmatprep.subr.bf16.mxu0 0
        %2307 = vmatpush1.bf16.msra.mxu0 %v2180
        %2308 = vmatprep.subr.bf16.mxu0 0
        %2309 = vmatpush1.bf16.msra.mxu0 %v2179
        %2310 = vmatprep.subr.bf16.mxu0 0
        %2311 = vmatpush1.bf16.msra.mxu0 %v2178
        %2312 = vmatprep.subr.bf16.mxu0 0
        %2313 = vmatpush1.bf16.msra.mxu0 %v2177
        %2314 = vmatprep.subr.bf16.mxu0 0
        %2315 = vmatpush1.bf16.msra.mxu0 %v2176
        %2316 = vmatprep.subr.bf16.mxu0 0
        %2317 = vmatpush1.bf16.msra.mxu0 %v2175
        %2318 = vmatprep.subr.bf16.mxu0 0
        %2319 = vmatpush1.bf16.msra.mxu0 %v2174
        %2320 = vmatprep.subr.bf16.mxu0 0
        %2321 = vmatpush2.bf16.msra.mxu0 0
        %2322 = vmatprep.subr.bf16.mxu0 0
        %2323 = vmatpush2.bf16.msra.mxu0 0
        %2324 = vmatprep.subr.bf16.mxu0 0
        %2325 = vmatpush2.bf16.msra.mxu0 0
        %2326 = vmatprep.subr.bf16.mxu0 0
        %2327 = vmatpush2.bf16.msra.mxu0 0
        %2328 = vmatprep.subr.bf16.mxu0 0
        %2329 = vmatpush2.bf16.msra.mxu0 0
        %2330 = vmatprep.subr.bf16.mxu0 0
        %2331 = vmatpush2.bf16.msra.mxu0 0
        %2332 = vmatprep.subr.bf16.mxu0 0
        %2333 = vmatpush2.bf16.msra.mxu0 0
        %2334 = vmatprep.subr.bf16.mxu0 0
        %2335 = vmatpush2.bf16.msra.mxu0 0
        %2336 = vmatprep.mubr.bf16.mxu0 0
        %2337 = vmatmul.mubr.bf16.gmra.mxu0 %v1893
        %v2338 = vpop.f32.mrf.mxu0
        %v2339 = vadd.f32 %v2298, %v2338
        %v2340 = vpop.f32.mrf.mxu0
        %v2341 = vpop.f32.mrf.mxu0
        %v2342 = vadd.f32 %v2301, %v2341
        %v2343 = vpop.f32.mrf.mxu0
        %2344 = vdwg.mxu0
        %v2345 = vmax.f32 %v2339, 0.0
        %v2346 = vmax.f32 %v2342, 0.0
        %v2347 = vpack.c.bf16 %v2346, %v2345
        %v2349 = vshrl.u32 %v2347, 16
        %v2351 = vrot.slane %v2349, 7
        %v2352 = vshll.u32 %v2347, 16
        %v2354 = vor.u32 %v2351, %v2352
        %v2357 = vsel %vm1240, 0, %v2354
        %v2358 = vsel %vm1240, %v2351, 0
        %v2360 = vshrl.u32 %v2357, 16
        %v2362 = vshll.u32 %v2357, 16
        %v2364 = vrot.slane %v2362, 1
        %v2365 = vor.u32 %v2360, %v2364
        %v2367 = vshll.u32 %v2358, 16
        %v2369 = vrot.slane %v2367, 1
        %v2370 = vsel %vm780, %v2365, %v2369
        %v2374 = vrot.slane %v2357, 1
        %v2375 = vrot.slane %v2358, 1
        %v2376 = vsel %vm797, %v2374, %v2375
        %v2378 = vld [vmem:[%s13] sm:$0xf]
        %v2379 = vld [vmem:[%s13 + $0x4] sm:$0xf]
        %v2380 = vld [vmem:[%s13 + $0x8] sm:$0xf]
        %v2381 = vld [vmem:[%s13 + $0xc] sm:$0xf]
        %v2382 = vld [vmem:[%s13 + $0x10] sm:$0xf]
        %v2383 = vld [vmem:[%s13 + $0x14] sm:$0xf]
        %v2384 = vld [vmem:[%s13 + $0x18] sm:$0xf]
        %v2385 = vld [vmem:[%s13 + $0x1c] sm:$0xf]
        %v2386 = vld [vmem:[%s13 + $0x20] sm:$0xf]
        %v2387 = vld [vmem:[%s13 + $0x24] sm:$0xf]
        %v2388 = vld [vmem:[%s13 + $0x28] sm:$0xf]
        %v2389 = vld [vmem:[%s13 + $0x2c] sm:$0xf]
        %v2390 = vld [vmem:[%s13 + $0x30] sm:$0xf]
        %v2391 = vld [vmem:[%s13 + $0x34] sm:$0xf]
        %v2392 = vld [vmem:[%s13 + $0x38] sm:$0xf]
        %v2393 = vld [vmem:[%s13 + $0x3c] sm:$0xf]
        %v2394 = vld [vmem:[%s13 + $0x40] sm:$0xf]
        %v2395 = vld [vmem:[%s13 + $0x44] sm:$0xf]
        %v2396 = vld [vmem:[%s13 + $0x48] sm:$0xf]
        %v2397 = vld [vmem:[%s13 + $0x4c] sm:$0xf]
        %v2398 = vld [vmem:[%s13 + $0x50] sm:$0xf]
        %v2399 = vld [vmem:[%s13 + $0x54] sm:$0xf]
        %v2400 = vld [vmem:[%s13 + $0x58] sm:$0xf]
        %v2401 = vld [vmem:[%s13 + $0x5c] sm:$0xf]
        %v2402 = vld [vmem:[%s13 + $0x60] sm:$0xf]
        %v2403 = vld [vmem:[%s13 + $0x64] sm:$0xf]
        %v2404 = vld [vmem:[%s13 + $0x68] sm:$0xf]
        %v2405 = vld [vmem:[%s13 + $0x6c] sm:$0xf]
        %v2406 = vld [vmem:[%s13 + $0x70] sm:$0xf]
        %v2407 = vld [vmem:[%s13 + $0x74] sm:$0xf]
        %v2408 = vld [vmem:[%s13 + $0x78] sm:$0xf]
        %v2409 = vld [vmem:[%s13 + $0x7c] sm:$0xf]
        %v2410 = vld [vmem:[%s13 + $0x80] sm:$0xf]
        %v2411 = vld [vmem:[%s13 + $0x84] sm:$0xf]
        %v2412 = vld [vmem:[%s13 + $0x88] sm:$0xf]
        %v2413 = vld [vmem:[%s13 + $0x8c] sm:$0xf]
        %v2414 = vld [vmem:[%s13 + $0x90] sm:$0xf]
        %v2415 = vld [vmem:[%s13 + $0x94] sm:$0xf]
        %v2416 = vld [vmem:[%s13 + $0x98] sm:$0xf]
        %v2417 = vld [vmem:[%s13 + $0x9c] sm:$0xf]
        %v2418 = vld [vmem:[%s13 + $0xa0] sm:$0xf]
        %v2419 = vld [vmem:[%s13 + $0xa4] sm:$0xf]
        %v2420 = vld [vmem:[%s13 + $0xa8] sm:$0xf]
        %v2421 = vld [vmem:[%s13 + $0xac] sm:$0xf]
        %v2422 = vld [vmem:[%s13 + $0xb0] sm:$0xf]
        %v2423 = vld [vmem:[%s13 + $0xb4] sm:$0xf]
        %v2424 = vld [vmem:[%s13 + $0xb8] sm:$0xf]
        %v2425 = vld [vmem:[%s13 + $0xbc] sm:$0xf]
        %v2426 = vld [vmem:[%s14] sm:$0x1]
        %v2428 = vlaneseq
        %v2429 = vshrl.u32 %v2428, 7
        %v2430 = vsub.s32 0, %v2429
        %v2431 = vrot.slane %v2426, %v2430
        %v2481 = vunpack.c.l.b16 %v2378
        %v2482 = vunpack.c.l.b16 %v2379
        %v2483 = vunpack.c.l.b16 %v2380
        %v2484 = vunpack.c.l.b16 %v2381
        %v2485 = vunpack.c.l.b16 %v2382
        %v2486 = vunpack.c.l.b16 %v2383
        %v2487 = vunpack.c.l.b16 %v2384
        %v2488 = vunpack.c.l.b16 %v2385
        %v2489 = vunpack.c.l.b16 %v2386
        %v2490 = vunpack.c.l.b16 %v2387
        %v2491 = vunpack.c.l.b16 %v2388
        %v2492 = vunpack.c.l.b16 %v2389
        %v2493 = vunpack.c.l.b16 %v2390
        %v2494 = vunpack.c.l.b16 %v2391
        %v2495 = vunpack.c.l.b16 %v2392
        %v2496 = vunpack.c.l.b16 %v2393
        %v2497 = vunpack.c.l.b16 %v2394
        %v2498 = vunpack.c.l.b16 %v2395
        %v2499 = vunpack.c.l.b16 %v2396
        %v2500 = vunpack.c.l.b16 %v2397
        %v2501 = vunpack.c.l.b16 %v2398
        %v2502 = vunpack.c.l.b16 %v2399
        %v2503 = vunpack.c.l.b16 %v2400
        %v2504 = vunpack.c.l.b16 %v2401
        %v2505 = vunpack.c.l.b16 %v2402
        %v2506 = vunpack.c.l.b16 %v2403
        %v2507 = vunpack.c.l.b16 %v2404
        %v2508 = vunpack.c.l.b16 %v2405
        %v2509 = vunpack.c.l.b16 %v2406
        %v2510 = vunpack.c.l.b16 %v2407
        %v2511 = vunpack.c.l.b16 %v2408
        %v2512 = vunpack.c.l.b16 %v2409
        %v2513 = vunpack.c.l.b16 %v2410
        %v2514 = vunpack.c.l.b16 %v2411
        %v2515 = vunpack.c.l.b16 %v2412
        %v2516 = vunpack.c.l.b16 %v2413
        %v2517 = vunpack.c.l.b16 %v2414
        %v2518 = vunpack.c.l.b16 %v2415
        %v2519 = vunpack.c.l.b16 %v2416
        %v2520 = vunpack.c.l.b16 %v2417
        %v2521 = vunpack.c.l.b16 %v2418
        %v2522 = vunpack.c.l.b16 %v2419
        %v2523 = vunpack.c.l.b16 %v2420
        %v2524 = vunpack.c.l.b16 %v2421
        %v2525 = vunpack.c.l.b16 %v2422
        %v2526 = vunpack.c.l.b16 %v2423
        %v2527 = vunpack.c.l.b16 %v2424
        %v2528 = vunpack.c.l.b16 %v2425
        %v2529 = vpack.c.b16 %v2482, %v2481
        %v2530 = vpack.c.b16 %v2484, %v2483
        %v2531 = vpack.c.b16 %v2486, %v2485
        %v2532 = vpack.c.b16 %v2488, %v2487
        %v2533 = vpack.c.b16 %v2490, %v2489
        %v2534 = vpack.c.b16 %v2492, %v2491
        %v2535 = vpack.c.b16 %v2494, %v2493
        %v2536 = vpack.c.b16 %v2496, %v2495
        %v2537 = vpack.c.b16 %v2498, %v2497
        %v2538 = vpack.c.b16 %v2500, %v2499
        %v2539 = vpack.c.b16 %v2502, %v2501
        %v2540 = vpack.c.b16 %v2504, %v2503
        %v2541 = vpack.c.b16 %v2506, %v2505
        %v2542 = vpack.c.b16 %v2508, %v2507
        %v2543 = vpack.c.b16 %v2510, %v2509
        %v2544 = vpack.c.b16 %v2512, %v2511
        %v2545 = vpack.c.b16 %v2514, %v2513
        %v2546 = vpack.c.b16 %v2516, %v2515
        %v2547 = vpack.c.b16 %v2518, %v2517
        %v2548 = vpack.c.b16 %v2520, %v2519
        %v2549 = vpack.c.b16 %v2522, %v2521
        %v2550 = vpack.c.b16 %v2524, %v2523
        %v2551 = vpack.c.b16 %v2526, %v2525
        %v2552 = vpack.c.b16 %v2528, %v2527
        %2577 = vmatprep.subr.bf16.mxu0 0
        %2578 = vmatpush1.bf16.msra.mxu0 %v2536
        %2579 = vmatprep.subr.bf16.mxu0 0
        %2580 = vmatpush1.bf16.msra.mxu0 %v2535
        %2581 = vmatprep.subr.bf16.mxu0 0
        %2582 = vmatpush1.bf16.msra.mxu0 %v2534
        %2583 = vmatprep.subr.bf16.mxu0 0
        %2584 = vmatpush1.bf16.msra.mxu0 %v2533
        %2585 = vmatprep.subr.bf16.mxu0 0
        %2586 = vmatpush1.bf16.msra.mxu0 %v2532
        %2587 = vmatprep.subr.bf16.mxu0 0
        %2588 = vmatpush1.bf16.msra.mxu0 %v2531
        %2589 = vmatprep.subr.bf16.mxu0 0
        %2590 = vmatpush1.bf16.msra.mxu0 %v2530
        %2591 = vmatprep.subr.bf16.mxu0 0
        %2592 = vmatpush1.bf16.msra.mxu0 %v2529
        %2593 = vmatprep.subr.bf16.mxu0 0
        %2594 = vmatpush2.bf16.msra.mxu0 %v2544
        %2595 = vmatprep.subr.bf16.mxu0 0
        %2596 = vmatpush2.bf16.msra.mxu0 %v2543
        %2597 = vmatprep.subr.bf16.mxu0 0
        %2598 = vmatpush2.bf16.msra.mxu0 %v2542
        %2599 = vmatprep.subr.bf16.mxu0 0
        %2600 = vmatpush2.bf16.msra.mxu0 %v2541
        %2601 = vmatprep.subr.bf16.mxu0 0
        %2602 = vmatpush2.bf16.msra.mxu0 %v2540
        %2603 = vmatprep.subr.bf16.mxu0 0
        %2604 = vmatpush2.bf16.msra.mxu0 %v2539
        %2605 = vmatprep.subr.bf16.mxu0 0
        %2606 = vmatpush2.bf16.msra.mxu0 %v2538
        %2607 = vmatprep.subr.bf16.mxu0 0
        %2608 = vmatpush2.bf16.msra.mxu0 %v2537
        %2609 = vmatprep.mubr.bf16.mxu0 %v2370
        %2610 = vmatmul.mubr.bf16.gmra.mxu0 %v2357
        %v2611 = vpop.f32.mrf.mxu0
        %v2612 = vadd.f32 %v2431, %v2611
        %v2613 = vpop.f32.mrf.mxu0
        %v2614 = vpop.f32.mrf.mxu0
        %v2615 = vadd.f32 %v2431, %v2614
        %v2616 = vpop.f32.mrf.mxu0
        %2617 = vdwg.mxu0
        %2618 = vmatprep.subr.bf16.mxu0 0
        %2619 = vmatpush1.bf16.msra.mxu0 %v2552
        %2620 = vmatprep.subr.bf16.mxu0 0
        %2621 = vmatpush1.bf16.msra.mxu0 %v2551
        %2622 = vmatprep.subr.bf16.mxu0 0
        %2623 = vmatpush1.bf16.msra.mxu0 %v2550
        %2624 = vmatprep.subr.bf16.mxu0 0
        %2625 = vmatpush1.bf16.msra.mxu0 %v2549
        %2626 = vmatprep.subr.bf16.mxu0 0
        %2627 = vmatpush1.bf16.msra.mxu0 %v2548
        %2628 = vmatprep.subr.bf16.mxu0 0
        %2629 = vmatpush1.bf16.msra.mxu0 %v2547
        %2630 = vmatprep.subr.bf16.mxu0 0
        %2631 = vmatpush1.bf16.msra.mxu0 %v2546
        %2632 = vmatprep.subr.bf16.mxu0 0
        %2633 = vmatpush1.bf16.msra.mxu0 %v2545
        %2634 = vmatprep.subr.bf16.mxu0 0
        %2635 = vmatpush2.bf16.msra.mxu0 0
        %2636 = vmatprep.subr.bf16.mxu0 0
        %2637 = vmatpush2.bf16.msra.mxu0 0
        %2638 = vmatprep.subr.bf16.mxu0 0
        %2639 = vmatpush2.bf16.msra.mxu0 0
        %2640 = vmatprep.subr.bf16.mxu0 0
        %2641 = vmatpush2.bf16.msra.mxu0 0
        %2642 = vmatprep.subr.bf16.mxu0 0
        %2643 = vmatpush2.bf16.msra.mxu0 0
        %2644 = vmatprep.subr.bf16.mxu0 0
        %2645 = vmatpush2.bf16.msra.mxu0 0
        %2646 = vmatprep.subr.bf16.mxu0 0
        %2647 = vmatpush2.bf16.msra.mxu0 0
        %2648 = vmatprep.subr.bf16.mxu0 0
        %2649 = vmatpush2.bf16.msra.mxu0 0
        %2650 = vmatprep.mubr.bf16.mxu0 0
        %2651 = vmatmul.mubr.bf16.gmra.mxu0 %v2376
        %v2652 = vpop.f32.mrf.mxu0
        %v2653 = vadd.f32 %v2612, %v2652
        %v2654 = vpop.f32.mrf.mxu0
        %v2655 = vpop.f32.mrf.mxu0
        %v2656 = vadd.f32 %v2615, %v2655
        %v2657 = vpop.f32.mrf.mxu0
        %2658 = vdwg.mxu0
        %v2659 = vld [vmem:[%s15] sm:$0xf]
        %v2660 = vld [vmem:[%s15 + $0x4] sm:$0xf]
        %v2661 = vld [vmem:[%s15 + $0x8] sm:$0xf]
        %v2662 = vld [vmem:[%s15 + $0xc] sm:$0xf]
        %v2663 = vld [vmem:[%s15 + $0x10] sm:$0xf]
        %v2664 = vld [vmem:[%s15 + $0x14] sm:$0xf]
        %v2665 = vld [vmem:[%s15 + $0x18] sm:$0xf]
        %v2666 = vld [vmem:[%s15 + $0x1c] sm:$0xf]
        %v2667 = vld [vmem:[%s16] sm:$0x1]
        %v2669 = vlaneseq
        %v2670 = vshrl.u32 %v2669, 7
        %v2671 = vsub.s32 0, %v2670
        %v2672 = vrot.slane %v2667, %v2671
        %v2682 = vunpack.c.l.b16 %v2659
        %v2683 = vunpack.c.l.b16 %v2660
        %v2684 = vunpack.c.l.b16 %v2661
        %v2685 = vunpack.c.l.b16 %v2662
        %v2686 = vunpack.c.l.b16 %v2663
        %v2687 = vunpack.c.l.b16 %v2664
        %v2688 = vunpack.c.l.b16 %v2665
        %v2689 = vunpack.c.l.b16 %v2666
        %v2690 = vpack.c.b16 %v2683, %v2682
        %v2691 = vpack.c.b16 %v2685, %v2684
        %v2692 = vpack.c.b16 %v2687, %v2686
        %v2693 = vpack.c.b16 %v2689, %v2688
        %v2698 = vsel %vm966, %v1471, 0
        %2700 = vmatprep.subr.bf16.mxu0 0
        %2701 = vmatpush1.bf16.msra.mxu0 0
        %2702 = vmatprep.subr.bf16.mxu0 0
        %2703 = vmatpush1.bf16.msra.mxu0 0
        %2704 = vmatprep.subr.bf16.mxu0 0
        %2705 = vmatpush1.bf16.msra.mxu0 0
        %2706 = vmatprep.subr.bf16.mxu0 0
        %2707 = vmatpush1.bf16.msra.mxu0 0
        %2708 = vmatprep.subr.bf16.mxu0 0
        %2709 = vmatpush1.bf16.msra.mxu0 %v2693
        %2710 = vmatprep.subr.bf16.mxu0 0
        %2711 = vmatpush1.bf16.msra.mxu0 %v2692
        %2712 = vmatprep.subr.bf16.mxu0 0
        %2713 = vmatpush1.bf16.msra.mxu0 %v2691
        %2714 = vmatprep.subr.bf16.mxu0 0
        %2715 = vmatpush1.bf16.msra.mxu0 %v2690
        %2716 = vmatprep.subr.bf16.mxu0 0
        %2717 = vmatpush2.bf16.msra.mxu0 0
        %2718 = vmatprep.subr.bf16.mxu0 0
        %2719 = vmatpush2.bf16.msra.mxu0 0
        %2720 = vmatprep.subr.bf16.mxu0 0
        %2721 = vmatpush2.bf16.msra.mxu0 0
        %2722 = vmatprep.subr.bf16.mxu0 0
        %2723 = vmatpush2.bf16.msra.mxu0 0
        %2724 = vmatprep.subr.bf16.mxu0 0
        %2725 = vmatpush2.bf16.msra.mxu0 0
        %2726 = vmatprep.subr.bf16.mxu0 0
        %2727 = vmatpush2.bf16.msra.mxu0 0
        %2728 = vmatprep.subr.bf16.mxu0 0
        %2729 = vmatpush2.bf16.msra.mxu0 0
        %2730 = vmatprep.subr.bf16.mxu0 0
        %2731 = vmatpush2.bf16.msra.mxu0 0
        %2732 = vmatprep.mubr.bf16.mxu0 0
        %2733 = vmatmul.mubr.bf16.gmra.mxu0 %v2698
        %v2734 = vpop.f32.mrf.mxu0
        %v2735 = vadd.f32 %v2672, %v2734
        %v2736 = vpop.f32.mrf.mxu0
        %v2737 = vpop.f32.mrf.mxu0
        %v2738 = vadd.f32 %v2672, %v2737
        %v2739 = vpop.f32.mrf.mxu0
        %2740 = vdwg.mxu0
        %v2741 = vadd.f32 %v2653, %v2735
        %v2742 = vadd.f32 %v2656, %v2738
        %v2743 = vmax.f32 %v2741, 0.0
        %v2744 = vmax.f32 %v2742, 0.0
        %v2745 = vpack.c.bf16 %v2744, %v2743
        %v2747 = vshrl.u32 %v2745, 16
        %v2749 = vrot.slane %v2747, 6
        %v2750 = vshll.u32 %v2745, 16
        %v2752 = vrot.slane %v2750, 7
        %v2753 = vor.u32 %v2749, %v2752
        %v2755 = vsel %vm777, 0, %v2753
        %v2756 = vsel %vm777, %v2753, 0
        %v2758 = vshrl.u32 %v2755, 16
        %v2760 = vshll.u32 %v2755, 16
        %v2762 = vrot.slane %v2760, 1
        %v2763 = vor.u32 %v2758, %v2762
        %v2765 = vshll.u32 %v2756, 16
        %v2767 = vrot.slane %v2765, 1
        %v2768 = vsel %vm780, %v2763, %v2767
        %v2772 = vrot.slane %v2755, 1
        %v2773 = vrot.slane %v2756, 1
        %v2774 = vsel %vm797, %v2772, %v2773
        %v2776 = vrot.slane %v2758, 1
        %v2777 = vrot.slane %v2760, 2
        %v2778 = vor.u32 %v2776, %v2777
        %v2779 = vshrl.u32 %v2756, 16
        %v2781 = vrot.slane %v2779, 1
        %v2782 = vrot.slane %v2765, 2
        %v2783 = vor.u32 %v2781, %v2782
        %v2784 = vsel %vm803, %v2778, %v2783
        %v2786 = vrot.slane %v2755, 2
        %v2787 = vrot.slane %v2756, 2
        %v2788 = vsel %vm815, %v2786, %v2787
        %v2790 = vrot.slane %v2758, 2
        %v2791 = vrot.slane %v2760, 3
        %v2792 = vor.u32 %v2790, %v2791
        %v2793 = vrot.slane %v2779, 2
        %v2794 = vrot.slane %v2765, 3
        %v2795 = vor.u32 %v2793, %v2794
        %v2796 = vsel %vm821, %v2792, %v2795
        %v2798 = vrot.slane %v2755, 3
        %v2799 = vrot.slane %v2756, 3
        %v2800 = vsel %vm831, %v2798, %v2799
        %v2802 = vld [vmem:[%s17] sm:$0xf]
        %v2803 = vld [vmem:[%s17 + $0x4] sm:$0xf]
        %v2804 = vld [vmem:[%s17 + $0x8] sm:$0xf]
        %v2805 = vld [vmem:[%s17 + $0xc] sm:$0xf]
        %v2806 = vld [vmem:[%s17 + $0x10] sm:$0xf]
        %v2807 = vld [vmem:[%s17 + $0x14] sm:$0xf]
        %v2808 = vld [vmem:[%s17 + $0x18] sm:$0xf]
        %v2809 = vld [vmem:[%s17 + $0x1c] sm:$0xf]
        %v2810 = vld [vmem:[%s17 + $0x20] sm:$0xf]
        %v2811 = vld [vmem:[%s17 + $0x24] sm:$0xf]
        %v2812 = vld [vmem:[%s17 + $0x28] sm:$0xf]
        %v2813 = vld [vmem:[%s17 + $0x2c] sm:$0xf]
        %v2814 = vld [vmem:[%s17 + $0x30] sm:$0xf]
        %v2815 = vld [vmem:[%s17 + $0x34] sm:$0xf]
        %v2816 = vld [vmem:[%s17 + $0x38] sm:$0xf]
        %v2817 = vld [vmem:[%s17 + $0x3c] sm:$0xf]
        %v2818 = vld [vmem:[%s17 + $0x40] sm:$0xf]
        %v2819 = vld [vmem:[%s17 + $0x44] sm:$0xf]
        %v2820 = vld [vmem:[%s17 + $0x48] sm:$0xf]
        %v2821 = vld [vmem:[%s17 + $0x4c] sm:$0xf]
        %v2822 = vld [vmem:[%s17 + $0x50] sm:$0xf]
        %v2823 = vld [vmem:[%s17 + $0x54] sm:$0xf]
        %v2824 = vld [vmem:[%s17 + $0x58] sm:$0xf]
        %v2825 = vld [vmem:[%s17 + $0x5c] sm:$0xf]
        %v2826 = vld [vmem:[%s17 + $0x60] sm:$0xf]
        %v2827 = vld [vmem:[%s17 + $0x64] sm:$0xf]
        %v2828 = vld [vmem:[%s17 + $0x68] sm:$0xf]
        %v2829 = vld [vmem:[%s17 + $0x6c] sm:$0xf]
        %v2830 = vld [vmem:[%s17 + $0x70] sm:$0xf]
        %v2831 = vld [vmem:[%s17 + $0x74] sm:$0xf]
        %v2832 = vld [vmem:[%s17 + $0x78] sm:$0xf]
        %v2833 = vld [vmem:[%s17 + $0x7c] sm:$0xf]
        %v2834 = vld [vmem:[%s17 + $0x80] sm:$0xf]
        %v2835 = vld [vmem:[%s17 + $0x84] sm:$0xf]
        %v2836 = vld [vmem:[%s17 + $0x88] sm:$0xf]
        %v2837 = vld [vmem:[%s17 + $0x8c] sm:$0xf]
        %v2838 = vld [vmem:[%s17 + $0x90] sm:$0xf]
        %v2839 = vld [vmem:[%s17 + $0x94] sm:$0xf]
        %v2840 = vld [vmem:[%s17 + $0x98] sm:$0xf]
        %v2841 = vld [vmem:[%s17 + $0x9c] sm:$0xf]
        %v2842 = vld [vmem:[%s17 + $0xa0] sm:$0xf]
        %v2843 = vld [vmem:[%s17 + $0xa4] sm:$0xf]
        %v2844 = vld [vmem:[%s17 + $0xa8] sm:$0xf]
        %v2845 = vld [vmem:[%s17 + $0xac] sm:$0xf]
        %v2846 = vld [vmem:[%s17 + $0xb0] sm:$0xf]
        %v2847 = vld [vmem:[%s17 + $0xb4] sm:$0xf]
        %v2848 = vld [vmem:[%s17 + $0xb8] sm:$0xf]
        %v2849 = vld [vmem:[%s17 + $0xbc] sm:$0xf]
        %v2850 = vld [vmem:[%s17 + $0xc0] sm:$0xf]
        %v2851 = vld [vmem:[%s17 + $0xc4] sm:$0xf]
        %v2852 = vld [vmem:[%s17 + $0xc8] sm:$0xf]
        %v2853 = vld [vmem:[%s17 + $0xcc] sm:$0xf]
        %v2854 = vld [vmem:[%s17 + $0xd0] sm:$0xf]
        %v2855 = vld [vmem:[%s17 + $0xd4] sm:$0xf]
        %v2856 = vld [vmem:[%s17 + $0xd8] sm:$0xf]
        %v2857 = vld [vmem:[%s17 + $0xdc] sm:$0xf]
        %v2858 = vld [vmem:[%s17 + $0xe0] sm:$0xf]
        %v2859 = vld [vmem:[%s17 + $0xe4] sm:$0xf]
        %v2860 = vld [vmem:[%s17 + $0xe8] sm:$0xf]
        %v2861 = vld [vmem:[%s17 + $0xec] sm:$0xf]
        %v2862 = vld [vmem:[%s17 + $0xf0] sm:$0xf]
        %v2863 = vld [vmem:[%s17 + $0xf4] sm:$0xf]
        %v2864 = vld [vmem:[%s17 + $0xf8] sm:$0xf]
        %v2865 = vld [vmem:[%s17 + $0xfc] sm:$0xf]
        %v2866 = vld [vmem:[%s17 + $0x100] sm:$0xf]
        %v2867 = vld [vmem:[%s17 + $0x104] sm:$0xf]
        %v2868 = vld [vmem:[%s17 + $0x108] sm:$0xf]
        %v2869 = vld [vmem:[%s17 + $0x10c] sm:$0xf]
        %v2870 = vld [vmem:[%s17 + $0x110] sm:$0xf]
        %v2871 = vld [vmem:[%s17 + $0x114] sm:$0xf]
        %v2872 = vld [vmem:[%s17 + $0x118] sm:$0xf]
        %v2873 = vld [vmem:[%s17 + $0x11c] sm:$0xf]
        %v2874 = vld [vmem:[%s17 + $0x120] sm:$0xf]
        %v2875 = vld [vmem:[%s17 + $0x124] sm:$0xf]
        %v2876 = vld [vmem:[%s17 + $0x128] sm:$0xf]
        %v2877 = vld [vmem:[%s17 + $0x12c] sm:$0xf]
        %v2878 = vld [vmem:[%s17 + $0x130] sm:$0xf]
        %v2879 = vld [vmem:[%s17 + $0x134] sm:$0xf]
        %v2880 = vld [vmem:[%s17 + $0x138] sm:$0xf]
        %v2881 = vld [vmem:[%s17 + $0x13c] sm:$0xf]
        %v2882 = vld [vmem:[%s17 + $0x140] sm:$0xf]
        %v2883 = vld [vmem:[%s17 + $0x144] sm:$0xf]
        %v2884 = vld [vmem:[%s17 + $0x148] sm:$0xf]
        %v2885 = vld [vmem:[%s17 + $0x14c] sm:$0xf]
        %v2886 = vld [vmem:[%s17 + $0x150] sm:$0xf]
        %v2887 = vld [vmem:[%s17 + $0x154] sm:$0xf]
        %v2888 = vld [vmem:[%s17 + $0x158] sm:$0xf]
        %v2889 = vld [vmem:[%s17 + $0x15c] sm:$0xf]
        %v2890 = vld [vmem:[%s17 + $0x160] sm:$0xf]
        %v2891 = vld [vmem:[%s17 + $0x164] sm:$0xf]
        %v2892 = vld [vmem:[%s17 + $0x168] sm:$0xf]
        %v2893 = vld [vmem:[%s17 + $0x16c] sm:$0xf]
        %v2894 = vld [vmem:[%s17 + $0x170] sm:$0xf]
        %v2895 = vld [vmem:[%s17 + $0x174] sm:$0xf]
        %v2896 = vld [vmem:[%s17 + $0x178] sm:$0xf]
        %v2897 = vld [vmem:[%s17 + $0x17c] sm:$0xf]
        %v2898 = vld [vmem:[%s17 + $0x180] sm:$0xf]
        %v2899 = vld [vmem:[%s17 + $0x184] sm:$0xf]
        %v2900 = vld [vmem:[%s17 + $0x188] sm:$0xf]
        %v2901 = vld [vmem:[%s17 + $0x18c] sm:$0xf]
        %v2902 = vld [vmem:[%s17 + $0x190] sm:$0xf]
        %v2903 = vld [vmem:[%s17 + $0x194] sm:$0xf]
        %v2904 = vld [vmem:[%s17 + $0x198] sm:$0xf]
        %v2905 = vld [vmem:[%s17 + $0x19c] sm:$0xf]
        %v2906 = vld [vmem:[%s17 + $0x1a0] sm:$0xf]
        %v2907 = vld [vmem:[%s17 + $0x1a4] sm:$0xf]
        %v2908 = vld [vmem:[%s17 + $0x1a8] sm:$0xf]
        %v2909 = vld [vmem:[%s17 + $0x1ac] sm:$0xf]
        %v2910 = vld [vmem:[%s17 + $0x1b0] sm:$0xf]
        %v2911 = vld [vmem:[%s17 + $0x1b4] sm:$0xf]
        %v2912 = vld [vmem:[%s17 + $0x1b8] sm:$0xf]
        %v2913 = vld [vmem:[%s17 + $0x1bc] sm:$0xf]
        %v2914 = vld [vmem:[%s18] sm:$0x1]
        %v2916 = vlaneseq
        %v2917 = vshrl.u32 %v2916, 7
        %v2918 = vsub.s32 0, %v2917
        %v2919 = vrot.slane %v2914, %v2918
        %v3033 = vunpack.c.l.b16 %v2802
        %v3034 = vunpack.c.l.b16 %v2803
        %v3035 = vunpack.c.l.b16 %v2804
        %v3036 = vunpack.c.l.b16 %v2805
        %v3037 = vunpack.c.l.b16 %v2806
        %v3038 = vunpack.c.l.b16 %v2807
        %v3039 = vunpack.c.l.b16 %v2808
        %v3040 = vunpack.c.l.b16 %v2809
        %v3041 = vunpack.c.l.b16 %v2810
        %v3042 = vunpack.c.l.b16 %v2811
        %v3043 = vunpack.c.l.b16 %v2812
        %v3044 = vunpack.c.l.b16 %v2813
        %v3045 = vunpack.c.l.b16 %v2814
        %v3046 = vunpack.c.l.b16 %v2815
        %v3047 = vunpack.c.l.b16 %v2816
        %v3048 = vunpack.c.l.b16 %v2817
        %v3049 = vunpack.c.l.b16 %v2818
        %v3050 = vunpack.c.l.b16 %v2819
        %v3051 = vunpack.c.l.b16 %v2820
        %v3052 = vunpack.c.l.b16 %v2821
        %v3053 = vunpack.c.l.b16 %v2822
        %v3054 = vunpack.c.l.b16 %v2823
        %v3055 = vunpack.c.l.b16 %v2824
        %v3056 = vunpack.c.l.b16 %v2825
        %v3057 = vunpack.c.l.b16 %v2826
        %v3058 = vunpack.c.l.b16 %v2827
        %v3059 = vunpack.c.l.b16 %v2828
        %v3060 = vunpack.c.l.b16 %v2829
        %v3061 = vunpack.c.l.b16 %v2830
        %v3062 = vunpack.c.l.b16 %v2831
        %v3063 = vunpack.c.l.b16 %v2832
        %v3064 = vunpack.c.l.b16 %v2833
        %v3065 = vunpack.c.l.b16 %v2834
        %v3066 = vunpack.c.l.b16 %v2835
        %v3067 = vunpack.c.l.b16 %v2836
        %v3068 = vunpack.c.l.b16 %v2837
        %v3069 = vunpack.c.l.b16 %v2838
        %v3070 = vunpack.c.l.b16 %v2839
        %v3071 = vunpack.c.l.b16 %v2840
        %v3072 = vunpack.c.l.b16 %v2841
        %v3073 = vunpack.c.l.b16 %v2842
        %v3074 = vunpack.c.l.b16 %v2843
        %v3075 = vunpack.c.l.b16 %v2844
        %v3076 = vunpack.c.l.b16 %v2845
        %v3077 = vunpack.c.l.b16 %v2846
        %v3078 = vunpack.c.l.b16 %v2847
        %v3079 = vunpack.c.l.b16 %v2848
        %v3080 = vunpack.c.l.b16 %v2849
        %v3081 = vunpack.c.l.b16 %v2850
        %v3082 = vunpack.c.l.b16 %v2851
        %v3083 = vunpack.c.l.b16 %v2852
        %v3084 = vunpack.c.l.b16 %v2853
        %v3085 = vunpack.c.l.b16 %v2854
        %v3086 = vunpack.c.l.b16 %v2855
        %v3087 = vunpack.c.l.b16 %v2856
        %v3088 = vunpack.c.l.b16 %v2857
        %v3089 = vunpack.c.l.b16 %v2858
        %v3090 = vunpack.c.l.b16 %v2859
        %v3091 = vunpack.c.l.b16 %v2860
        %v3092 = vunpack.c.l.b16 %v2861
        %v3093 = vunpack.c.l.b16 %v2862
        %v3094 = vunpack.c.l.b16 %v2863
        %v3095 = vunpack.c.l.b16 %v2864
        %v3096 = vunpack.c.l.b16 %v2865
        %v3097 = vunpack.c.l.b16 %v2866
        %v3098 = vunpack.c.l.b16 %v2867
        %v3099 = vunpack.c.l.b16 %v2868
        %v3100 = vunpack.c.l.b16 %v2869
        %v3101 = vunpack.c.l.b16 %v2870
        %v3102 = vunpack.c.l.b16 %v2871
        %v3103 = vunpack.c.l.b16 %v2872
        %v3104 = vunpack.c.l.b16 %v2873
        %v3105 = vunpack.c.l.b16 %v2874
        %v3106 = vunpack.c.l.b16 %v2875
        %v3107 = vunpack.c.l.b16 %v2876
        %v3108 = vunpack.c.l.b16 %v2877
        %v3109 = vunpack.c.l.b16 %v2878
        %v3110 = vunpack.c.l.b16 %v2879
        %v3111 = vunpack.c.l.b16 %v2880
        %v3112 = vunpack.c.l.b16 %v2881
        %v3113 = vunpack.c.l.b16 %v2882
        %v3114 = vunpack.c.l.b16 %v2883
        %v3115 = vunpack.c.l.b16 %v2884
        %v3116 = vunpack.c.l.b16 %v2885
        %v3117 = vunpack.c.l.b16 %v2886
        %v3118 = vunpack.c.l.b16 %v2887
        %v3119 = vunpack.c.l.b16 %v2888
        %v3120 = vunpack.c.l.b16 %v2889
        %v3121 = vunpack.c.l.b16 %v2890
        %v3122 = vunpack.c.l.b16 %v2891
        %v3123 = vunpack.c.l.b16 %v2892
        %v3124 = vunpack.c.l.b16 %v2893
        %v3125 = vunpack.c.l.b16 %v2894
        %v3126 = vunpack.c.l.b16 %v2895
        %v3127 = vunpack.c.l.b16 %v2896
        %v3128 = vunpack.c.l.b16 %v2897
        %v3129 = vunpack.c.l.b16 %v2898
        %v3130 = vunpack.c.l.b16 %v2899
        %v3131 = vunpack.c.l.b16 %v2900
        %v3132 = vunpack.c.l.b16 %v2901
        %v3133 = vunpack.c.l.b16 %v2902
        %v3134 = vunpack.c.l.b16 %v2903
        %v3135 = vunpack.c.l.b16 %v2904
        %v3136 = vunpack.c.l.b16 %v2905
        %v3137 = vunpack.c.l.b16 %v2906
        %v3138 = vunpack.c.l.b16 %v2907
        %v3139 = vunpack.c.l.b16 %v2908
        %v3140 = vunpack.c.l.b16 %v2909
        %v3141 = vunpack.c.l.b16 %v2910
        %v3142 = vunpack.c.l.b16 %v2911
        %v3143 = vunpack.c.l.b16 %v2912
        %v3144 = vunpack.c.l.b16 %v2913
        %v3145 = vpack.c.b16 %v3034, %v3033
        %v3146 = vpack.c.b16 %v3036, %v3035
        %v3147 = vpack.c.b16 %v3038, %v3037
        %v3148 = vpack.c.b16 %v3040, %v3039
        %v3149 = vpack.c.b16 %v3042, %v3041
        %v3150 = vpack.c.b16 %v3044, %v3043
        %v3151 = vpack.c.b16 %v3046, %v3045
        %v3152 = vpack.c.b16 %v3048, %v3047
        %v3153 = vpack.c.b16 %v3050, %v3049
        %v3154 = vpack.c.b16 %v3052, %v3051
        %v3155 = vpack.c.b16 %v3054, %v3053
        %v3156 = vpack.c.b16 %v3056, %v3055
        %v3157 = vpack.c.b16 %v3058, %v3057
        %v3158 = vpack.c.b16 %v3060, %v3059
        %v3159 = vpack.c.b16 %v3062, %v3061
        %v3160 = vpack.c.b16 %v3064, %v3063
        %v3161 = vpack.c.b16 %v3066, %v3065
        %v3162 = vpack.c.b16 %v3068, %v3067
        %v3163 = vpack.c.b16 %v3070, %v3069
        %v3164 = vpack.c.b16 %v3072, %v3071
        %v3165 = vpack.c.b16 %v3074, %v3073
        %v3166 = vpack.c.b16 %v3076, %v3075
        %v3167 = vpack.c.b16 %v3078, %v3077
        %v3168 = vpack.c.b16 %v3080, %v3079
        %v3169 = vpack.c.b16 %v3082, %v3081
        %v3170 = vpack.c.b16 %v3084, %v3083
        %v3171 = vpack.c.b16 %v3086, %v3085
        %v3172 = vpack.c.b16 %v3088, %v3087
        %v3173 = vpack.c.b16 %v3090, %v3089
        %v3174 = vpack.c.b16 %v3092, %v3091
        %v3175 = vpack.c.b16 %v3094, %v3093
        %v3176 = vpack.c.b16 %v3096, %v3095
        %v3177 = vpack.c.b16 %v3098, %v3097
        %v3178 = vpack.c.b16 %v3100, %v3099
        %v3179 = vpack.c.b16 %v3102, %v3101
        %v3180 = vpack.c.b16 %v3104, %v3103
        %v3181 = vpack.c.b16 %v3106, %v3105
        %v3182 = vpack.c.b16 %v3108, %v3107
        %v3183 = vpack.c.b16 %v3110, %v3109
        %v3184 = vpack.c.b16 %v3112, %v3111
        %v3185 = vpack.c.b16 %v3114, %v3113
        %v3186 = vpack.c.b16 %v3116, %v3115
        %v3187 = vpack.c.b16 %v3118, %v3117
        %v3188 = vpack.c.b16 %v3120, %v3119
        %v3189 = vpack.c.b16 %v3122, %v3121
        %v3190 = vpack.c.b16 %v3124, %v3123
        %v3191 = vpack.c.b16 %v3126, %v3125
        %v3192 = vpack.c.b16 %v3128, %v3127
        %v3193 = vpack.c.b16 %v3130, %v3129
        %v3194 = vpack.c.b16 %v3132, %v3131
        %v3195 = vpack.c.b16 %v3134, %v3133
        %v3196 = vpack.c.b16 %v3136, %v3135
        %v3197 = vpack.c.b16 %v3138, %v3137
        %v3198 = vpack.c.b16 %v3140, %v3139
        %v3199 = vpack.c.b16 %v3142, %v3141
        %v3200 = vpack.c.b16 %v3144, %v3143
        %3257 = vmatprep.subr.bf16.mxu0 0
        %3258 = vmatpush1.bf16.msra.mxu0 %v3152
        %3259 = vmatprep.subr.bf16.mxu0 0
        %3260 = vmatpush1.bf16.msra.mxu0 %v3151
        %3261 = vmatprep.subr.bf16.mxu0 0
        %3262 = vmatpush1.bf16.msra.mxu0 %v3150
        %3263 = vmatprep.subr.bf16.mxu0 0
        %3264 = vmatpush1.bf16.msra.mxu0 %v3149
        %3265 = vmatprep.subr.bf16.mxu0 0
        %3266 = vmatpush1.bf16.msra.mxu0 %v3148
        %3267 = vmatprep.subr.bf16.mxu0 0
        %3268 = vmatpush1.bf16.msra.mxu0 %v3147
        %3269 = vmatprep.subr.bf16.mxu0 0
        %3270 = vmatpush1.bf16.msra.mxu0 %v3146
        %3271 = vmatprep.subr.bf16.mxu0 0
        %3272 = vmatpush1.bf16.msra.mxu0 %v3145
        %3273 = vmatprep.subr.bf16.mxu0 0
        %3274 = vmatpush2.bf16.msra.mxu0 %v3160
        %3275 = vmatprep.subr.bf16.mxu0 0
        %3276 = vmatpush2.bf16.msra.mxu0 %v3159
        %3277 = vmatprep.subr.bf16.mxu0 0
        %3278 = vmatpush2.bf16.msra.mxu0 %v3158
        %3279 = vmatprep.subr.bf16.mxu0 0
        %3280 = vmatpush2.bf16.msra.mxu0 %v3157
        %3281 = vmatprep.subr.bf16.mxu0 0
        %3282 = vmatpush2.bf16.msra.mxu0 %v3156
        %3283 = vmatprep.subr.bf16.mxu0 0
        %3284 = vmatpush2.bf16.msra.mxu0 %v3155
        %3285 = vmatprep.subr.bf16.mxu0 0
        %3286 = vmatpush2.bf16.msra.mxu0 %v3154
        %3287 = vmatprep.subr.bf16.mxu0 0
        %3288 = vmatpush2.bf16.msra.mxu0 %v3153
        %3289 = vmatprep.mubr.bf16.mxu0 %v2768
        %3290 = vmatmul.mubr.bf16.gmra.mxu0 %v2755
        %v3291 = vpop.f32.mrf.mxu0
        %v3292 = vadd.f32 %v2919, %v3291
        %v3293 = vpop.f32.mrf.mxu0
        %v3294 = vpop.f32.mrf.mxu0
        %v3295 = vadd.f32 %v2919, %v3294
        %v3296 = vpop.f32.mrf.mxu0
        %3297 = vdwg.mxu0
        %3298 = vmatprep.subr.bf16.mxu0 0
        %3299 = vmatpush1.bf16.msra.mxu0 %v3168
        %3300 = vmatprep.subr.bf16.mxu0 0
        %3301 = vmatpush1.bf16.msra.mxu0 %v3167
        %3302 = vmatprep.subr.bf16.mxu0 0
        %3303 = vmatpush1.bf16.msra.mxu0 %v3166
        %3304 = vmatprep.subr.bf16.mxu0 0
        %3305 = vmatpush1.bf16.msra.mxu0 %v3165
        %3306 = vmatprep.subr.bf16.mxu0 0
        %3307 = vmatpush1.bf16.msra.mxu0 %v3164
        %3308 = vmatprep.subr.bf16.mxu0 0
        %3309 = vmatpush1.bf16.msra.mxu0 %v3163
        %3310 = vmatprep.subr.bf16.mxu0 0
        %3311 = vmatpush1.bf16.msra.mxu0 %v3162
        %3312 = vmatprep.subr.bf16.mxu0 0
        %3313 = vmatpush1.bf16.msra.mxu0 %v3161
        %3314 = vmatprep.subr.bf16.mxu0 0
        %3315 = vmatpush2.bf16.msra.mxu0 %v3176
        %3316 = vmatprep.subr.bf16.mxu0 0
        %3317 = vmatpush2.bf16.msra.mxu0 %v3175
        %3318 = vmatprep.subr.bf16.mxu0 0
        %3319 = vmatpush2.bf16.msra.mxu0 %v3174
        %3320 = vmatprep.subr.bf16.mxu0 0
        %3321 = vmatpush2.bf16.msra.mxu0 %v3173
        %3322 = vmatprep.subr.bf16.mxu0 0
        %3323 = vmatpush2.bf16.msra.mxu0 %v3172
        %3324 = vmatprep.subr.bf16.mxu0 0
        %3325 = vmatpush2.bf16.msra.mxu0 %v3171
        %3326 = vmatprep.subr.bf16.mxu0 0
        %3327 = vmatpush2.bf16.msra.mxu0 %v3170
        %3328 = vmatprep.subr.bf16.mxu0 0
        %3329 = vmatpush2.bf16.msra.mxu0 %v3169
        %3330 = vmatprep.mubr.bf16.mxu0 %v2784
        %3331 = vmatmul.mubr.bf16.gmra.mxu0 %v2774
        %v3332 = vpop.f32.mrf.mxu0
        %v3333 = vadd.f32 %v3292, %v3332
        %v3334 = vpop.f32.mrf.mxu0
        %v3335 = vpop.f32.mrf.mxu0
        %v3336 = vadd.f32 %v3295, %v3335
        %v3337 = vpop.f32.mrf.mxu0
        %3338 = vdwg.mxu0
        %3339 = vmatprep.subr.bf16.mxu0 0
        %3340 = vmatpush1.bf16.msra.mxu0 %v3184
        %3341 = vmatprep.subr.bf16.mxu0 0
        %3342 = vmatpush1.bf16.msra.mxu0 %v3183
        %3343 = vmatprep.subr.bf16.mxu0 0
        %3344 = vmatpush1.bf16.msra.mxu0 %v3182
        %3345 = vmatprep.subr.bf16.mxu0 0
        %3346 = vmatpush1.bf16.msra.mxu0 %v3181
        %3347 = vmatprep.subr.bf16.mxu0 0
        %3348 = vmatpush1.bf16.msra.mxu0 %v3180
        %3349 = vmatprep.subr.bf16.mxu0 0
        %3350 = vmatpush1.bf16.msra.mxu0 %v3179
        %3351 = vmatprep.subr.bf16.mxu0 0
        %3352 = vmatpush1.bf16.msra.mxu0 %v3178
        %3353 = vmatprep.subr.bf16.mxu0 0
        %3354 = vmatpush1.bf16.msra.mxu0 %v3177
        %3355 = vmatprep.subr.bf16.mxu0 0
        %3356 = vmatpush2.bf16.msra.mxu0 %v3192
        %3357 = vmatprep.subr.bf16.mxu0 0
        %3358 = vmatpush2.bf16.msra.mxu0 %v3191
        %3359 = vmatprep.subr.bf16.mxu0 0
        %3360 = vmatpush2.bf16.msra.mxu0 %v3190
        %3361 = vmatprep.subr.bf16.mxu0 0
        %3362 = vmatpush2.bf16.msra.mxu0 %v3189
        %3363 = vmatprep.subr.bf16.mxu0 0
        %3364 = vmatpush2.bf16.msra.mxu0 %v3188
        %3365 = vmatprep.subr.bf16.mxu0 0
        %3366 = vmatpush2.bf16.msra.mxu0 %v3187
        %3367 = vmatprep.subr.bf16.mxu0 0
        %3368 = vmatpush2.bf16.msra.mxu0 %v3186
        %3369 = vmatprep.subr.bf16.mxu0 0
        %3370 = vmatpush2.bf16.msra.mxu0 %v3185
        %3371 = vmatprep.mubr.bf16.mxu0 %v2796
        %3372 = vmatmul.mubr.bf16.gmra.mxu0 %v2788
        %v3373 = vpop.f32.mrf.mxu0
        %v3374 = vadd.f32 %v3333, %v3373
        %v3375 = vpop.f32.mrf.mxu0
        %v3376 = vpop.f32.mrf.mxu0
        %v3377 = vadd.f32 %v3336, %v3376
        %v3378 = vpop.f32.mrf.mxu0
        %3379 = vdwg.mxu0
        %3380 = vmatprep.subr.bf16.mxu0 0
        %3381 = vmatpush1.bf16.msra.mxu0 %v3200
        %3382 = vmatprep.subr.bf16.mxu0 0
        %3383 = vmatpush1.bf16.msra.mxu0 %v3199
        %3384 = vmatprep.subr.bf16.mxu0 0
        %3385 = vmatpush1.bf16.msra.mxu0 %v3198
        %3386 = vmatprep.subr.bf16.mxu0 0
        %3387 = vmatpush1.bf16.msra.mxu0 %v3197
        %3388 = vmatprep.subr.bf16.mxu0 0
        %3389 = vmatpush1.bf16.msra.mxu0 %v3196
        %3390 = vmatprep.subr.bf16.mxu0 0
        %3391 = vmatpush1.bf16.msra.mxu0 %v3195
        %3392 = vmatprep.subr.bf16.mxu0 0
        %3393 = vmatpush1.bf16.msra.mxu0 %v3194
        %3394 = vmatprep.subr.bf16.mxu0 0
        %3395 = vmatpush1.bf16.msra.mxu0 %v3193
        %3396 = vmatprep.subr.bf16.mxu0 0
        %3397 = vmatpush2.bf16.msra.mxu0 0
        %3398 = vmatprep.subr.bf16.mxu0 0
        %3399 = vmatpush2.bf16.msra.mxu0 0
        %3400 = vmatprep.subr.bf16.mxu0 0
        %3401 = vmatpush2.bf16.msra.mxu0 0
        %3402 = vmatprep.subr.bf16.mxu0 0
        %3403 = vmatpush2.bf16.msra.mxu0 0
        %3404 = vmatprep.subr.bf16.mxu0 0
        %3405 = vmatpush2.bf16.msra.mxu0 0
        %3406 = vmatprep.subr.bf16.mxu0 0
        %3407 = vmatpush2.bf16.msra.mxu0 0
        %3408 = vmatprep.subr.bf16.mxu0 0
        %3409 = vmatpush2.bf16.msra.mxu0 0
        %3410 = vmatprep.subr.bf16.mxu0 0
        %3411 = vmatpush2.bf16.msra.mxu0 0
        %3412 = vmatprep.mubr.bf16.mxu0 0
        %3413 = vmatmul.mubr.bf16.gmra.mxu0 %v2800
        %v3414 = vpop.f32.mrf.mxu0
        %v3415 = vadd.f32 %v3374, %v3414
        %v3416 = vpop.f32.mrf.mxu0
        %v3417 = vpop.f32.mrf.mxu0
        %v3418 = vadd.f32 %v3377, %v3417
        %v3419 = vpop.f32.mrf.mxu0
        %3420 = vdwg.mxu0
        %v3421 = vmax.f32 %v3415, 0.0
        %v3422 = vmax.f32 %v3418, 0.0
        %v3423 = vpack.c.bf16 %v3422, %v3421
        %v3425 = vrot.slane %v3423, 7
        %v3427 = vsel %vm930, 0, %v3425
        %v3429 = vsel %vm930, %v3425, 0
        %v3430 = vshrl.u32 %v3427, 16
        %v3432 = vshll.u32 %v3427, 16
        %v3434 = vrot.slane %v3432, 1
        %v3435 = vor.u32 %v3430, %v3434
        %v3436 = vshll.u32 %v3429, 16
        %v3438 = vrot.slane %v3436, 1
        %v3439 = vsel %vm780, %v3435, %v3438
        %v3443 = vrot.slane %v3427, 1
        %v3444 = vrot.slane %v3429, 1
        %v3445 = vsel %vm797, %v3443, %v3444
        %v3447 = vrot.slane %v3430, 1
        %v3448 = vrot.slane %v3432, 2
        %v3449 = vor.u32 %v3447, %v3448
        %v3450 = vshrl.u32 %v3429, 16
        %v3452 = vrot.slane %v3450, 1
        %v3453 = vrot.slane %v3436, 2
        %v3454 = vor.u32 %v3452, %v3453
        %v3455 = vsel %vm803, %v3449, %v3454
        %v3457 = vrot.slane %v3427, 2
        %v3458 = vrot.slane %v3429, 2
        %v3459 = vsel %vm815, %v3457, %v3458
        %v3461 = vld [vmem:[%s19] sm:$0xf]
        %v3462 = vld [vmem:[%s19 + $0x4] sm:$0xf]
        %v3463 = vld [vmem:[%s19 + $0x8] sm:$0xf]
        %v3464 = vld [vmem:[%s19 + $0xc] sm:$0xf]
        %v3465 = vld [vmem:[%s19 + $0x10] sm:$0xf]
        %v3466 = vld [vmem:[%s19 + $0x14] sm:$0xf]
        %v3467 = vld [vmem:[%s19 + $0x18] sm:$0xf]
        %v3468 = vld [vmem:[%s19 + $0x1c] sm:$0xf]
        %v3469 = vld [vmem:[%s19 + $0x20] sm:$0xf]
        %v3470 = vld [vmem:[%s19 + $0x24] sm:$0xf]
        %v3471 = vld [vmem:[%s19 + $0x28] sm:$0xf]
        %v3472 = vld [vmem:[%s19 + $0x2c] sm:$0xf]
        %v3473 = vld [vmem:[%s19 + $0x30] sm:$0xf]
        %v3474 = vld [vmem:[%s19 + $0x34] sm:$0xf]
        %v3475 = vld [vmem:[%s19 + $0x38] sm:$0xf]
        %v3476 = vld [vmem:[%s19 + $0x3c] sm:$0xf]
        %v3477 = vld [vmem:[%s19 + $0x40] sm:$0xf]
        %v3478 = vld [vmem:[%s19 + $0x44] sm:$0xf]
        %v3479 = vld [vmem:[%s19 + $0x48] sm:$0xf]
        %v3480 = vld [vmem:[%s19 + $0x4c] sm:$0xf]
        %v3481 = vld [vmem:[%s19 + $0x50] sm:$0xf]
        %v3482 = vld [vmem:[%s19 + $0x54] sm:$0xf]
        %v3483 = vld [vmem:[%s19 + $0x58] sm:$0xf]
        %v3484 = vld [vmem:[%s19 + $0x5c] sm:$0xf]
        %v3485 = vld [vmem:[%s19 + $0x60] sm:$0xf]
        %v3486 = vld [vmem:[%s19 + $0x64] sm:$0xf]
        %v3487 = vld [vmem:[%s19 + $0x68] sm:$0xf]
        %v3488 = vld [vmem:[%s19 + $0x6c] sm:$0xf]
        %v3489 = vld [vmem:[%s19 + $0x70] sm:$0xf]
        %v3490 = vld [vmem:[%s19 + $0x74] sm:$0xf]
        %v3491 = vld [vmem:[%s19 + $0x78] sm:$0xf]
        %v3492 = vld [vmem:[%s19 + $0x7c] sm:$0xf]
        %v3493 = vld [vmem:[%s19 + $0x80] sm:$0xf]
        %v3494 = vld [vmem:[%s19 + $0x84] sm:$0xf]
        %v3495 = vld [vmem:[%s19 + $0x88] sm:$0xf]
        %v3496 = vld [vmem:[%s19 + $0x8c] sm:$0xf]
        %v3497 = vld [vmem:[%s19 + $0x90] sm:$0xf]
        %v3498 = vld [vmem:[%s19 + $0x94] sm:$0xf]
        %v3499 = vld [vmem:[%s19 + $0x98] sm:$0xf]
        %v3500 = vld [vmem:[%s19 + $0x9c] sm:$0xf]
        %v3501 = vld [vmem:[%s19 + $0xa0] sm:$0xf]
        %v3502 = vld [vmem:[%s19 + $0xa4] sm:$0xf]
        %v3503 = vld [vmem:[%s19 + $0xa8] sm:$0xf]
        %v3504 = vld [vmem:[%s19 + $0xac] sm:$0xf]
        %v3505 = vld [vmem:[%s19 + $0xb0] sm:$0xf]
        %v3506 = vld [vmem:[%s19 + $0xb4] sm:$0xf]
        %v3507 = vld [vmem:[%s19 + $0xb8] sm:$0xf]
        %v3508 = vld [vmem:[%s19 + $0xbc] sm:$0xf]
        %v3509 = vld [vmem:[%s19 + $0xc0] sm:$0xf]
        %v3510 = vld [vmem:[%s19 + $0xc4] sm:$0xf]
        %v3511 = vld [vmem:[%s19 + $0xc8] sm:$0xf]
        %v3512 = vld [vmem:[%s19 + $0xcc] sm:$0xf]
        %v3513 = vld [vmem:[%s19 + $0xd0] sm:$0xf]
        %v3514 = vld [vmem:[%s19 + $0xd4] sm:$0xf]
        %v3515 = vld [vmem:[%s19 + $0xd8] sm:$0xf]
        %v3516 = vld [vmem:[%s19 + $0xdc] sm:$0xf]
        %v3517 = vld [vmem:[%s19 + $0xe0] sm:$0xf]
        %v3518 = vld [vmem:[%s19 + $0xe4] sm:$0xf]
        %v3519 = vld [vmem:[%s19 + $0xe8] sm:$0xf]
        %v3520 = vld [vmem:[%s19 + $0xec] sm:$0xf]
        %v3521 = vld [vmem:[%s19 + $0xf0] sm:$0xf]
        %v3522 = vld [vmem:[%s19 + $0xf4] sm:$0xf]
        %v3523 = vld [vmem:[%s19 + $0xf8] sm:$0xf]
        %v3524 = vld [vmem:[%s19 + $0xfc] sm:$0xf]
        %v3525 = vld [vmem:[%s19 + $0x100] sm:$0xf]
        %v3526 = vld [vmem:[%s19 + $0x104] sm:$0xf]
        %v3527 = vld [vmem:[%s19 + $0x108] sm:$0xf]
        %v3528 = vld [vmem:[%s19 + $0x10c] sm:$0xf]
        %v3529 = vld [vmem:[%s19 + $0x110] sm:$0xf]
        %v3530 = vld [vmem:[%s19 + $0x114] sm:$0xf]
        %v3531 = vld [vmem:[%s19 + $0x118] sm:$0xf]
        %v3532 = vld [vmem:[%s19 + $0x11c] sm:$0xf]
        %v3533 = vld [vmem:[%s19 + $0x120] sm:$0xf]
        %v3534 = vld [vmem:[%s19 + $0x124] sm:$0xf]
        %v3535 = vld [vmem:[%s19 + $0x128] sm:$0xf]
        %v3536 = vld [vmem:[%s19 + $0x12c] sm:$0xf]
        %v3537 = vld [vmem:[%s19 + $0x130] sm:$0xf]
        %v3538 = vld [vmem:[%s19 + $0x134] sm:$0xf]
        %v3539 = vld [vmem:[%s19 + $0x138] sm:$0xf]
        %v3540 = vld [vmem:[%s19 + $0x13c] sm:$0xf]
        %v3541 = vld [vmem:[%s20] sm:$0x1]
        %v3543 = vlaneseq
        %v3544 = vshrl.u32 %v3543, 7
        %v3545 = vsub.s32 0, %v3544
        %v3546 = vrot.slane %v3541, %v3545
        %v3628 = vunpack.c.l.b16 %v3461
        %v3629 = vunpack.c.l.b16 %v3462
        %v3630 = vunpack.c.l.b16 %v3463
        %v3631 = vunpack.c.l.b16 %v3464
        %v3632 = vunpack.c.l.b16 %v3465
        %v3633 = vunpack.c.l.b16 %v3466
        %v3634 = vunpack.c.l.b16 %v3467
        %v3635 = vunpack.c.l.b16 %v3468
        %v3636 = vunpack.c.l.b16 %v3469
        %v3637 = vunpack.c.l.b16 %v3470
        %v3638 = vunpack.c.l.b16 %v3471
        %v3639 = vunpack.c.l.b16 %v3472
        %v3640 = vunpack.c.l.b16 %v3473
        %v3641 = vunpack.c.l.b16 %v3474
        %v3642 = vunpack.c.l.b16 %v3475
        %v3643 = vunpack.c.l.b16 %v3476
        %v3644 = vunpack.c.l.b16 %v3477
        %v3645 = vunpack.c.l.b16 %v3478
        %v3646 = vunpack.c.l.b16 %v3479
        %v3647 = vunpack.c.l.b16 %v3480
        %v3648 = vunpack.c.l.b16 %v3481
        %v3649 = vunpack.c.l.b16 %v3482
        %v3650 = vunpack.c.l.b16 %v3483
        %v3651 = vunpack.c.l.b16 %v3484
        %v3652 = vunpack.c.l.b16 %v3485
        %v3653 = vunpack.c.l.b16 %v3486
        %v3654 = vunpack.c.l.b16 %v3487
        %v3655 = vunpack.c.l.b16 %v3488
        %v3656 = vunpack.c.l.b16 %v3489
        %v3657 = vunpack.c.l.b16 %v3490
        %v3658 = vunpack.c.l.b16 %v3491
        %v3659 = vunpack.c.l.b16 %v3492
        %v3660 = vunpack.c.l.b16 %v3493
        %v3661 = vunpack.c.l.b16 %v3494
        %v3662 = vunpack.c.l.b16 %v3495
        %v3663 = vunpack.c.l.b16 %v3496
        %v3664 = vunpack.c.l.b16 %v3497
        %v3665 = vunpack.c.l.b16 %v3498
        %v3666 = vunpack.c.l.b16 %v3499
        %v3667 = vunpack.c.l.b16 %v3500
        %v3668 = vunpack.c.l.b16 %v3501
        %v3669 = vunpack.c.l.b16 %v3502
        %v3670 = vunpack.c.l.b16 %v3503
        %v3671 = vunpack.c.l.b16 %v3504
        %v3672 = vunpack.c.l.b16 %v3505
        %v3673 = vunpack.c.l.b16 %v3506
        %v3674 = vunpack.c.l.b16 %v3507
        %v3675 = vunpack.c.l.b16 %v3508
        %v3676 = vunpack.c.l.b16 %v3509
        %v3677 = vunpack.c.l.b16 %v3510
        %v3678 = vunpack.c.l.b16 %v3511
        %v3679 = vunpack.c.l.b16 %v3512
        %v3680 = vunpack.c.l.b16 %v3513
        %v3681 = vunpack.c.l.b16 %v3514
        %v3682 = vunpack.c.l.b16 %v3515
        %v3683 = vunpack.c.l.b16 %v3516
        %v3684 = vunpack.c.l.b16 %v3517
        %v3685 = vunpack.c.l.b16 %v3518
        %v3686 = vunpack.c.l.b16 %v3519
        %v3687 = vunpack.c.l.b16 %v3520
        %v3688 = vunpack.c.l.b16 %v3521
        %v3689 = vunpack.c.l.b16 %v3522
        %v3690 = vunpack.c.l.b16 %v3523
        %v3691 = vunpack.c.l.b16 %v3524
        %v3692 = vunpack.c.l.b16 %v3525
        %v3693 = vunpack.c.l.b16 %v3526
        %v3694 = vunpack.c.l.b16 %v3527
        %v3695 = vunpack.c.l.b16 %v3528
        %v3696 = vunpack.c.l.b16 %v3529
        %v3697 = vunpack.c.l.b16 %v3530
        %v3698 = vunpack.c.l.b16 %v3531
        %v3699 = vunpack.c.l.b16 %v3532
        %v3700 = vunpack.c.l.b16 %v3533
        %v3701 = vunpack.c.l.b16 %v3534
        %v3702 = vunpack.c.l.b16 %v3535
        %v3703 = vunpack.c.l.b16 %v3536
        %v3704 = vunpack.c.l.b16 %v3537
        %v3705 = vunpack.c.l.b16 %v3538
        %v3706 = vunpack.c.l.b16 %v3539
        %v3707 = vunpack.c.l.b16 %v3540
        %v3708 = vpack.c.b16 %v3629, %v3628
        %v3709 = vpack.c.b16 %v3631, %v3630
        %v3710 = vpack.c.b16 %v3633, %v3632
        %v3711 = vpack.c.b16 %v3635, %v3634
        %v3712 = vpack.c.b16 %v3637, %v3636
        %v3713 = vpack.c.b16 %v3639, %v3638
        %v3714 = vpack.c.b16 %v3641, %v3640
        %v3715 = vpack.c.b16 %v3643, %v3642
        %v3716 = vpack.c.b16 %v3645, %v3644
        %v3717 = vpack.c.b16 %v3647, %v3646
        %v3718 = vpack.c.b16 %v3649, %v3648
        %v3719 = vpack.c.b16 %v3651, %v3650
        %v3720 = vpack.c.b16 %v3653, %v3652
        %v3721 = vpack.c.b16 %v3655, %v3654
        %v3722 = vpack.c.b16 %v3657, %v3656
        %v3723 = vpack.c.b16 %v3659, %v3658
        %v3724 = vpack.c.b16 %v3661, %v3660
        %v3725 = vpack.c.b16 %v3663, %v3662
        %v3726 = vpack.c.b16 %v3665, %v3664
        %v3727 = vpack.c.b16 %v3667, %v3666
        %v3728 = vpack.c.b16 %v3669, %v3668
        %v3729 = vpack.c.b16 %v3671, %v3670
        %v3730 = vpack.c.b16 %v3673, %v3672
        %v3731 = vpack.c.b16 %v3675, %v3674
        %v3732 = vpack.c.b16 %v3677, %v3676
        %v3733 = vpack.c.b16 %v3679, %v3678
        %v3734 = vpack.c.b16 %v3681, %v3680
        %v3735 = vpack.c.b16 %v3683, %v3682
        %v3736 = vpack.c.b16 %v3685, %v3684
        %v3737 = vpack.c.b16 %v3687, %v3686
        %v3738 = vpack.c.b16 %v3689, %v3688
        %v3739 = vpack.c.b16 %v3691, %v3690
        %v3740 = vpack.c.b16 %v3693, %v3692
        %v3741 = vpack.c.b16 %v3695, %v3694
        %v3742 = vpack.c.b16 %v3697, %v3696
        %v3743 = vpack.c.b16 %v3699, %v3698
        %v3744 = vpack.c.b16 %v3701, %v3700
        %v3745 = vpack.c.b16 %v3703, %v3702
        %v3746 = vpack.c.b16 %v3705, %v3704
        %v3747 = vpack.c.b16 %v3707, %v3706
        %3788 = vmatprep.subr.bf16.mxu0 0
        %3789 = vmatpush1.bf16.msra.mxu0 %v3715
        %3790 = vmatprep.subr.bf16.mxu0 0
        %3791 = vmatpush1.bf16.msra.mxu0 %v3714
        %3792 = vmatprep.subr.bf16.mxu0 0
        %3793 = vmatpush1.bf16.msra.mxu0 %v3713
        %3794 = vmatprep.subr.bf16.mxu0 0
        %3795 = vmatpush1.bf16.msra.mxu0 %v3712
        %3796 = vmatprep.subr.bf16.mxu0 0
        %3797 = vmatpush1.bf16.msra.mxu0 %v3711
        %3798 = vmatprep.subr.bf16.mxu0 0
        %3799 = vmatpush1.bf16.msra.mxu0 %v3710
        %3800 = vmatprep.subr.bf16.mxu0 0
        %3801 = vmatpush1.bf16.msra.mxu0 %v3709
        %3802 = vmatprep.subr.bf16.mxu0 0
        %3803 = vmatpush1.bf16.msra.mxu0 %v3708
        %3804 = vmatprep.subr.bf16.mxu0 0
        %3805 = vmatpush2.bf16.msra.mxu0 %v3723
        %3806 = vmatprep.subr.bf16.mxu0 0
        %3807 = vmatpush2.bf16.msra.mxu0 %v3722
        %3808 = vmatprep.subr.bf16.mxu0 0
        %3809 = vmatpush2.bf16.msra.mxu0 %v3721
        %3810 = vmatprep.subr.bf16.mxu0 0
        %3811 = vmatpush2.bf16.msra.mxu0 %v3720
        %3812 = vmatprep.subr.bf16.mxu0 0
        %3813 = vmatpush2.bf16.msra.mxu0 %v3719
        %3814 = vmatprep.subr.bf16.mxu0 0
        %3815 = vmatpush2.bf16.msra.mxu0 %v3718
        %3816 = vmatprep.subr.bf16.mxu0 0
        %3817 = vmatpush2.bf16.msra.mxu0 %v3717
        %3818 = vmatprep.subr.bf16.mxu0 0
        %3819 = vmatpush2.bf16.msra.mxu0 %v3716
        %3820 = vmatprep.mubr.bf16.mxu0 %v3439
        %3821 = vmatmul.mubr.bf16.gmra.mxu0 %v3427
        %v3822 = vpop.f32.mrf.mxu0
        %v3823 = vadd.f32 %v3546, %v3822
        %v3824 = vpop.f32.mrf.mxu0
        %v3825 = vpop.f32.mrf.mxu0
        %v3826 = vadd.f32 %v3546, %v3825
        %v3827 = vpop.f32.mrf.mxu0
        %3828 = vdwg.mxu0
        %3829 = vmatprep.subr.bf16.mxu0 0
        %3830 = vmatpush1.bf16.msra.mxu0 %v3731
        %3831 = vmatprep.subr.bf16.mxu0 0
        %3832 = vmatpush1.bf16.msra.mxu0 %v3730
        %3833 = vmatprep.subr.bf16.mxu0 0
        %3834 = vmatpush1.bf16.msra.mxu0 %v3729
        %3835 = vmatprep.subr.bf16.mxu0 0
        %3836 = vmatpush1.bf16.msra.mxu0 %v3728
        %3837 = vmatprep.subr.bf16.mxu0 0
        %3838 = vmatpush1.bf16.msra.mxu0 %v3727
        %3839 = vmatprep.subr.bf16.mxu0 0
        %3840 = vmatpush1.bf16.msra.mxu0 %v3726
        %3841 = vmatprep.subr.bf16.mxu0 0
        %3842 = vmatpush1.bf16.msra.mxu0 %v3725
        %3843 = vmatprep.subr.bf16.mxu0 0
        %3844 = vmatpush1.bf16.msra.mxu0 %v3724
        %3845 = vmatprep.subr.bf16.mxu0 0
        %3846 = vmatpush2.bf16.msra.mxu0 %v3739
        %3847 = vmatprep.subr.bf16.mxu0 0
        %3848 = vmatpush2.bf16.msra.mxu0 %v3738
        %3849 = vmatprep.subr.bf16.mxu0 0
        %3850 = vmatpush2.bf16.msra.mxu0 %v3737
        %3851 = vmatprep.subr.bf16.mxu0 0
        %3852 = vmatpush2.bf16.msra.mxu0 %v3736
        %3853 = vmatprep.subr.bf16.mxu0 0
        %3854 = vmatpush2.bf16.msra.mxu0 %v3735
        %3855 = vmatprep.subr.bf16.mxu0 0
        %3856 = vmatpush2.bf16.msra.mxu0 %v3734
        %3857 = vmatprep.subr.bf16.mxu0 0
        %3858 = vmatpush2.bf16.msra.mxu0 %v3733
        %3859 = vmatprep.subr.bf16.mxu0 0
        %3860 = vmatpush2.bf16.msra.mxu0 %v3732
        %3861 = vmatprep.mubr.bf16.mxu0 %v3455
        %3862 = vmatmul.mubr.bf16.gmra.mxu0 %v3445
        %v3863 = vpop.f32.mrf.mxu0
        %v3864 = vadd.f32 %v3823, %v3863
        %v3865 = vpop.f32.mrf.mxu0
        %v3866 = vpop.f32.mrf.mxu0
        %v3867 = vadd.f32 %v3826, %v3866
        %v3868 = vpop.f32.mrf.mxu0
        %3869 = vdwg.mxu0
        %3870 = vmatprep.subr.bf16.mxu0 0
        %3871 = vmatpush1.bf16.msra.mxu0 %v3747
        %3872 = vmatprep.subr.bf16.mxu0 0
        %3873 = vmatpush1.bf16.msra.mxu0 %v3746
        %3874 = vmatprep.subr.bf16.mxu0 0
        %3875 = vmatpush1.bf16.msra.mxu0 %v3745
        %3876 = vmatprep.subr.bf16.mxu0 0
        %3877 = vmatpush1.bf16.msra.mxu0 %v3744
        %3878 = vmatprep.subr.bf16.mxu0 0
        %3879 = vmatpush1.bf16.msra.mxu0 %v3743
        %3880 = vmatprep.subr.bf16.mxu0 0
        %3881 = vmatpush1.bf16.msra.mxu0 %v3742
        %3882 = vmatprep.subr.bf16.mxu0 0
        %3883 = vmatpush1.bf16.msra.mxu0 %v3741
        %3884 = vmatprep.subr.bf16.mxu0 0
        %3885 = vmatpush1.bf16.msra.mxu0 %v3740
        %3886 = vmatprep.subr.bf16.mxu0 0
        %3887 = vmatpush2.bf16.msra.mxu0 0
        %3888 = vmatprep.subr.bf16.mxu0 0
        %3889 = vmatpush2.bf16.msra.mxu0 0
        %3890 = vmatprep.subr.bf16.mxu0 0
        %3891 = vmatpush2.bf16.msra.mxu0 0
        %3892 = vmatprep.subr.bf16.mxu0 0
        %3893 = vmatpush2.bf16.msra.mxu0 0
        %3894 = vmatprep.subr.bf16.mxu0 0
        %3895 = vmatpush2.bf16.msra.mxu0 0
        %3896 = vmatprep.subr.bf16.mxu0 0
        %3897 = vmatpush2.bf16.msra.mxu0 0
        %3898 = vmatprep.subr.bf16.mxu0 0
        %3899 = vmatpush2.bf16.msra.mxu0 0
        %3900 = vmatprep.subr.bf16.mxu0 0
        %3901 = vmatpush2.bf16.msra.mxu0 0
        %3902 = vmatprep.mubr.bf16.mxu0 0
        %3903 = vmatmul.mubr.bf16.gmra.mxu0 %v3459
        %v3904 = vpop.f32.mrf.mxu0
        %v3905 = vadd.f32 %v3864, %v3904
        %v3906 = vpop.f32.mrf.mxu0
        %v3907 = vpop.f32.mrf.mxu0
        %v3908 = vadd.f32 %v3867, %v3907
        %v3909 = vpop.f32.mrf.mxu0
        %3910 = vdwg.mxu0
        %v3911 = vmax.f32 %v3905, 0.0
        %v3912 = vmax.f32 %v3908, 0.0
        %v3913 = vpack.c.bf16 %v3912, %v3911
        %v3915 = vshrl.u32 %v3913, 16
        %v3917 = vrot.slane %v3915, 7
        %v3918 = vshll.u32 %v3913, 16
        %v3920 = vor.u32 %v3917, %v3918
        %v3923 = vsel %vm1240, 0, %v3920
        %v3924 = vsel %vm1240, %v3917, 0
        %v3926 = vshrl.u32 %v3923, 16
        %v3928 = vshll.u32 %v3923, 16
        %v3930 = vrot.slane %v3928, 1
        %v3931 = vor.u32 %v3926, %v3930
        %v3933 = vshll.u32 %v3924, 16
        %v3935 = vrot.slane %v3933, 1
        %v3936 = vsel %vm780, %v3931, %v3935
        %v3940 = vrot.slane %v3923, 1
        %v3941 = vrot.slane %v3924, 1
        %v3942 = vsel %vm797, %v3940, %v3941
        %v3944 = vld [vmem:[%s21] sm:$0xf]
        %v3945 = vld [vmem:[%s21 + $0x4] sm:$0xf]
        %v3946 = vld [vmem:[%s21 + $0x8] sm:$0xf]
        %v3947 = vld [vmem:[%s21 + $0xc] sm:$0xf]
        %v3948 = vld [vmem:[%s21 + $0x10] sm:$0xf]
        %v3949 = vld [vmem:[%s21 + $0x14] sm:$0xf]
        %v3950 = vld [vmem:[%s21 + $0x18] sm:$0xf]
        %v3951 = vld [vmem:[%s21 + $0x1c] sm:$0xf]
        %v3952 = vld [vmem:[%s21 + $0x20] sm:$0xf]
        %v3953 = vld [vmem:[%s21 + $0x24] sm:$0xf]
        %v3954 = vld [vmem:[%s21 + $0x28] sm:$0xf]
        %v3955 = vld [vmem:[%s21 + $0x2c] sm:$0xf]
        %v3956 = vld [vmem:[%s21 + $0x30] sm:$0xf]
        %v3957 = vld [vmem:[%s21 + $0x34] sm:$0xf]
        %v3958 = vld [vmem:[%s21 + $0x38] sm:$0xf]
        %v3959 = vld [vmem:[%s21 + $0x3c] sm:$0xf]
        %v3960 = vld [vmem:[%s21 + $0x40] sm:$0xf]
        %v3961 = vld [vmem:[%s21 + $0x44] sm:$0xf]
        %v3962 = vld [vmem:[%s21 + $0x48] sm:$0xf]
        %v3963 = vld [vmem:[%s21 + $0x4c] sm:$0xf]
        %v3964 = vld [vmem:[%s21 + $0x50] sm:$0xf]
        %v3965 = vld [vmem:[%s21 + $0x54] sm:$0xf]
        %v3966 = vld [vmem:[%s21 + $0x58] sm:$0xf]
        %v3967 = vld [vmem:[%s21 + $0x5c] sm:$0xf]
        %v3968 = vld [vmem:[%s21 + $0x60] sm:$0xf]
        %v3969 = vld [vmem:[%s21 + $0x64] sm:$0xf]
        %v3970 = vld [vmem:[%s21 + $0x68] sm:$0xf]
        %v3971 = vld [vmem:[%s21 + $0x6c] sm:$0xf]
        %v3972 = vld [vmem:[%s21 + $0x70] sm:$0xf]
        %v3973 = vld [vmem:[%s21 + $0x74] sm:$0xf]
        %v3974 = vld [vmem:[%s21 + $0x78] sm:$0xf]
        %v3975 = vld [vmem:[%s21 + $0x7c] sm:$0xf]
        %v3976 = vld [vmem:[%s21 + $0x80] sm:$0xf]
        %v3977 = vld [vmem:[%s21 + $0x84] sm:$0xf]
        %v3978 = vld [vmem:[%s21 + $0x88] sm:$0xf]
        %v3979 = vld [vmem:[%s21 + $0x8c] sm:$0xf]
        %v3980 = vld [vmem:[%s21 + $0x90] sm:$0xf]
        %v3981 = vld [vmem:[%s21 + $0x94] sm:$0xf]
        %v3982 = vld [vmem:[%s21 + $0x98] sm:$0xf]
        %v3983 = vld [vmem:[%s21 + $0x9c] sm:$0xf]
        %v3984 = vld [vmem:[%s21 + $0xa0] sm:$0xf]
        %v3985 = vld [vmem:[%s21 + $0xa4] sm:$0xf]
        %v3986 = vld [vmem:[%s21 + $0xa8] sm:$0xf]
        %v3987 = vld [vmem:[%s21 + $0xac] sm:$0xf]
        %v3988 = vld [vmem:[%s21 + $0xb0] sm:$0xf]
        %v3989 = vld [vmem:[%s21 + $0xb4] sm:$0xf]
        %v3990 = vld [vmem:[%s21 + $0xb8] sm:$0xf]
        %v3991 = vld [vmem:[%s21 + $0xbc] sm:$0xf]
        %v3992 = vld [vmem:[%s22] sm:$0x1]
        %v3994 = vlaneseq
        %v3995 = vshrl.u32 %v3994, 7
        %v3996 = vsub.s32 0, %v3995
        %v3997 = vrot.slane %v3992, %v3996
        %v4047 = vunpack.c.l.b16 %v3944
        %v4048 = vunpack.c.l.b16 %v3945
        %v4049 = vunpack.c.l.b16 %v3946
        %v4050 = vunpack.c.l.b16 %v3947
        %v4051 = vunpack.c.l.b16 %v3948
        %v4052 = vunpack.c.l.b16 %v3949
        %v4053 = vunpack.c.l.b16 %v3950
        %v4054 = vunpack.c.l.b16 %v3951
        %v4055 = vunpack.c.l.b16 %v3952
        %v4056 = vunpack.c.l.b16 %v3953
        %v4057 = vunpack.c.l.b16 %v3954
        %v4058 = vunpack.c.l.b16 %v3955
        %v4059 = vunpack.c.l.b16 %v3956
        %v4060 = vunpack.c.l.b16 %v3957
        %v4061 = vunpack.c.l.b16 %v3958
        %v4062 = vunpack.c.l.b16 %v3959
        %v4063 = vunpack.c.l.b16 %v3960
        %v4064 = vunpack.c.l.b16 %v3961
        %v4065 = vunpack.c.l.b16 %v3962
        %v4066 = vunpack.c.l.b16 %v3963
        %v4067 = vunpack.c.l.b16 %v3964
        %v4068 = vunpack.c.l.b16 %v3965
        %v4069 = vunpack.c.l.b16 %v3966
        %v4070 = vunpack.c.l.b16 %v3967
        %v4071 = vunpack.c.l.b16 %v3968
        %v4072 = vunpack.c.l.b16 %v3969
        %v4073 = vunpack.c.l.b16 %v3970
        %v4074 = vunpack.c.l.b16 %v3971
        %v4075 = vunpack.c.l.b16 %v3972
        %v4076 = vunpack.c.l.b16 %v3973
        %v4077 = vunpack.c.l.b16 %v3974
        %v4078 = vunpack.c.l.b16 %v3975
        %v4079 = vunpack.c.l.b16 %v3976
        %v4080 = vunpack.c.l.b16 %v3977
        %v4081 = vunpack.c.l.b16 %v3978
        %v4082 = vunpack.c.l.b16 %v3979
        %v4083 = vunpack.c.l.b16 %v3980
        %v4084 = vunpack.c.l.b16 %v3981
        %v4085 = vunpack.c.l.b16 %v3982
        %v4086 = vunpack.c.l.b16 %v3983
        %v4087 = vunpack.c.l.b16 %v3984
        %v4088 = vunpack.c.l.b16 %v3985
        %v4089 = vunpack.c.l.b16 %v3986
        %v4090 = vunpack.c.l.b16 %v3987
        %v4091 = vunpack.c.l.b16 %v3988
        %v4092 = vunpack.c.l.b16 %v3989
        %v4093 = vunpack.c.l.b16 %v3990
        %v4094 = vunpack.c.l.b16 %v3991
        %v4095 = vpack.c.b16 %v4048, %v4047
        %v4096 = vpack.c.b16 %v4050, %v4049
        %v4097 = vpack.c.b16 %v4052, %v4051
        %v4098 = vpack.c.b16 %v4054, %v4053
        %v4099 = vpack.c.b16 %v4056, %v4055
        %v4100 = vpack.c.b16 %v4058, %v4057
        %v4101 = vpack.c.b16 %v4060, %v4059
        %v4102 = vpack.c.b16 %v4062, %v4061
        %v4103 = vpack.c.b16 %v4064, %v4063
        %v4104 = vpack.c.b16 %v4066, %v4065
        %v4105 = vpack.c.b16 %v4068, %v4067
        %v4106 = vpack.c.b16 %v4070, %v4069
        %v4107 = vpack.c.b16 %v4072, %v4071
        %v4108 = vpack.c.b16 %v4074, %v4073
        %v4109 = vpack.c.b16 %v4076, %v4075
        %v4110 = vpack.c.b16 %v4078, %v4077
        %v4111 = vpack.c.b16 %v4080, %v4079
        %v4112 = vpack.c.b16 %v4082, %v4081
        %v4113 = vpack.c.b16 %v4084, %v4083
        %v4114 = vpack.c.b16 %v4086, %v4085
        %v4115 = vpack.c.b16 %v4088, %v4087
        %v4116 = vpack.c.b16 %v4090, %v4089
        %v4117 = vpack.c.b16 %v4092, %v4091
        %v4118 = vpack.c.b16 %v4094, %v4093
        %4143 = vmatprep.subr.bf16.mxu0 0
        %4144 = vmatpush1.bf16.msra.mxu0 %v4102
        %4145 = vmatprep.subr.bf16.mxu0 0
        %4146 = vmatpush1.bf16.msra.mxu0 %v4101
        %4147 = vmatprep.subr.bf16.mxu0 0
        %4148 = vmatpush1.bf16.msra.mxu0 %v4100
        %4149 = vmatprep.subr.bf16.mxu0 0
        %4150 = vmatpush1.bf16.msra.mxu0 %v4099
        %4151 = vmatprep.subr.bf16.mxu0 0
        %4152 = vmatpush1.bf16.msra.mxu0 %v4098
        %4153 = vmatprep.subr.bf16.mxu0 0
        %4154 = vmatpush1.bf16.msra.mxu0 %v4097
        %4155 = vmatprep.subr.bf16.mxu0 0
        %4156 = vmatpush1.bf16.msra.mxu0 %v4096
        %4157 = vmatprep.subr.bf16.mxu0 0
        %4158 = vmatpush1.bf16.msra.mxu0 %v4095
        %4159 = vmatprep.subr.bf16.mxu0 0
        %4160 = vmatpush2.bf16.msra.mxu0 %v4110
        %4161 = vmatprep.subr.bf16.mxu0 0
        %4162 = vmatpush2.bf16.msra.mxu0 %v4109
        %4163 = vmatprep.subr.bf16.mxu0 0
        %4164 = vmatpush2.bf16.msra.mxu0 %v4108
        %4165 = vmatprep.subr.bf16.mxu0 0
        %4166 = vmatpush2.bf16.msra.mxu0 %v4107
        %4167 = vmatprep.subr.bf16.mxu0 0
        %4168 = vmatpush2.bf16.msra.mxu0 %v4106
        %4169 = vmatprep.subr.bf16.mxu0 0
        %4170 = vmatpush2.bf16.msra.mxu0 %v4105
        %4171 = vmatprep.subr.bf16.mxu0 0
        %4172 = vmatpush2.bf16.msra.mxu0 %v4104
        %4173 = vmatprep.subr.bf16.mxu0 0
        %4174 = vmatpush2.bf16.msra.mxu0 %v4103
        %4175 = vmatprep.mubr.bf16.mxu0 %v3936
        %4176 = vmatmul.mubr.bf16.gmra.mxu0 %v3923
        %v4177 = vpop.f32.mrf.mxu0
        %v4178 = vadd.f32 %v3997, %v4177
        %v4179 = vpop.f32.mrf.mxu0
        %v4180 = vpop.f32.mrf.mxu0
        %v4181 = vadd.f32 %v3997, %v4180
        %v4182 = vpop.f32.mrf.mxu0
        %4183 = vdwg.mxu0
        %4184 = vmatprep.subr.bf16.mxu0 0
        %4185 = vmatpush1.bf16.msra.mxu0 %v4118
        %4186 = vmatprep.subr.bf16.mxu0 0
        %4187 = vmatpush1.bf16.msra.mxu0 %v4117
        %4188 = vmatprep.subr.bf16.mxu0 0
        %4189 = vmatpush1.bf16.msra.mxu0 %v4116
        %4190 = vmatprep.subr.bf16.mxu0 0
        %4191 = vmatpush1.bf16.msra.mxu0 %v4115
        %4192 = vmatprep.subr.bf16.mxu0 0
        %4193 = vmatpush1.bf16.msra.mxu0 %v4114
        %4194 = vmatprep.subr.bf16.mxu0 0
        %4195 = vmatpush1.bf16.msra.mxu0 %v4113
        %4196 = vmatprep.subr.bf16.mxu0 0
        %4197 = vmatpush1.bf16.msra.mxu0 %v4112
        %4198 = vmatprep.subr.bf16.mxu0 0
        %4199 = vmatpush1.bf16.msra.mxu0 %v4111
        %4200 = vmatprep.subr.bf16.mxu0 0
        %4201 = vmatpush2.bf16.msra.mxu0 0
        %4202 = vmatprep.subr.bf16.mxu0 0
        %4203 = vmatpush2.bf16.msra.mxu0 0
        %4204 = vmatprep.subr.bf16.mxu0 0
        %4205 = vmatpush2.bf16.msra.mxu0 0
        %4206 = vmatprep.subr.bf16.mxu0 0
        %4207 = vmatpush2.bf16.msra.mxu0 0
        %4208 = vmatprep.subr.bf16.mxu0 0
        %4209 = vmatpush2.bf16.msra.mxu0 0
        %4210 = vmatprep.subr.bf16.mxu0 0
        %4211 = vmatpush2.bf16.msra.mxu0 0
        %4212 = vmatprep.subr.bf16.mxu0 0
        %4213 = vmatpush2.bf16.msra.mxu0 0
        %4214 = vmatprep.subr.bf16.mxu0 0
        %4215 = vmatpush2.bf16.msra.mxu0 0
        %4216 = vmatprep.mubr.bf16.mxu0 0
        %4217 = vmatmul.mubr.bf16.gmra.mxu0 %v3942
        %v4218 = vpop.f32.mrf.mxu0
        %v4219 = vadd.f32 %v4178, %v4218
        %v4220 = vpop.f32.mrf.mxu0
        %v4221 = vpop.f32.mrf.mxu0
        %v4222 = vadd.f32 %v4181, %v4221
        %v4223 = vpop.f32.mrf.mxu0
        %4224 = vdwg.mxu0
        %v4225 = vld [vmem:[%s23] sm:$0x1]
        %v4227 = vlaneseq
        %v4228 = vshrl.u32 %v4227, 7
        %v4229 = vsub.s32 0, %v4228
        %v4230 = vrot.slane %v4225, %v4229
        %v4232 = vmul.f32 %v2743, %v4230
        %v4233 = vmul.f32 %v2744, %v4230
        %v4234 = vld [vmem:[%s24] sm:$0x1]
        %v4236 = vlaneseq
        %v4237 = vshrl.u32 %v4236, 7
        %v4238 = vsub.s32 0, %v4237
        %v4239 = vrot.slane %v4234, %v4238
        %v4241 = vadd.f32 %v4232, %v4239
        %v4242 = vadd.f32 %v4233, %v4239
        %v4243 = vadd.f32 %v4219, %v4241
        %v4244 = vadd.f32 %v4222, %v4242
        %v4245 = vmax.f32 %v4243, 0.0
        %v4246 = vmax.f32 %v4244, 0.0
        %v4247 = vadd.f32 %v4245, %v4246
        %v4248 = vrot.slane %v4247, 4
        %v4249 = vadd.f32 %v4247, %v4248
        %v4250 = vrot.slane %v4249, 2
        %v4251 = vadd.f32 %v4249, %v4250
        %v4252 = vrot.slane %v4251, 1
        %v4253 = vadd.f32 %v4251, %v4252
        %v4254 = vrcp.pop 16.0
        %v4255 = vmul.f32 %v4253, %v4254
        %4256 = vst [vmem:[%s756] sm:$0x1] %v4255
        %s4257 = sand.u32 %s577, 1
        %s4258 = scalar_lea.sflag [#allocation3], %s4257
        %s4259 = sand.u32 %s577, 1
        %s4260 = scalar_lea.vmem [#allocation2], %s4259
        // Predicated region
        $region121: #{resnet_body_fwd.1} parent=119 // pred_check
          %p4261 = pneg %p587
        $region122: #{resnet_body_fwd.1} parent=119 // pred_check_branch
          %4263 = sbr.rel (%p4261) target = $region124
        $region123: #{resnet_body_fwd.1} parent=119 // pred_region
          %s4265 = ssub.s32 16, 16
          %4266 = vsyncadd %s4258, %s4265
          %s4267 = smul.addr %s39, 16
          %s4268 = scalar_lea.hbm %s25, %s4267
          %s4270 = sshll.u32 %s4260, 4
          %s4271 = int_to_ptr.vmem [resolvable:$true] %s4270
          %4273 = dma.vmem_to_hbm [thread:$0]  %s4271, 16, %s4268, %s4258
        $region124: #{resnet_body_fwd.1} parent=119 // pred_fallthru
          _
      $region120: #{resnet_body_fwd.1} parent=5 // pred_fallthru
        _
      %p4274 = scmp.le.s32.totalorder 2, %s34
      // Predicated region
      $region125: #{resnet_body_fwd.1} parent=5 // pred_check
        %p4275 = pneg %p4274
      $region126: #{resnet_body_fwd.1} parent=5 // pred_check_branch
        %4277 = sbr.rel (%p4275) target = $region128
      $region127: #{resnet_body_fwd.1} parent=5 // pred_region
        %s4278 = ssub.s32 %s34, 2
        // Predicated region
        $region129: #{resnet_body_fwd.1} parent=127 // pred_check
          %p4279 = pneg %p593
        $region130: #{resnet_body_fwd.1} parent=127 // pred_check_branch
          %4281 = sbr.rel (%p4279) target = $region132
        $region131: #{resnet_body_fwd.1} parent=127 // pred_region
          %s4282 = sand.u32 %s578, 1
          %s4283 = scalar_lea.sflag [#allocation3], %s4282
          %s4284 = sand.u32 %s578, 1
          %s4285 = scalar_lea.vmem [#allocation2], %s4284
          %4286 = dma.done %s4283, 16
        $region132: #{resnet_body_fwd.1} parent=127 // pred_fallthru
          _
      $region128: #{resnet_body_fwd.1} parent=5 // pred_fallthru
        _
    $region6: #{resnet_body_fwd.1} parent=1 // loop_footer
      %s38 = sadd.s32 1, %s34
    $region7: #{resnet_body_fwd.1} parent=1 // loop_footer_branch
      %33 = sbr.rel target = $region3
    $region8: #{resnet_body_fwd.1} parent=1 // loop_exit
      _
    %4287 = vsyncpa [#allocation3], 1
    %s4288 = scalar_lea.sflag [#allocation3], 1
    %4289 = vsyncpa %s4288, 1

</llo_original>
